<compile_context>
chip_gen: v7x
topology: tpu7x:2x2x1
jax: 0.10.0
libtpu: 0.0.40
codegen_flags: <defaults>
</compile_context>

<pallas_src>
import jax
import jax.numpy as jnp
from jax.experimental import pallas as pl
from jax.experimental.pallas import tpu as pltpu


def _round_up(x, m):
    return ((x + m - 1) // m) * m


def _make_mlp_kernel(num_layers, relu_flags):
    """Fused MLP kernel: h -> (h @ W_i + b_i) [-> relu], chained over layers."""

    def kernel(*refs):
        x_ref = refs[0]
        w_refs = refs[1:1 + num_layers]
        b_refs = refs[1 + num_layers:1 + 2 * num_layers]
        o_ref = refs[1 + 2 * num_layers]

        h = x_ref[...]                                    # f32 row tile
        for i in range(num_layers):
            h = jnp.dot(h, w_refs[i][...],
                        preferred_element_type=jnp.float32)
            h = h + b_refs[i][...]                        # (1, out) broadcast
            if relu_flags[i]:
                h = jnp.maximum(h, 0.0)
        o_ref[...] = h.astype(o_ref.dtype)

    return kernel


def mlp_forward(x, weights, biases, relu_flags, *, row_tile=1024):
    """Run the fused MLP Pallas kernel.

    x:        [N, in_dim]            (native dtype, no wrapper pad/cast)
    weights:  list of [in_i, out_i]  (already transposed vs torch's (out, in))
    biases:   list of [1, out_i]
    """
    n_rows, in_dim = x.shape
    num_layers = len(weights)
    out_dim = weights[-1].shape[1]

    # Row tile: multiple of 8 (sublane), as large as row_tile allows, but
    # capped at ceil(N/2) so the "parallel" grid always has >= 2 blocks
    # (keeps both v7x TensorCores busy); ragged last block handled by Pallas.
    tm = max(8, min(row_tile, _round_up(pl.cdiv(n_rows, 2), 8)))
    grid = (pl.cdiv(n_rows, tm),)

    in_specs = [pl.BlockSpec((tm, in_dim), lambda i: (i, 0))]
    # Weights / biases: full-array blocks, constant index -> VMEM-resident.
    for w in weights:
        in_specs.append(pl.BlockSpec(w.shape, lambda i: (0, 0)))
    for b in biases:
        in_specs.append(pl.BlockSpec(b.shape, lambda i: (0, 0)))

    param_bytes = (sum(int(w.size) * 4 for w in weights)
                   + sum(int(b.size) * 4 for b in biases))
    cost = pl.CostEstimate(
        flops=2 * n_rows * sum(int(w.shape[0]) * int(w.shape[1])
                               for w in weights),
        transcendentals=0,
        bytes_accessed=(n_rows * in_dim * x.dtype.itemsize
                        + n_rows * out_dim * 4 + param_bytes),
    )

    kernel = _make_mlp_kernel(num_layers, tuple(relu_flags))

    return pl.pallas_call(
        kernel,
        out_shape=jax.ShapeDtypeStruct((n_rows, out_dim), jnp.float32),
        grid_spec=pltpu.PrefetchScalarGridSpec(
            num_scalar_prefetch=0,
            grid=grid,
            in_specs=in_specs,
            out_specs=pl.BlockSpec((tm, out_dim), lambda i: (i, 0)),
        ),
        compiler_params=pltpu.CompilerParams(
            dimension_semantics=("parallel",)),
        cost_estimate=cost,
    )(x, *weights, *biases)


def init_mlp_params(key, input_dim, fc_dims):
    """Deterministic params for MLP(input_dim, fc_dims): weights as (in, out)."""
    weights, biases, relu_flags = [], [], []
    d_in = input_dim
    for d_out in fc_dims:
        key, kw, kb = jax.random.split(key, 3)
        w = jax.random.normal(kw, (d_in, d_out), jnp.float32) / jnp.sqrt(d_in)
        b = jax.random.normal(kb, (1, d_out), jnp.float32) * 0.01
        weights.append(w)
        biases.append(b)
        # mot_neural_solver's MLP applies ReLU after every layer with out dim != 1.
        relu_flags.append(d_out != 1)
        d_in = d_out
    return weights, biases, relu_flags


class MLPGraphIndependentPallas:
    """JAX/Pallas port of MLPGraphIndependent (inference, no dropout/batchnorm)."""

    def __init__(self, key, edge_in_dim=None, node_in_dim=None,
                 edge_out_dim=None, node_out_dim=None,
                 node_fc_dims=None, edge_fc_dims=None, row_tile=1024):
        self.row_tile = row_tile
        k_node, k_edge = jax.random.split(key)
        if node_in_dim is not None:
            self.node_params = init_mlp_params(
                k_node, node_in_dim, list(node_fc_dims) + [node_out_dim])
        else:
            self.node_params = None
        if edge_in_dim is not None:
            self.edge_params = init_mlp_params(
                k_edge, edge_in_dim, list(edge_fc_dims) + [edge_out_dim])
        else:
            self.edge_params = None
        # One jit over the whole forward: both pallas_calls in one XLA program.
        self._forward = jax.jit(self._forward_impl)

    def _forward_impl(self, edge_feats, nodes_feats):
        if self.node_params is not None and nodes_feats is not None:
            w, b, r = self.node_params
            out_node = mlp_forward(nodes_feats, w, b, r, row_tile=self.row_tile)
        else:
            out_node = nodes_feats
        if self.edge_params is not None and edge_feats is not None:
            w, b, r = self.edge_params
            out_edge = mlp_forward(edge_feats, w, b, r, row_tile=self.row_tile)
        else:
            out_edge = edge_feats
        return out_edge, out_node

    def __call__(self, edge_feats=None, nodes_feats=None):
        return self._forward(edge_feats, nodes_feats)


def _ref_mlp(x, weights, biases, relu_flags):
    """Pure-JAX f32 reference."""
    h = x
    for w, b, r in zip(weights, biases, relu_flags):
        h = jnp.dot(h, w, preferred_element_type=jnp.float32) + b
        if r:
            h = jnp.maximum(h, 0.0)
    return h


if __name__ == "__main__":
    key = jax.random.PRNGKey(0)
    k_params, k_nodes, k_edges = jax.random.split(key, 3)

    # Small-but-realistic graph sizes; deliberately NOT multiples of the row
    # tile (or of 8) to exercise the ragged-block path, and large enough that
    # every call has >= 2 grid blocks.
    num_nodes, node_in_dim, node_out_dim = 1000, 32, 32
    num_edges, edge_in_dim, edge_out_dim = 2500, 16, 16
    node_fc_dims = (64,)
    edge_fc_dims = (32,)

    model = MLPGraphIndependentPallas(
        k_params,
        edge_in_dim=edge_in_dim, node_in_dim=node_in_dim,
        edge_out_dim=edge_out_dim, node_out_dim=node_out_dim,
        node_fc_dims=node_fc_dims, edge_fc_dims=edge_fc_dims,
        row_tile=1024)

    nodes_feats = jax.random.normal(k_nodes, (num_nodes, node_in_dim), jnp.float32)
    edge_feats = jax.random.normal(k_edges, (num_edges, edge_in_dim), jnp.float32)

    out_edge, out_node = model(edge_feats=edge_feats, nodes_feats=nodes_feats)
    out_edge = jax.block_until_ready(out_edge)
    out_node = jax.block_until_ready(out_node)

    # Correctness check against a pure-JAX f32 reference (tolerance covers any
    # f32-matmul precision-path difference between Mosaic and XLA).
    ref_node = _ref_mlp(nodes_feats, *model.node_params)
    ref_edge = _ref_mlp(edge_feats, *model.edge_params)

    assert out_node.shape == (num_nodes, node_out_dim)
    assert out_edge.shape == (num_edges, edge_out_dim)
    assert jnp.allclose(out_node, ref_node, atol=2e-2, rtol=2e-2), \
        float(jnp.max(jnp.abs(out_node - ref_node)))
    assert jnp.allclose(out_edge, ref_edge, atol=2e-2, rtol=2e-2), \
        float(jnp.max(jnp.abs(out_edge - ref_edge)))

    print("KERNEL_OK")
</pallas_src>

<mosaic_0001>
module attributes {stable_mosaic.version = 11 : i64} {
  func.func @kernel(%arg0: i32, %arg1: memref<1024x16xf32, #tpu.memory_space<vmem>>, %arg2: memref<16x32xf32, #tpu.memory_space<vmem>>, %arg3: memref<32x16xf32, #tpu.memory_space<vmem>>, %arg4: memref<1x32xf32, #tpu.memory_space<vmem>>, %arg5: memref<1x16xf32, #tpu.memory_space<vmem>>, %arg6: memref<1024x16xf32, #tpu.memory_space<vmem>>) attributes {dimension_semantics = [#tpu.dimension_semantics<parallel>], iteration_bounds = array<i64: 3>, scalar_prefetch = 0 : i64, scratch_operands = 0 : i64, tpu.core_type = #tpu.core_type<tc>, window_params = [{transform_indices = @transform_0, window_bounds = array<i64: 1024, 16>}, {pipeline_mode = #tpu.pipeline_mode<synchronous>, transform_indices = @transform_1, window_bounds = array<i64: 16, 32>}, {pipeline_mode = #tpu.pipeline_mode<synchronous>, transform_indices = @transform_2, window_bounds = array<i64: 32, 16>}, {pipeline_mode = #tpu.pipeline_mode<synchronous>, transform_indices = @transform_3, window_bounds = array<i64: 1, 32>}, {pipeline_mode = #tpu.pipeline_mode<synchronous>, transform_indices = @transform_4, window_bounds = array<i64: 1, 16>}, {transform_indices = @transform_5, window_bounds = array<i64: 1024, 16>}]} {
    %c0 = arith.constant 0 : index
    %c0_0 = arith.constant 0 : index
    %0 = vector.load %arg1[%c0, %c0_0] : memref<1024x16xf32, #tpu.memory_space<vmem>>, vector<1024x16xf32>
    %c0_1 = arith.constant 0 : index
    %c0_2 = arith.constant 0 : index
    %1 = vector.load %arg2[%c0_1, %c0_2] : memref<16x32xf32, #tpu.memory_space<vmem>>, vector<16x32xf32>
    %cst = arith.constant dense<0.000000e+00> : vector<1024x32xf32>
    %2 = tpu.matmul %0, %1, %cst {dimension_numbers = #tpu.dot_dimension_numbers<[1], [0], [0], [1], [0, 0, 1, 1], [], []>} : vector<1024x16xf32>, vector<16x32xf32>, vector<1024x32xf32> -> vector<1024x32xf32>
    %c0_3 = arith.constant 0 : index
    %c0_4 = arith.constant 0 : index
    %3 = vector.load %arg4[%c0_3, %c0_4] : memref<1x32xf32, #tpu.memory_space<vmem>>, vector<1x32xf32>
    %4 = vector.broadcast %3 : vector<1x32xf32> to vector<1024x32xf32>
    %5 = arith.addf %2, %4 : vector<1024x32xf32>
    %cst_5 = arith.constant 0.000000e+00 : f32
    %6 = vector.broadcast %cst_5 : f32 to vector<1024x32xf32>
    %7 = arith.maximumf %5, %6 : vector<1024x32xf32>
    %c0_6 = arith.constant 0 : index
    %c0_7 = arith.constant 0 : index
    %8 = vector.load %arg3[%c0_6, %c0_7] : memref<32x16xf32, #tpu.memory_space<vmem>>, vector<32x16xf32>
    %cst_8 = arith.constant dense<0.000000e+00> : vector<1024x16xf32>
    %9 = tpu.matmul %7, %8, %cst_8 {dimension_numbers = #tpu.dot_dimension_numbers<[1], [0], [0], [1], [0, 0, 1, 1], [], []>} : vector<1024x32xf32>, vector<32x16xf32>, vector<1024x16xf32> -> vector<1024x16xf32>
    %c0_9 = arith.constant 0 : index
    %c0_10 = arith.constant 0 : index
    %10 = vector.load %arg5[%c0_9, %c0_10] : memref<1x16xf32, #tpu.memory_space<vmem>>, vector<1x16xf32>
    %11 = vector.broadcast %10 : vector<1x16xf32> to vector<1024x16xf32>
    %12 = arith.addf %9, %11 : vector<1024x16xf32>
    %cst_11 = arith.constant 0.000000e+00 : f32
    %13 = vector.broadcast %cst_11 : f32 to vector<1024x16xf32>
    %14 = arith.maximumf %12, %13 : vector<1024x16xf32>
    %c0_12 = arith.constant 0 : index
    %c0_13 = arith.constant 0 : index
    %15 = vector.load %arg6[%c0_12, %c0_13] : memref<1024x16xf32, #tpu.memory_space<vmem>>, vector<1024x16xf32>
    tpu.vector_store %arg6[%c0_12, %c0_13], %14 {strides = array<i32>} : memref<1024x16xf32, #tpu.memory_space<vmem>>, vector<1024x16xf32>,
    return
  }
  func.func @transform_0(%arg0: i32) -> (i32, i32) {
    %c0_i32 = arith.constant 0 : i32
    %c0_i32_0 = arith.constant 0 : i32
    return %arg0, %c0_i32 : i32, i32
  }
  func.func @transform_1(%arg0: i32) -> (i32, i32) {
    %c0_i32 = arith.constant 0 : i32
    %c0_i32_0 = arith.constant 0 : i32
    %c0_i32_1 = arith.constant 0 : i32
    return %c0_i32, %c0_i32_0 : i32, i32
  }
  func.func @transform_2(%arg0: i32) -> (i32, i32) {
    %c0_i32 = arith.constant 0 : i32
    %c0_i32_0 = arith.constant 0 : i32
    %c0_i32_1 = arith.constant 0 : i32
    return %c0_i32, %c0_i32_0 : i32, i32
  }
  func.func @transform_3(%arg0: i32) -> (i32, i32) {
    %c0_i32 = arith.constant 0 : i32
    %c0_i32_0 = arith.constant 0 : i32
    %c0_i32_1 = arith.constant 0 : i32
    return %c0_i32, %c0_i32_0 : i32, i32
  }
  func.func @transform_4(%arg0: i32) -> (i32, i32) {
    %c0_i32 = arith.constant 0 : i32
    %c0_i32_0 = arith.constant 0 : i32
    %c0_i32_1 = arith.constant 0 : i32
    return %c0_i32, %c0_i32_0 : i32, i32
  }
  func.func @transform_5(%arg0: i32) -> (i32, i32) {
    %c0_i32 = arith.constant 0 : i32
    %c0_i32_0 = arith.constant 0 : i32
    return %arg0, %c0_i32 : i32, i32
  }
}

module attributes {stable_mosaic.version = 11 : i64} {
  func.func @kernel(%arg0: i32, %arg1: memref<504x32xf32, #tpu.memory_space<vmem>>, %arg2: memref<32x64xf32, #tpu.memory_space<vmem>>, %arg3: memref<64x32xf32, #tpu.memory_space<vmem>>, %arg4: memref<1x64xf32, #tpu.memory_space<vmem>>, %arg5: memref<1x32xf32, #tpu.memory_space<vmem>>, %arg6: memref<504x32xf32, #tpu.memory_space<vmem>>) attributes {dimension_semantics = [#tpu.dimension_semantics<parallel>], iteration_bounds = array<i64: 2>, scalar_prefetch = 0 : i64, scratch_operands = 0 : i64, tpu.core_type = #tpu.core_type<tc>, window_params = [{transform_indices = @transform_0, window_bounds = array<i64: 504, 32>}, {pipeline_mode = #tpu.pipeline_mode<synchronous>, transform_indices = @transform_1, window_bounds = array<i64: 32, 64>}, {pipeline_mode = #tpu.pipeline_mode<synchronous>, transform_indices = @transform_2, window_bounds = array<i64: 64, 32>}, {pipeline_mode = #tpu.pipeline_mode<synchronous>, transform_indices = @transform_3, window_bounds = array<i64: 1, 64>}, {pipeline_mode = #tpu.pipeline_mode<synchronous>, transform_indices = @transform_4, window_bounds = array<i64: 1, 32>}, {transform_indices = @transform_5, window_bounds = array<i64: 504, 32>}]} {
    %c0 = arith.constant 0 : index
    %c0_0 = arith.constant 0 : index
    %0 = vector.load %arg1[%c0, %c0_0] : memref<504x32xf32, #tpu.memory_space<vmem>>, vector<504x32xf32>
    %c0_1 = arith.constant 0 : index
    %c0_2 = arith.constant 0 : index
    %1 = vector.load %arg2[%c0_1, %c0_2] : memref<32x64xf32, #tpu.memory_space<vmem>>, vector<32x64xf32>
    %cst = arith.constant dense<0.000000e+00> : vector<504x64xf32>
    %2 = tpu.matmul %0, %1, %cst {dimension_numbers = #tpu.dot_dimension_numbers<[1], [0], [0], [1], [0, 0, 1, 1], [], []>} : vector<504x32xf32>, vector<32x64xf32>, vector<504x64xf32> -> vector<504x64xf32>
    %c0_3 = arith.constant 0 : index
    %c0_4 = arith.constant 0 : index
    %3 = vector.load %arg4[%c0_3, %c0_4] : memref<1x64xf32, #tpu.memory_space<vmem>>, vector<1x64xf32>
    %4 = vector.broadcast %3 : vector<1x64xf32> to vector<504x64xf32>
    %5 = arith.addf %2, %4 : vector<504x64xf32>
    %cst_5 = arith.constant 0.000000e+00 : f32
    %6 = vector.broadcast %cst_5 : f32 to vector<504x64xf32>
    %7 = arith.maximumf %5, %6 : vector<504x64xf32>
    %c0_6 = arith.constant 0 : index
    %c0_7 = arith.constant 0 : index
    %8 = vector.load %arg3[%c0_6, %c0_7] : memref<64x32xf32, #tpu.memory_space<vmem>>, vector<64x32xf32>
    %cst_8 = arith.constant dense<0.000000e+00> : vector<504x32xf32>
    %9 = tpu.matmul %7, %8, %cst_8 {dimension_numbers = #tpu.dot_dimension_numbers<[1], [0], [0], [1], [0, 0, 1, 1], [], []>} : vector<504x64xf32>, vector<64x32xf32>, vector<504x32xf32> -> vector<504x32xf32>
    %c0_9 = arith.constant 0 : index
    %c0_10 = arith.constant 0 : index
    %10 = vector.load %arg5[%c0_9, %c0_10] : memref<1x32xf32, #tpu.memory_space<vmem>>, vector<1x32xf32>
    %11 = vector.broadcast %10 : vector<1x32xf32> to vector<504x32xf32>
    %12 = arith.addf %9, %11 : vector<504x32xf32>
    %cst_11 = arith.constant 0.000000e+00 : f32
    %13 = vector.broadcast %cst_11 : f32 to vector<504x32xf32>
    %14 = arith.maximumf %12, %13 : vector<504x32xf32>
    %c0_12 = arith.constant 0 : index
    %c0_13 = arith.constant 0 : index
    %15 = vector.load %arg6[%c0_12, %c0_13] : memref<504x32xf32, #tpu.memory_space<vmem>>, vector<504x32xf32>
    tpu.vector_store %arg6[%c0_12, %c0_13], %14 {strides = array<i32>} : memref<504x32xf32, #tpu.memory_space<vmem>>, vector<504x32xf32>,
    return
  }
  func.func @transform_0(%arg0: i32) -> (i32, i32) {
    %c0_i32 = arith.constant 0 : i32
    %c0_i32_0 = arith.constant 0 : i32
    return %arg0, %c0_i32 : i32, i32
  }
  func.func @transform_1(%arg0: i32) -> (i32, i32) {
    %c0_i32 = arith.constant 0 : i32
    %c0_i32_0 = arith.constant 0 : i32
    %c0_i32_1 = arith.constant 0 : i32
    return %c0_i32, %c0_i32_0 : i32, i32
  }
  func.func @transform_2(%arg0: i32) -> (i32, i32) {
    %c0_i32 = arith.constant 0 : i32
    %c0_i32_0 = arith.constant 0 : i32
    %c0_i32_1 = arith.constant 0 : i32
    return %c0_i32, %c0_i32_0 : i32, i32
  }
  func.func @transform_3(%arg0: i32) -> (i32, i32) {
    %c0_i32 = arith.constant 0 : i32
    %c0_i32_0 = arith.constant 0 : i32
    %c0_i32_1 = arith.constant 0 : i32
    return %c0_i32, %c0_i32_0 : i32, i32
  }
  func.func @transform_4(%arg0: i32) -> (i32, i32) {
    %c0_i32 = arith.constant 0 : i32
    %c0_i32_0 = arith.constant 0 : i32
    %c0_i32_1 = arith.constant 0 : i32
    return %c0_i32, %c0_i32_0 : i32, i32
  }
  func.func @transform_5(%arg0: i32) -> (i32, i32) {
    %c0_i32 = arith.constant 0 : i32
    %c0_i32_0 = arith.constant 0 : i32
    return %arg0, %c0_i32 : i32, i32
  }
}

</mosaic_0001>

<llo_original>
// kernel: _forward_impl.2
$region0: #{_forward_impl.2}
  #allocation0 [shape = 'u32[]', space=smem, size = 0x4, offset = 0x4, fixed_abs, tag = 'smem constant byte address 0x4 - core index']
  #allocation1 [shape = 'u32[144,128]{1,0:T(1,128)}', space=vmem, size = 0x12000, scoped, tag = 'internal scratch']
  %s0 = inlined_call_operand.vmem [shape: f32[1000,32], index: 0, kind: input, shape index: {}]
  %s1 = inlined_call_operand.vmem [shape: f32[32,64], index: 1, kind: input, shape index: {}]
  %s2 = inlined_call_operand.vmem [shape: f32[64,32], index: 2, kind: input, shape index: {}]
  %s3 = inlined_call_operand.vmem [shape: f32[1,64], index: 3, kind: input, shape index: {}]
  %s4 = inlined_call_operand.vmem [shape: f32[1,32], index: 4, kind: input, shape index: {}]
  %s5 = inlined_call_operand.vmem [shape: f32[1000,32], index: 5, kind: output, shape index: {}]
  %s6 = sld [smem:[#allocation0]]
  $region101: #{_forward_impl.2} parent=0
    _
  %s8 = ssub.s32 1, %s6
  %s9 = scalar_select 0, %s8, %s6
  $region1: #{_forward_impl.2} parent=0
    #allocation2 [shape = 'u8[516096]{0}', space=vmem, size = 0x7e000, scoped, tag = 'output window, operand 0']
    loop: start=0, step=1, limit=4
    $region2: #{_forward_impl.2} parent=1 // loop_pre_header
      _
    $region3: #{_forward_impl.2} parent=1 // loop_header
      %s11 = sphi 0, %s15
      %p12 = scmp.ge.s32.totalorder %s11, 4
      %s21 = sphi 0, %s23
      %s24 = sphi 0, %s21
      %s25 = sphi 0, %s24
      %s41 = sphi 0, %s25
      %s45 = sphi 0, %s45
      %s47 = sphi 0, %s45
      %s48 = sphi 0, %s47
      %s62 = sphi 0, %s48
      %s66 = sphi 0, %s66
      %s68 = sphi 0, %s66
      %s69 = sphi 0, %s68
      %s83 = sphi 0, %s69
      %s87 = sphi 0, %s87
      %s89 = sphi 0, %s87
      %s90 = sphi 0, %s89
      %s104 = sphi 0, %s90
      %s108 = sphi 0, %s108
      %s110 = sphi 0, %s108
      %s111 = sphi 0, %s110
      %s125 = sphi 0, %s111
      %s131 = sphi 0, %s133
      %s134 = sphi 0, %s131
      %s135 = sphi 0, %s134
      %s151 = sphi 0, %s135
    $region4: #{_forward_impl.2} parent=1 // loop_header_branch
      %14 = sbr.rel (%p12) target = $region8
    $region5: #{_forward_impl.2} parent=1 // loop_body
      %s16 = ssub.s32 %s11, 1
      %s17 = ssub.s32 %s11, 2
      %s18 = sadd.s32 %s11, 1
      %s19 = ssub.s32 %s11, %s18
      %p20 = scmp.eq.s32.totalorder %s19, 0
      %s22 = sadd.s32 %s21, 1
      %s23 = scalar_select %p20, %s21, %s22
      %p26 = pneg %p20
      %p27 = scmp.eq.s32.totalorder %s11, 1
      %p28 = por %p26, %p27
      %p29 = scmp.ne.s32.totalorder %s21, %s24
      %p30 = scmp.eq.s32.totalorder %s11, 0
      %p31 = por %p29, %p30
      %p32 = scmp.ne.s32.totalorder %s21, %s24
      %p33 = scmp.eq.s32.totalorder %s16, 1
      %p34 = por %p32, %p33
      %p35 = scmp.ne.s32.totalorder %s24, %s25
      %p36 = scmp.eq.s32.totalorder %s16, 0
      %p37 = por %p35, %p36
      %p38 = scmp.ne.s32.totalorder %s24, %s25
      %p39 = scmp.eq.s32.totalorder %s17, 1
      %p40 = por %p38, %p39
      %p42 = scmp.ne.s32.totalorder %s25, %s41
      %p43 = scmp.eq.s32.totalorder %s17, 0
      %p44 = por %p42, %p43
      %s46 = sadd.s32 %s45, 1
      %p49 = scmp.eq.s32.totalorder %s11, 1
      %p50 = scmp.ne.s32.totalorder %s45, %s47
      %p51 = scmp.eq.s32.totalorder %s11, 0
      %p52 = por %p50, %p51
      %p53 = scmp.ne.s32.totalorder %s45, %s47
      %p54 = scmp.eq.s32.totalorder %s16, 1
      %p55 = por %p53, %p54
      %p56 = scmp.ne.s32.totalorder %s47, %s48
      %p57 = scmp.eq.s32.totalorder %s16, 0
      %p58 = por %p56, %p57
      %p59 = scmp.ne.s32.totalorder %s47, %s48
      %p60 = scmp.eq.s32.totalorder %s17, 1
      %p61 = por %p59, %p60
      %p63 = scmp.ne.s32.totalorder %s48, %s62
      %p64 = scmp.eq.s32.totalorder %s17, 0
      %p65 = por %p63, %p64
      %s67 = sadd.s32 %s66, 1
      %p70 = scmp.eq.s32.totalorder %s11, 1
      %p71 = scmp.ne.s32.totalorder %s66, %s68
      %p72 = scmp.eq.s32.totalorder %s11, 0
      %p73 = por %p71, %p72
      %p74 = scmp.ne.s32.totalorder %s66, %s68
      %p75 = scmp.eq.s32.totalorder %s16, 1
      %p76 = por %p74, %p75
      %p77 = scmp.ne.s32.totalorder %s68, %s69
      %p78 = scmp.eq.s32.totalorder %s16, 0
      %p79 = por %p77, %p78
      %p80 = scmp.ne.s32.totalorder %s68, %s69
      %p81 = scmp.eq.s32.totalorder %s17, 1
      %p82 = por %p80, %p81
      %p84 = scmp.ne.s32.totalorder %s69, %s83
      %p85 = scmp.eq.s32.totalorder %s17, 0
      %p86 = por %p84, %p85
      %s88 = sadd.s32 %s87, 1
      %p91 = scmp.eq.s32.totalorder %s11, 1
      %p92 = scmp.ne.s32.totalorder %s87, %s89
      %p93 = scmp.eq.s32.totalorder %s11, 0
      %p94 = por %p92, %p93
      %p95 = scmp.ne.s32.totalorder %s87, %s89
      %p96 = scmp.eq.s32.totalorder %s16, 1
      %p97 = por %p95, %p96
      %p98 = scmp.ne.s32.totalorder %s89, %s90
      %p99 = scmp.eq.s32.totalorder %s16, 0
      %p100 = por %p98, %p99
      %p101 = scmp.ne.s32.totalorder %s89, %s90
      %p102 = scmp.eq.s32.totalorder %s17, 1
      %p103 = por %p101, %p102
      %p105 = scmp.ne.s32.totalorder %s90, %s104
      %p106 = scmp.eq.s32.totalorder %s17, 0
      %p107 = por %p105, %p106
      %s109 = sadd.s32 %s108, 1
      %p112 = scmp.eq.s32.totalorder %s11, 1
      %p113 = scmp.ne.s32.totalorder %s108, %s110
      %p114 = scmp.eq.s32.totalorder %s11, 0
      %p115 = por %p113, %p114
      %p116 = scmp.ne.s32.totalorder %s108, %s110
      %p117 = scmp.eq.s32.totalorder %s16, 1
      %p118 = por %p116, %p117
      %p119 = scmp.ne.s32.totalorder %s110, %s111
      %p120 = scmp.eq.s32.totalorder %s16, 0
      %p121 = por %p119, %p120
      %p122 = scmp.ne.s32.totalorder %s110, %s111
      %p123 = scmp.eq.s32.totalorder %s17, 1
      %p124 = por %p122, %p123
      %p126 = scmp.ne.s32.totalorder %s111, %s125
      %p127 = scmp.eq.s32.totalorder %s17, 0
      %p128 = por %p126, %p127
      %s129 = ssub.s32 %s11, %s18
      %p130 = scmp.eq.s32.totalorder %s129, 0
      %s132 = sadd.s32 %s131, 1
      %s133 = scalar_select %p130, %s131, %s132
      %p136 = pneg %p130
      %p137 = scmp.eq.s32.totalorder %s11, 1
      %p138 = por %p136, %p137
      %p139 = scmp.ne.s32.totalorder %s131, %s134
      %p140 = scmp.eq.s32.totalorder %s11, 0
      %p141 = por %p139, %p140
      %p142 = scmp.ne.s32.totalorder %s131, %s134
      %p143 = scmp.eq.s32.totalorder %s16, 1
      %p144 = por %p142, %p143
      %p145 = scmp.ne.s32.totalorder %s134, %s135
      %p146 = scmp.eq.s32.totalorder %s16, 0
      %p147 = por %p145, %p146
      %p148 = scmp.ne.s32.totalorder %s134, %s135
      %p149 = scmp.eq.s32.totalorder %s17, 1
      %p150 = por %p148, %p149
      %p152 = scmp.ne.s32.totalorder %s135, %s151
      %p153 = scmp.eq.s32.totalorder %s17, 0
      %p154 = por %p152, %p153
      %p155 = scmp.le.s32.totalorder 1, %s11
      %p156 = scmp.lt.s32.totalorder %s11, 3
      %p157 = pnand %p155, %p156
      %p158 = pneg %p157
      // Predicated region
      $region9: #{_forward_impl.2} parent=5 // pred_check
        _
      $region10: #{_forward_impl.2} parent=5 // pred_check_branch
        %160 = sbr.rel (%p157) target = $region12
      $region11: #{_forward_impl.2} parent=5 // pred_region
        %s161 = ssub.s32 %s11, 1
        // Predicated region
        $region13: #{_forward_impl.2} parent=11 // pred_check
          %p162 = pneg %p58
        $region14: #{_forward_impl.2} parent=11 // pred_check_branch
          %164 = sbr.rel (%p162) target = $region16
        $region15: #{_forward_impl.2} parent=11 // pred_region
          _
        $region16: #{_forward_impl.2} parent=11 // pred_fallthru
          _
        // Predicated region
        $region17: #{_forward_impl.2} parent=11 // pred_check
          %p165 = pneg %p79
        $region18: #{_forward_impl.2} parent=11 // pred_check_branch
          %167 = sbr.rel (%p165) target = $region20
        $region19: #{_forward_impl.2} parent=11 // pred_region
          _
        $region20: #{_forward_impl.2} parent=11 // pred_fallthru
          _
        // Predicated region
        $region21: #{_forward_impl.2} parent=11 // pred_check
          %p168 = pneg %p100
        $region22: #{_forward_impl.2} parent=11 // pred_check_branch
          %170 = sbr.rel (%p168) target = $region24
        $region23: #{_forward_impl.2} parent=11 // pred_region
          _
        $region24: #{_forward_impl.2} parent=11 // pred_fallthru
          _
        // Predicated region
        $region25: #{_forward_impl.2} parent=11 // pred_check
          %p171 = pneg %p121
        $region26: #{_forward_impl.2} parent=11 // pred_check_branch
          %173 = sbr.rel (%p171) target = $region28
        $region27: #{_forward_impl.2} parent=11 // pred_region
          _
        $region28: #{_forward_impl.2} parent=11 // pred_fallthru
          _
      $region12: #{_forward_impl.2} parent=5 // pred_fallthru
        _
      %p174 = scmp.lt.s32.totalorder %s11, 2
      // Predicated region
      $region29: #{_forward_impl.2} parent=5 // pred_check
        %p175 = pneg %p174
      $region30: #{_forward_impl.2} parent=5 // pred_check_branch
        %177 = sbr.rel (%p175) target = $region32
      $region31: #{_forward_impl.2} parent=5 // pred_region
        // Predicated region
        $region33: #{_forward_impl.2} parent=31 // pred_check
          %p178 = pneg %p31
        $region34: #{_forward_impl.2} parent=31 // pred_check_branch
          %180 = sbr.rel (%p178) target = $region36
        $region35: #{_forward_impl.2} parent=31 // pred_region
          %s181 = smul.u32 63, %s11
          %s182 = ssub.s32 125, %s181
          %p183 = scmp.lt.s32.totalorder %s182, 63
          %s184 = scalar_select %p183, %s182, 63
          %s185 = smul.u32 128, %s184
          %p186 = scmp.lt.s32.totalorder %s181, 124
          %s187 = scalar_select %p186, %s181, 124
          %s188 = smul.addr %s187, 8
          %s189 = scalar_lea.vmem %s0, %s188
          %s190 = smul.u32 63, %s11
          %s191 = ssub.s32 125, %s190
          %p192 = scmp.lt.s32.totalorder %s191, 63
          %s193 = scalar_select %p192, %s191, 63
          %s194 = smul.u32 128, %s193
        $region36: #{_forward_impl.2} parent=31 // pred_fallthru
          _
      $region32: #{_forward_impl.2} parent=5 // pred_fallthru
        _
      %p195 = scmp.le.s32.totalorder 1, %s11
      %p196 = scmp.lt.s32.totalorder %s11, 3
      %p197 = pnand %p195, %p196
      %p198 = pneg %p197
      // Predicated region
      $region37: #{_forward_impl.2} parent=5 // pred_check
        _
      $region38: #{_forward_impl.2} parent=5 // pred_check_branch
        %200 = sbr.rel (%p197) target = $region40
      $region39: #{_forward_impl.2} parent=5 // pred_region
        %s201 = ssub.s32 %s11, 1
        %s202 = smul.u32 63, %s16
        %s203 = ssub.s32 125, %s202
        %p204 = scmp.lt.s32.totalorder %s203, 63
        %s205 = scalar_select %p204, %s203, 63
        %s206 = smul.u32 128, %s205
        %p207 = scmp.lt.s32.totalorder %s202, 124
        %s208 = scalar_select %p207, %s202, 124
        %s209 = smul.addr %s208, 8
        %s210 = scalar_lea.vmem %s0, %s209
        %p211 = pneg %p37
        %p212 = pneg %p34
        %p213 = pneg %p58
        %p214 = pneg %p55
        %p215 = pneg %p79
        %p216 = pneg %p76
        %p217 = pneg %p100
        %p218 = pneg %p97
        %p219 = pneg %p121
        %p220 = pneg %p118
        %p221 = pneg %p147
        %p222 = pneg %p144
        %s223 = sand.u32 %s134, 1
        %s224 = sand.u32 %s134, 1
        %s225 = smul.addr %s224, 504
        %s226 = scalar_lea.vmem [#allocation2], %s225
        %s227 = smul.u32 63, %s16
        %s228 = ssub.s32 125, %s227
        %p229 = scmp.lt.s32.totalorder %s228, 63
        %s230 = scalar_select %p229, %s228, 63
        %s231 = smul.u32 128, %s230
        %p232 = scmp.lt.s32.totalorder %s227, 124
        %s233 = scalar_select %p232, %s227, 124
        %s234 = smul.addr %s233, 8
        %s235 = scalar_lea.vmem %s0, %s234
        %s236 = smul.u32 63, %s16
        %s237 = ssub.s32 125, %s236
        %p238 = scmp.lt.s32.totalorder %s237, 63
        %s239 = scalar_select %p238, %s237, 63
        %s240 = smul.u32 128, %s239
        %s241 = smul.u32 63, %s16
        %s242 = ssub.s32 125, %s241
        %p243 = scmp.lt.s32.totalorder %s242, 63
        %s244 = scalar_select %p243, %s242, 63
        %s245 = smul.u32 128, %s244
        %v246 = vld [vmem:[%s235] sm:$0xff]
        %v247 = vld [vmem:[%s235 + $0x8] sm:$0xff]
        %v248 = vld [vmem:[%s235 + $0x10] sm:$0xff]
        %v249 = vld [vmem:[%s235 + $0x18] sm:$0xff]
        %v250 = vld [vmem:[%s235 + $0x20] sm:$0xff]
        %v251 = vld [vmem:[%s235 + $0x28] sm:$0xff]
        %v252 = vld [vmem:[%s235 + $0x30] sm:$0xff]
        %v253 = vld [vmem:[%s235 + $0x38] sm:$0xff]
        %v254 = vld [vmem:[%s235 + $0x40] sm:$0xff]
        %v255 = vld [vmem:[%s235 + $0x48] sm:$0xff]
        %v256 = vld [vmem:[%s235 + $0x50] sm:$0xff]
        %v257 = vld [vmem:[%s235 + $0x58] sm:$0xff]
        %v258 = vld [vmem:[%s235 + $0x60] sm:$0xff]
        %v259 = vld [vmem:[%s235 + $0x68] sm:$0xff]
        %v260 = vld [vmem:[%s235 + $0x70] sm:$0xff]
        %v261 = vld [vmem:[%s235 + $0x78] sm:$0xff]
        %v262 = vld [vmem:[%s235 + $0x80] sm:$0xff]
        %v263 = vld [vmem:[%s235 + $0x88] sm:$0xff]
        %v264 = vld [vmem:[%s235 + $0x90] sm:$0xff]
        %v265 = vld [vmem:[%s235 + $0x98] sm:$0xff]
        %v266 = vld [vmem:[%s235 + $0xa0] sm:$0xff]
        %v267 = vld [vmem:[%s235 + $0xa8] sm:$0xff]
        %v268 = vld [vmem:[%s235 + $0xb0] sm:$0xff]
        %v269 = vld [vmem:[%s235 + $0xb8] sm:$0xff]
        %v270 = vld [vmem:[%s235 + $0xc0] sm:$0xff]
        %v271 = vld [vmem:[%s235 + $0xc8] sm:$0xff]
        %v272 = vld [vmem:[%s235 + $0xd0] sm:$0xff]
        %v273 = vld [vmem:[%s235 + $0xd8] sm:$0xff]
        %v274 = vld [vmem:[%s235 + $0xe0] sm:$0xff]
        %v275 = vld [vmem:[%s235 + $0xe8] sm:$0xff]
        %v276 = vld [vmem:[%s235 + $0xf0] sm:$0xff]
        %v277 = vld [vmem:[%s235 + $0xf8] sm:$0xff]
        %v278 = vld [vmem:[%s235 + $0x100] sm:$0xff]
        %v279 = vld [vmem:[%s235 + $0x108] sm:$0xff]
        %v280 = vld [vmem:[%s235 + $0x110] sm:$0xff]
        %v281 = vld [vmem:[%s235 + $0x118] sm:$0xff]
        %v282 = vld [vmem:[%s235 + $0x120] sm:$0xff]
        %v283 = vld [vmem:[%s235 + $0x128] sm:$0xff]
        %v284 = vld [vmem:[%s235 + $0x130] sm:$0xff]
        %v285 = vld [vmem:[%s235 + $0x138] sm:$0xff]
        %v286 = vld [vmem:[%s235 + $0x140] sm:$0xff]
        %v287 = vld [vmem:[%s235 + $0x148] sm:$0xff]
        %v288 = vld [vmem:[%s235 + $0x150] sm:$0xff]
        %v289 = vld [vmem:[%s235 + $0x158] sm:$0xff]
        %v290 = vld [vmem:[%s235 + $0x160] sm:$0xff]
        %v291 = vld [vmem:[%s235 + $0x168] sm:$0xff]
        %v292 = vld [vmem:[%s235 + $0x170] sm:$0xff]
        %v293 = vld [vmem:[%s235 + $0x178] sm:$0xff]
        %v294 = vld [vmem:[%s235 + $0x180] sm:$0xff]
        %v295 = vld [vmem:[%s235 + $0x188] sm:$0xff]
        %v296 = vld [vmem:[%s235 + $0x190] sm:$0xff]
        %v297 = vld [vmem:[%s235 + $0x198] sm:$0xff]
        %v298 = vld [vmem:[%s235 + $0x1a0] sm:$0xff]
        %v299 = vld [vmem:[%s235 + $0x1a8] sm:$0xff]
        %v300 = vld [vmem:[%s235 + $0x1b0] sm:$0xff]
        %v301 = vld [vmem:[%s235 + $0x1b8] sm:$0xff]
        %v302 = vld [vmem:[%s235 + $0x1c0] sm:$0xff]
        %v303 = vld [vmem:[%s235 + $0x1c8] sm:$0xff]
        %v304 = vld [vmem:[%s235 + $0x1d0] sm:$0xff]
        %v305 = vld [vmem:[%s235 + $0x1d8] sm:$0xff]
        %v306 = vld [vmem:[%s235 + $0x1e0] sm:$0xff]
        %v307 = vld [vmem:[%s235 + $0x1e8] sm:$0xff]
        %v308 = vld [vmem:[%s235 + $0x1f0] sm:$0xff]
        %v309 = vld [vmem:[%s1] sm:$0xff]
        %v310 = vld [vmem:[%s1 + $0x8] sm:$0xff]
        %v311 = vld [vmem:[%s1 + $0x10] sm:$0xff]
        %v312 = vld [vmem:[%s1 + $0x18] sm:$0xff]
        %v313 = vld [vmem:[%s3] sm:$0x1]
        %v315 = vlaneseq
        %v316 = vshrl.u32 %v315, 7
        %v317 = vsub.s32 0, %v316
        %v318 = vrot.slane %v313, %v317
        %vm320 = vcmask 261120
        %v322 = vsel %vm320, %v246, 0
        %v325 = vsel %vm320, %v247, 0
        %v328 = vsel %vm320, %v248, 0
        %v331 = vsel %vm320, %v249, 0
        %v334 = vsel %vm320, %v250, 0
        %v337 = vsel %vm320, %v251, 0
        %v340 = vsel %vm320, %v252, 0
        %v343 = vsel %vm320, %v253, 0
        %v346 = vsel %vm320, %v254, 0
        %v349 = vsel %vm320, %v255, 0
        %v352 = vsel %vm320, %v256, 0
        %v355 = vsel %vm320, %v257, 0
        %v358 = vsel %vm320, %v258, 0
        %v361 = vsel %vm320, %v259, 0
        %v364 = vsel %vm320, %v260, 0
        %v367 = vsel %vm320, %v261, 0
        %v370 = vsel %vm320, %v262, 0
        %v373 = vsel %vm320, %v263, 0
        %v376 = vsel %vm320, %v264, 0
        %v379 = vsel %vm320, %v265, 0
        %v382 = vsel %vm320, %v266, 0
        %v385 = vsel %vm320, %v267, 0
        %v388 = vsel %vm320, %v268, 0
        %v391 = vsel %vm320, %v269, 0
        %v394 = vsel %vm320, %v270, 0
        %v397 = vsel %vm320, %v271, 0
        %v400 = vsel %vm320, %v272, 0
        %v403 = vsel %vm320, %v273, 0
        %v406 = vsel %vm320, %v274, 0
        %v409 = vsel %vm320, %v275, 0
        %v412 = vsel %vm320, %v276, 0
        %v415 = vsel %vm320, %v277, 0
        %v418 = vsel %vm320, %v278, 0
        %v421 = vsel %vm320, %v279, 0
        %v424 = vsel %vm320, %v280, 0
        %v427 = vsel %vm320, %v281, 0
        %v430 = vsel %vm320, %v282, 0
        %v433 = vsel %vm320, %v283, 0
        %v436 = vsel %vm320, %v284, 0
        %v439 = vsel %vm320, %v285, 0
        %v442 = vsel %vm320, %v286, 0
        %v445 = vsel %vm320, %v287, 0
        %v448 = vsel %vm320, %v288, 0
        %v451 = vsel %vm320, %v289, 0
        %v454 = vsel %vm320, %v290, 0
        %v457 = vsel %vm320, %v291, 0
        %v460 = vsel %vm320, %v292, 0
        %v463 = vsel %vm320, %v293, 0
        %v466 = vsel %vm320, %v294, 0
        %v469 = vsel %vm320, %v295, 0
        %v472 = vsel %vm320, %v296, 0
        %v475 = vsel %vm320, %v297, 0
        %v478 = vsel %vm320, %v298, 0
        %v481 = vsel %vm320, %v299, 0
        %v484 = vsel %vm320, %v300, 0
        %v487 = vsel %vm320, %v301, 0
        %v490 = vsel %vm320, %v302, 0
        %v493 = vsel %vm320, %v303, 0
        %v496 = vsel %vm320, %v304, 0
        %v499 = vsel %vm320, %v305, 0
        %v502 = vsel %vm320, %v306, 0
        %v505 = vsel %vm320, %v307, 0
        %v508 = vsel %vm320, %v308, 0
        %510 = vmatprep.subr.mxu0 0.0
        %511 = vmatpush1.msra.mxu0 %v309
        %512 = vmatprep.subr.mxu0 0.0
        %513 = vmatpush1.msra.mxu0 %v310
        %514 = vmatprep.subr.mxu0 0.0
        %515 = vmatpush1.msra.mxu0 %v311
        %516 = vmatprep.subr.mxu0 0.0
        %517 = vmatpush1.msra.mxu0 %v312
        %518 = vmatprep.subr.mxu0 0.0
        %519 = vmatpush1.msra.mxu0 0.0
        %520 = vmatprep.subr.mxu0 0.0
        %521 = vmatpush1.msra.mxu0 0.0
        %522 = vmatprep.subr.mxu0 0.0
        %523 = vmatpush1.msra.mxu0 0.0
        %524 = vmatprep.subr.mxu0 0.0
        %525 = vmatpush1.msra.mxu0 0.0
        %526 = vmatprep.subr.mxu0 0.0
        %527 = vmatpush1.msra.mxu0 0.0
        %528 = vmatprep.subr.mxu0 0.0
        %529 = vmatpush1.msra.mxu0 0.0
        %530 = vmatprep.subr.mxu0 0.0
        %531 = vmatpush1.msra.mxu0 0.0
        %532 = vmatprep.subr.mxu0 0.0
        %533 = vmatpush1.msra.mxu0 0.0
        %534 = vmatprep.subr.mxu0 0.0
        %535 = vmatpush1.msra.mxu0 0.0
        %536 = vmatprep.subr.mxu0 0.0
        %537 = vmatpush1.msra.mxu0 0.0
        %538 = vmatprep.subr.mxu0 0.0
        %539 = vmatpush1.msra.mxu0 0.0
        %540 = vmatprep.subr.mxu0 0.0
        %541 = vmatpush1.msra.mxu0 0.0
        %542 = vmatprep.subr.mxu0 0.0
        %543 = vmatpush1.msra.mxu0 0.0
        %544 = vmatprep.subr.mxu0 0.0
        %545 = vmatpush1.msra.mxu0 0.0
        %546 = vmatprep.subr.mxu0 0.0
        %547 = vmatpush1.msra.mxu0 0.0
        %548 = vmatprep.subr.mxu0 0.0
        %549 = vmatpush1.msra.mxu0 0.0
        %550 = vmatprep.subr.mxu0 0.0
        %551 = vmatpush1.msra.mxu0 0.0
        %552 = vmatprep.subr.mxu0 0.0
        %553 = vmatpush1.msra.mxu0 0.0
        %554 = vmatprep.subr.mxu0 0.0
        %555 = vmatpush1.msra.mxu0 0.0
        %556 = vmatprep.subr.mxu0 0.0
        %557 = vmatpush1.msra.mxu0 0.0
        %558 = vmatprep.subr.mxu0 0.0
        %559 = vmatpush1.msra.mxu0 0.0
        %560 = vmatprep.subr.mxu0 0.0
        %561 = vmatpush1.msra.mxu0 0.0
        %562 = vmatprep.subr.mxu0 0.0
        %563 = vmatpush1.msra.mxu0 0.0
        %564 = vmatprep.subr.mxu0 0.0
        %565 = vmatpush1.msra.mxu0 0.0
        %566 = vmatprep.subr.mxu0 0.0
        %567 = vmatpush1.msra.mxu0 0.0
        %568 = vmatprep.subr.mxu0 0.0
        %569 = vmatpush1.msra.mxu0 0.0
        %570 = vmatprep.subr.mxu0 0.0
        %571 = vmatpush1.msra.mxu0 0.0
        %572 = vmatprep.subr.mxu0 0.0
        %573 = vmatpush1.msra.mxu0 0.0
        %574 = vmatprep.mubr.f32.mxu0 0.0
        %575 = vmatmul.mubr.f32.gmra.mrb[0].mxu0 %v322
        %v576 = vpop.f32.mrb[0].mxu0
        %v577 = vadd.f32 %v318, %v576
        %v578 = vpop.f32.mrb[0].mxu0
        %579 = vmatprep.mubr.f32.mxu0 0.0
        %580 = vmatmul.mubr.f32.gmra.mrb[0].mxu0 %v325
        %v581 = vpop.f32.mrb[0].mxu0
        %v582 = vadd.f32 %v318, %v581
        %v583 = vpop.f32.mrb[0].mxu0
        %584 = vmatprep.mubr.f32.mxu0 0.0
        %585 = vmatmul.mubr.f32.gmra.mrb[0].mxu0 %v328
        %v586 = vpop.f32.mrb[0].mxu0
        %v587 = vadd.f32 %v318, %v586
        %v588 = vpop.f32.mrb[0].mxu0
        %589 = vmatprep.mubr.f32.mxu0 0.0
        %590 = vmatmul.mubr.f32.gmra.mrb[0].mxu0 %v331
        %v591 = vpop.f32.mrb[0].mxu0
        %v592 = vadd.f32 %v318, %v591
        %v593 = vpop.f32.mrb[0].mxu0
        %594 = vmatprep.mubr.f32.mxu0 0.0
        %595 = vmatmul.mubr.f32.gmra.mrb[0].mxu0 %v334
        %v596 = vpop.f32.mrb[0].mxu0
        %v597 = vadd.f32 %v318, %v596
        %v598 = vpop.f32.mrb[0].mxu0
        %599 = vmatprep.mubr.f32.mxu0 0.0
        %600 = vmatmul.mubr.f32.gmra.mrb[0].mxu0 %v337
        %v601 = vpop.f32.mrb[0].mxu0
        %v602 = vadd.f32 %v318, %v601
        %v603 = vpop.f32.mrb[0].mxu0
        %604 = vmatprep.mubr.f32.mxu0 0.0
        %605 = vmatmul.mubr.f32.gmra.mrb[0].mxu0 %v340
        %v606 = vpop.f32.mrb[0].mxu0
        %v607 = vadd.f32 %v318, %v606
        %v608 = vpop.f32.mrb[0].mxu0
        %609 = vmatprep.mubr.f32.mxu0 0.0
        %610 = vmatmul.mubr.f32.gmra.mrb[0].mxu0 %v343
        %v611 = vpop.f32.mrb[0].mxu0
        %v612 = vadd.f32 %v318, %v611
        %v613 = vpop.f32.mrb[0].mxu0
        %614 = vmatprep.mubr.f32.mxu0 0.0
        %615 = vmatmul.mubr.f32.gmra.mrb[0].mxu0 %v346
        %v616 = vpop.f32.mrb[0].mxu0
        %v617 = vadd.f32 %v318, %v616
        %v618 = vpop.f32.mrb[0].mxu0
        %619 = vmatprep.mubr.f32.mxu0 0.0
        %620 = vmatmul.mubr.f32.gmra.mrb[0].mxu0 %v349
        %v621 = vpop.f32.mrb[0].mxu0
        %v622 = vadd.f32 %v318, %v621
        %v623 = vpop.f32.mrb[0].mxu0
        %624 = vmatprep.mubr.f32.mxu0 0.0
        %625 = vmatmul.mubr.f32.gmra.mrb[0].mxu0 %v352
        %v626 = vpop.f32.mrb[0].mxu0
        %v627 = vadd.f32 %v318, %v626
        %v628 = vpop.f32.mrb[0].mxu0
        %629 = vmatprep.mubr.f32.mxu0 0.0
        %630 = vmatmul.mubr.f32.gmra.mrb[0].mxu0 %v355
        %v631 = vpop.f32.mrb[0].mxu0
        %v632 = vadd.f32 %v318, %v631
        %v633 = vpop.f32.mrb[0].mxu0
        %634 = vmatprep.mubr.f32.mxu0 0.0
        %635 = vmatmul.mubr.f32.gmra.mrb[0].mxu0 %v358
        %v636 = vpop.f32.mrb[0].mxu0
        %v637 = vadd.f32 %v318, %v636
        %v638 = vpop.f32.mrb[0].mxu0
        %639 = vmatprep.mubr.f32.mxu0 0.0
        %640 = vmatmul.mubr.f32.gmra.mrb[0].mxu0 %v361
        %v641 = vpop.f32.mrb[0].mxu0
        %v642 = vadd.f32 %v318, %v641
        %v643 = vpop.f32.mrb[0].mxu0
        %644 = vmatprep.mubr.f32.mxu0 0.0
        %645 = vmatmul.mubr.f32.gmra.mrb[0].mxu0 %v364
        %v646 = vpop.f32.mrb[0].mxu0
        %v647 = vadd.f32 %v318, %v646
        %v648 = vpop.f32.mrb[0].mxu0
        %649 = vmatprep.mubr.f32.mxu0 0.0
        %650 = vmatmul.mubr.f32.gmra.mrb[0].mxu0 %v367
        %v651 = vpop.f32.mrb[0].mxu0
        %v652 = vadd.f32 %v318, %v651
        %v653 = vpop.f32.mrb[0].mxu0
        %654 = vmatprep.mubr.f32.mxu0 0.0
        %655 = vmatmul.mubr.f32.gmra.mrb[0].mxu0 %v370
        %v656 = vpop.f32.mrb[0].mxu0
        %v657 = vadd.f32 %v318, %v656
        %v658 = vpop.f32.mrb[0].mxu0
        %659 = vmatprep.mubr.f32.mxu0 0.0
        %660 = vmatmul.mubr.f32.gmra.mrb[0].mxu0 %v373
        %v661 = vpop.f32.mrb[0].mxu0
        %v662 = vadd.f32 %v318, %v661
        %v663 = vpop.f32.mrb[0].mxu0
        %664 = vmatprep.mubr.f32.mxu0 0.0
        %665 = vmatmul.mubr.f32.gmra.mrb[0].mxu0 %v376
        %v666 = vpop.f32.mrb[0].mxu0
        %v667 = vadd.f32 %v318, %v666
        %v668 = vpop.f32.mrb[0].mxu0
        %669 = vmatprep.mubr.f32.mxu0 0.0
        %670 = vmatmul.mubr.f32.gmra.mrb[0].mxu0 %v379
        %v671 = vpop.f32.mrb[0].mxu0
        %v672 = vadd.f32 %v318, %v671
        %v673 = vpop.f32.mrb[0].mxu0
        %674 = vmatprep.mubr.f32.mxu0 0.0
        %675 = vmatmul.mubr.f32.gmra.mrb[0].mxu0 %v382
        %v676 = vpop.f32.mrb[0].mxu0
        %v677 = vadd.f32 %v318, %v676
        %v678 = vpop.f32.mrb[0].mxu0
        %679 = vmatprep.mubr.f32.mxu0 0.0
        %680 = vmatmul.mubr.f32.gmra.mrb[0].mxu0 %v385
        %v681 = vpop.f32.mrb[0].mxu0
        %v682 = vadd.f32 %v318, %v681
        %v683 = vpop.f32.mrb[0].mxu0
        %684 = vmatprep.mubr.f32.mxu0 0.0
        %685 = vmatmul.mubr.f32.gmra.mrb[0].mxu0 %v388
        %v686 = vpop.f32.mrb[0].mxu0
        %v687 = vadd.f32 %v318, %v686
        %v688 = vpop.f32.mrb[0].mxu0
        %689 = vmatprep.mubr.f32.mxu0 0.0
        %690 = vmatmul.mubr.f32.gmra.mrb[0].mxu0 %v391
        %v691 = vpop.f32.mrb[0].mxu0
        %v692 = vadd.f32 %v318, %v691
        %v693 = vpop.f32.mrb[0].mxu0
        %694 = vmatprep.mubr.f32.mxu0 0.0
        %695 = vmatmul.mubr.f32.gmra.mrb[0].mxu0 %v394
        %v696 = vpop.f32.mrb[0].mxu0
        %v697 = vadd.f32 %v318, %v696
        %v698 = vpop.f32.mrb[0].mxu0
        %699 = vmatprep.mubr.f32.mxu0 0.0
        %700 = vmatmul.mubr.f32.gmra.mrb[0].mxu0 %v397
        %v701 = vpop.f32.mrb[0].mxu0
        %v702 = vadd.f32 %v318, %v701
        %v703 = vpop.f32.mrb[0].mxu0
        %704 = vmatprep.mubr.f32.mxu0 0.0
        %705 = vmatmul.mubr.f32.gmra.mrb[0].mxu0 %v400
        %v706 = vpop.f32.mrb[0].mxu0
        %v707 = vadd.f32 %v318, %v706
        %v708 = vpop.f32.mrb[0].mxu0
        %709 = vmatprep.mubr.f32.mxu0 0.0
        %710 = vmatmul.mubr.f32.gmra.mrb[0].mxu0 %v403
        %v711 = vpop.f32.mrb[0].mxu0
        %v712 = vadd.f32 %v318, %v711
        %v713 = vpop.f32.mrb[0].mxu0
        %714 = vmatprep.mubr.f32.mxu0 0.0
        %715 = vmatmul.mubr.f32.gmra.mrb[0].mxu0 %v406
        %v716 = vpop.f32.mrb[0].mxu0
        %v717 = vadd.f32 %v318, %v716
        %v718 = vpop.f32.mrb[0].mxu0
        %719 = vmatprep.mubr.f32.mxu0 0.0
        %720 = vmatmul.mubr.f32.gmra.mrb[0].mxu0 %v409
        %v721 = vpop.f32.mrb[0].mxu0
        %v722 = vadd.f32 %v318, %v721
        %v723 = vpop.f32.mrb[0].mxu0
        %724 = vmatprep.mubr.f32.mxu0 0.0
        %725 = vmatmul.mubr.f32.gmra.mrb[0].mxu0 %v412
        %v726 = vpop.f32.mrb[0].mxu0
        %v727 = vadd.f32 %v318, %v726
        %v728 = vpop.f32.mrb[0].mxu0
        %729 = vmatprep.mubr.f32.mxu0 0.0
        %730 = vmatmul.mubr.f32.gmra.mrb[0].mxu0 %v415
        %v731 = vpop.f32.mrb[0].mxu0
        %v732 = vadd.f32 %v318, %v731
        %v733 = vpop.f32.mrb[0].mxu0
        %734 = vmatprep.mubr.f32.mxu0 0.0
        %735 = vmatmul.mubr.f32.gmra.mrb[0].mxu0 %v418
        %v736 = vpop.f32.mrb[0].mxu0
        %v737 = vadd.f32 %v318, %v736
        %v738 = vpop.f32.mrb[0].mxu0
        %739 = vmatprep.mubr.f32.mxu0 0.0
        %740 = vmatmul.mubr.f32.gmra.mrb[0].mxu0 %v421
        %v741 = vpop.f32.mrb[0].mxu0
        %v742 = vadd.f32 %v318, %v741
        %v743 = vpop.f32.mrb[0].mxu0
        %744 = vmatprep.mubr.f32.mxu0 0.0
        %745 = vmatmul.mubr.f32.gmra.mrb[0].mxu0 %v424
        %v746 = vpop.f32.mrb[0].mxu0
        %v747 = vadd.f32 %v318, %v746
        %v748 = vpop.f32.mrb[0].mxu0
        %749 = vmatprep.mubr.f32.mxu0 0.0
        %750 = vmatmul.mubr.f32.gmra.mrb[0].mxu0 %v427
        %v751 = vpop.f32.mrb[0].mxu0
        %v752 = vadd.f32 %v318, %v751
        %v753 = vpop.f32.mrb[0].mxu0
        %754 = vmatprep.mubr.f32.mxu0 0.0
        %755 = vmatmul.mubr.f32.gmra.mrb[0].mxu0 %v430
        %v756 = vpop.f32.mrb[0].mxu0
        %v757 = vadd.f32 %v318, %v756
        %v758 = vpop.f32.mrb[0].mxu0
        %759 = vmatprep.mubr.f32.mxu0 0.0
        %760 = vmatmul.mubr.f32.gmra.mrb[0].mxu0 %v433
        %v761 = vpop.f32.mrb[0].mxu0
        %v762 = vadd.f32 %v318, %v761
        %v763 = vpop.f32.mrb[0].mxu0
        %764 = vmatprep.mubr.f32.mxu0 0.0
        %765 = vmatmul.mubr.f32.gmra.mrb[0].mxu0 %v436
        %v766 = vpop.f32.mrb[0].mxu0
        %v767 = vadd.f32 %v318, %v766
        %v768 = vpop.f32.mrb[0].mxu0
        %769 = vmatprep.mubr.f32.mxu0 0.0
        %770 = vmatmul.mubr.f32.gmra.mrb[0].mxu0 %v439
        %v771 = vpop.f32.mrb[0].mxu0
        %v772 = vadd.f32 %v318, %v771
        %v773 = vpop.f32.mrb[0].mxu0
        %774 = vmatprep.mubr.f32.mxu0 0.0
        %775 = vmatmul.mubr.f32.gmra.mrb[0].mxu0 %v442
        %v776 = vpop.f32.mrb[0].mxu0
        %v777 = vadd.f32 %v318, %v776
        %v778 = vpop.f32.mrb[0].mxu0
        %779 = vmatprep.mubr.f32.mxu0 0.0
        %780 = vmatmul.mubr.f32.gmra.mrb[0].mxu0 %v445
        %v781 = vpop.f32.mrb[0].mxu0
        %v782 = vadd.f32 %v318, %v781
        %v783 = vpop.f32.mrb[0].mxu0
        %784 = vmatprep.mubr.f32.mxu0 0.0
        %785 = vmatmul.mubr.f32.gmra.mrb[0].mxu0 %v448
        %v786 = vpop.f32.mrb[0].mxu0
        %v787 = vadd.f32 %v318, %v786
        %v788 = vpop.f32.mrb[0].mxu0
        %789 = vmatprep.mubr.f32.mxu0 0.0
        %790 = vmatmul.mubr.f32.gmra.mrb[0].mxu0 %v451
        %v791 = vpop.f32.mrb[0].mxu0
        %v792 = vadd.f32 %v318, %v791
        %v793 = vpop.f32.mrb[0].mxu0
        %794 = vmatprep.mubr.f32.mxu0 0.0
        %795 = vmatmul.mubr.f32.gmra.mrb[0].mxu0 %v454
        %v796 = vpop.f32.mrb[0].mxu0
        %v797 = vadd.f32 %v318, %v796
        %v798 = vpop.f32.mrb[0].mxu0
        %799 = vmatprep.mubr.f32.mxu0 0.0
        %800 = vmatmul.mubr.f32.gmra.mrb[0].mxu0 %v457
        %v801 = vpop.f32.mrb[0].mxu0
        %v802 = vadd.f32 %v318, %v801
        %v803 = vpop.f32.mrb[0].mxu0
        %804 = vmatprep.mubr.f32.mxu0 0.0
        %805 = vmatmul.mubr.f32.gmra.mrb[0].mxu0 %v460
        %v806 = vpop.f32.mrb[0].mxu0
        %v807 = vadd.f32 %v318, %v806
        %v808 = vpop.f32.mrb[0].mxu0
        %809 = vmatprep.mubr.f32.mxu0 0.0
        %810 = vmatmul.mubr.f32.gmra.mrb[0].mxu0 %v463
        %v811 = vpop.f32.mrb[0].mxu0
        %v812 = vadd.f32 %v318, %v811
        %v813 = vpop.f32.mrb[0].mxu0
        %814 = vmatprep.mubr.f32.mxu0 0.0
        %815 = vmatmul.mubr.f32.gmra.mrb[0].mxu0 %v466
        %v816 = vpop.f32.mrb[0].mxu0
        %v817 = vadd.f32 %v318, %v816
        %v818 = vpop.f32.mrb[0].mxu0
        %819 = vmatprep.mubr.f32.mxu0 0.0
        %820 = vmatmul.mubr.f32.gmra.mrb[0].mxu0 %v469
        %v821 = vpop.f32.mrb[0].mxu0
        %v822 = vadd.f32 %v318, %v821
        %v823 = vpop.f32.mrb[0].mxu0
        %824 = vmatprep.mubr.f32.mxu0 0.0
        %825 = vmatmul.mubr.f32.gmra.mrb[0].mxu0 %v472
        %v826 = vpop.f32.mrb[0].mxu0
        %v827 = vadd.f32 %v318, %v826
        %v828 = vpop.f32.mrb[0].mxu0
        %829 = vmatprep.mubr.f32.mxu0 0.0
        %830 = vmatmul.mubr.f32.gmra.mrb[0].mxu0 %v475
        %v831 = vpop.f32.mrb[0].mxu0
        %v832 = vadd.f32 %v318, %v831
        %v833 = vpop.f32.mrb[0].mxu0
        %834 = vmatprep.mubr.f32.mxu0 0.0
        %835 = vmatmul.mubr.f32.gmra.mrb[0].mxu0 %v478
        %v836 = vpop.f32.mrb[0].mxu0
        %v837 = vadd.f32 %v318, %v836
        %v838 = vpop.f32.mrb[0].mxu0
        %839 = vmatprep.mubr.f32.mxu0 0.0
        %840 = vmatmul.mubr.f32.gmra.mrb[0].mxu0 %v481
        %v841 = vpop.f32.mrb[0].mxu0
        %v842 = vadd.f32 %v318, %v841
        %v843 = vpop.f32.mrb[0].mxu0
        %844 = vmatprep.mubr.f32.mxu0 0.0
        %845 = vmatmul.mubr.f32.gmra.mrb[0].mxu0 %v484
        %v846 = vpop.f32.mrb[0].mxu0
        %v847 = vadd.f32 %v318, %v846
        %v848 = vpop.f32.mrb[0].mxu0
        %849 = vmatprep.mubr.f32.mxu0 0.0
        %850 = vmatmul.mubr.f32.gmra.mrb[0].mxu0 %v487
        %v851 = vpop.f32.mrb[0].mxu0
        %v852 = vadd.f32 %v318, %v851
        %v853 = vpop.f32.mrb[0].mxu0
        %854 = vmatprep.mubr.f32.mxu0 0.0
        %855 = vmatmul.mubr.f32.gmra.mrb[0].mxu0 %v490
        %v856 = vpop.f32.mrb[0].mxu0
        %v857 = vadd.f32 %v318, %v856
        %v858 = vpop.f32.mrb[0].mxu0
        %859 = vmatprep.mubr.f32.mxu0 0.0
        %860 = vmatmul.mubr.f32.gmra.mrb[0].mxu0 %v493
        %v861 = vpop.f32.mrb[0].mxu0
        %v862 = vadd.f32 %v318, %v861
        %v863 = vpop.f32.mrb[0].mxu0
        %864 = vmatprep.mubr.f32.mxu0 0.0
        %865 = vmatmul.mubr.f32.gmra.mrb[0].mxu0 %v496
        %v866 = vpop.f32.mrb[0].mxu0
        %v867 = vadd.f32 %v318, %v866
        %v868 = vpop.f32.mrb[0].mxu0
        %869 = vmatprep.mubr.f32.mxu0 0.0
        %870 = vmatmul.mubr.f32.gmra.mrb[0].mxu0 %v499
        %v871 = vpop.f32.mrb[0].mxu0
        %v872 = vadd.f32 %v318, %v871
        %v873 = vpop.f32.mrb[0].mxu0
        %874 = vmatprep.mubr.f32.mxu0 0.0
        %875 = vmatmul.mubr.f32.gmra.mrb[0].mxu0 %v502
        %v876 = vpop.f32.mrb[0].mxu0
        %v877 = vadd.f32 %v318, %v876
        %v878 = vpop.f32.mrb[0].mxu0
        %879 = vmatprep.mubr.f32.mxu0 0.0
        %880 = vmatmul.mubr.f32.gmra.mrb[0].mxu0 %v505
        %v881 = vpop.f32.mrb[0].mxu0
        %v882 = vadd.f32 %v318, %v881
        %v883 = vpop.f32.mrb[0].mxu0
        %884 = vmatprep.mubr.f32.mxu0 0.0
        %885 = vmatmul.mubr.f32.gmra.mrb[0].mxu0 %v508
        %v886 = vpop.f32.mrb[0].mxu0
        %v887 = vadd.f32 %v318, %v886
        %v888 = vpop.f32.mrb[0].mxu0
        %889 = vdwg.mxu0
        %v890 = vmax.f32 %v577, 0.0
        %v891 = vmax.f32 %v582, 0.0
        %v892 = vmax.f32 %v587, 0.0
        %v893 = vmax.f32 %v592, 0.0
        %v894 = vmax.f32 %v597, 0.0
        %v895 = vmax.f32 %v602, 0.0
        %v896 = vmax.f32 %v607, 0.0
        %v897 = vmax.f32 %v612, 0.0
        %v898 = vmax.f32 %v617, 0.0
        %v899 = vmax.f32 %v622, 0.0
        %v900 = vmax.f32 %v627, 0.0
        %v901 = vmax.f32 %v632, 0.0
        %v902 = vmax.f32 %v637, 0.0
        %v903 = vmax.f32 %v642, 0.0
        %v904 = vmax.f32 %v647, 0.0
        %v905 = vmax.f32 %v652, 0.0
        %v906 = vmax.f32 %v657, 0.0
        %v907 = vmax.f32 %v662, 0.0
        %v908 = vmax.f32 %v667, 0.0
        %v909 = vmax.f32 %v672, 0.0
        %v910 = vmax.f32 %v677, 0.0
        %v911 = vmax.f32 %v682, 0.0
        %v912 = vmax.f32 %v687, 0.0
        %v913 = vmax.f32 %v692, 0.0
        %v914 = vmax.f32 %v697, 0.0
        %v915 = vmax.f32 %v702, 0.0
        %v916 = vmax.f32 %v707, 0.0
        %v917 = vmax.f32 %v712, 0.0
        %v918 = vmax.f32 %v717, 0.0
        %v919 = vmax.f32 %v722, 0.0
        %v920 = vmax.f32 %v727, 0.0
        %v921 = vmax.f32 %v732, 0.0
        %v922 = vmax.f32 %v737, 0.0
        %v923 = vmax.f32 %v742, 0.0
        %v924 = vmax.f32 %v747, 0.0
        %v925 = vmax.f32 %v752, 0.0
        %v926 = vmax.f32 %v757, 0.0
        %v927 = vmax.f32 %v762, 0.0
        %v928 = vmax.f32 %v767, 0.0
        %v929 = vmax.f32 %v772, 0.0
        %v930 = vmax.f32 %v777, 0.0
        %v931 = vmax.f32 %v782, 0.0
        %v932 = vmax.f32 %v787, 0.0
        %v933 = vmax.f32 %v792, 0.0
        %v934 = vmax.f32 %v797, 0.0
        %v935 = vmax.f32 %v802, 0.0
        %v936 = vmax.f32 %v807, 0.0
        %v937 = vmax.f32 %v812, 0.0
        %v938 = vmax.f32 %v817, 0.0
        %v939 = vmax.f32 %v822, 0.0
        %v940 = vmax.f32 %v827, 0.0
        %v941 = vmax.f32 %v832, 0.0
        %v942 = vmax.f32 %v837, 0.0
        %v943 = vmax.f32 %v842, 0.0
        %v944 = vmax.f32 %v847, 0.0
        %v945 = vmax.f32 %v852, 0.0
        %v946 = vmax.f32 %v857, 0.0
        %v947 = vmax.f32 %v862, 0.0
        %v948 = vmax.f32 %v867, 0.0
        %v949 = vmax.f32 %v872, 0.0
        %v950 = vmax.f32 %v877, 0.0
        %v951 = vmax.f32 %v882, 0.0
        %v952 = vmax.f32 %v887, 0.0
        %v953 = vld [vmem:[%s2] sm:$0xff]
        %v954 = vld [vmem:[%s2 + $0x8] sm:$0xff]
        %v955 = vld [vmem:[%s2 + $0x10] sm:$0xff]
        %v956 = vld [vmem:[%s2 + $0x18] sm:$0xff]
        %v957 = vld [vmem:[%s2 + $0x20] sm:$0xff]
        %v958 = vld [vmem:[%s2 + $0x28] sm:$0xff]
        %v959 = vld [vmem:[%s2 + $0x30] sm:$0xff]
        %v960 = vld [vmem:[%s2 + $0x38] sm:$0xff]
        %v961 = vld [vmem:[%s4] sm:$0x1]
        %v963 = vlaneseq
        %v964 = vshrl.u32 %v963, 7
        %v965 = vsub.s32 0, %v964
        %v966 = vrot.slane %v961, %v965
        %vm968 = vcmask 523264
        %v970 = vsel %vm968, %v890, 0
        %v973 = vsel %vm968, %v891, 0
        %v976 = vsel %vm968, %v892, 0
        %v979 = vsel %vm968, %v893, 0
        %v982 = vsel %vm968, %v894, 0
        %v985 = vsel %vm968, %v895, 0
        %v988 = vsel %vm968, %v896, 0
        %v991 = vsel %vm968, %v897, 0
        %v994 = vsel %vm968, %v898, 0
        %v997 = vsel %vm968, %v899, 0
        %v1000 = vsel %vm968, %v900, 0
        %v1003 = vsel %vm968, %v901, 0
        %v1006 = vsel %vm968, %v902, 0
        %v1009 = vsel %vm968, %v903, 0
        %v1012 = vsel %vm968, %v904, 0
        %v1015 = vsel %vm968, %v905, 0
        %v1018 = vsel %vm968, %v906, 0
        %v1021 = vsel %vm968, %v907, 0
        %v1024 = vsel %vm968, %v908, 0
        %v1027 = vsel %vm968, %v909, 0
        %v1030 = vsel %vm968, %v910, 0
        %v1033 = vsel %vm968, %v911, 0
        %v1036 = vsel %vm968, %v912, 0
        %v1039 = vsel %vm968, %v913, 0
        %v1042 = vsel %vm968, %v914, 0
        %v1045 = vsel %vm968, %v915, 0
        %v1048 = vsel %vm968, %v916, 0
        %v1051 = vsel %vm968, %v917, 0
        %v1054 = vsel %vm968, %v918, 0
        %v1057 = vsel %vm968, %v919, 0
        %v1060 = vsel %vm968, %v920, 0
        %v1063 = vsel %vm968, %v921, 0
        %v1066 = vsel %vm968, %v922, 0
        %v1069 = vsel %vm968, %v923, 0
        %v1072 = vsel %vm968, %v924, 0
        %v1075 = vsel %vm968, %v925, 0
        %v1078 = vsel %vm968, %v926, 0
        %v1081 = vsel %vm968, %v927, 0
        %v1084 = vsel %vm968, %v928, 0
        %v1087 = vsel %vm968, %v929, 0
        %v1090 = vsel %vm968, %v930, 0
        %v1093 = vsel %vm968, %v931, 0
        %v1096 = vsel %vm968, %v932, 0
        %v1099 = vsel %vm968, %v933, 0
        %v1102 = vsel %vm968, %v934, 0
        %v1105 = vsel %vm968, %v935, 0
        %v1108 = vsel %vm968, %v936, 0
        %v1111 = vsel %vm968, %v937, 0
        %v1114 = vsel %vm968, %v938, 0
        %v1117 = vsel %vm968, %v939, 0
        %v1120 = vsel %vm968, %v940, 0
        %v1123 = vsel %vm968, %v941, 0
        %v1126 = vsel %vm968, %v942, 0
        %v1129 = vsel %vm968, %v943, 0
        %v1132 = vsel %vm968, %v944, 0
        %v1135 = vsel %vm968, %v945, 0
        %v1138 = vsel %vm968, %v946, 0
        %v1141 = vsel %vm968, %v947, 0
        %v1144 = vsel %vm968, %v948, 0
        %v1147 = vsel %vm968, %v949, 0
        %v1150 = vsel %vm968, %v950, 0
        %v1153 = vsel %vm968, %v951, 0
        %v1156 = vsel %vm968, %v952, 0
        %1158 = vmatprep.subr.mxu0 0.0
        %1159 = vmatpush1.msra.mxu0 %v953
        %1160 = vmatprep.subr.mxu0 0.0
        %1161 = vmatpush1.msra.mxu0 %v954
        %1162 = vmatprep.subr.mxu0 0.0
        %1163 = vmatpush1.msra.mxu0 %v955
        %1164 = vmatprep.subr.mxu0 0.0
        %1165 = vmatpush1.msra.mxu0 %v956
        %1166 = vmatprep.subr.mxu0 0.0
        %1167 = vmatpush1.msra.mxu0 %v957
        %1168 = vmatprep.subr.mxu0 0.0
        %1169 = vmatpush1.msra.mxu0 %v958
        %1170 = vmatprep.subr.mxu0 0.0
        %1171 = vmatpush1.msra.mxu0 %v959
        %1172 = vmatprep.subr.mxu0 0.0
        %1173 = vmatpush1.msra.mxu0 %v960
        %1174 = vmatprep.subr.mxu0 0.0
        %1175 = vmatpush1.msra.mxu0 0.0
        %1176 = vmatprep.subr.mxu0 0.0
        %1177 = vmatpush1.msra.mxu0 0.0
        %1178 = vmatprep.subr.mxu0 0.0
        %1179 = vmatpush1.msra.mxu0 0.0
        %1180 = vmatprep.subr.mxu0 0.0
        %1181 = vmatpush1.msra.mxu0 0.0
        %1182 = vmatprep.subr.mxu0 0.0
        %1183 = vmatpush1.msra.mxu0 0.0
        %1184 = vmatprep.subr.mxu0 0.0
        %1185 = vmatpush1.msra.mxu0 0.0
        %1186 = vmatprep.subr.mxu0 0.0
        %1187 = vmatpush1.msra.mxu0 0.0
        %1188 = vmatprep.subr.mxu0 0.0
        %1189 = vmatpush1.msra.mxu0 0.0
        %1190 = vmatprep.subr.mxu0 0.0
        %1191 = vmatpush1.msra.mxu0 0.0
        %1192 = vmatprep.subr.mxu0 0.0
        %1193 = vmatpush1.msra.mxu0 0.0
        %1194 = vmatprep.subr.mxu0 0.0
        %1195 = vmatpush1.msra.mxu0 0.0
        %1196 = vmatprep.subr.mxu0 0.0
        %1197 = vmatpush1.msra.mxu0 0.0
        %1198 = vmatprep.subr.mxu0 0.0
        %1199 = vmatpush1.msra.mxu0 0.0
        %1200 = vmatprep.subr.mxu0 0.0
        %1201 = vmatpush1.msra.mxu0 0.0
        %1202 = vmatprep.subr.mxu0 0.0
        %1203 = vmatpush1.msra.mxu0 0.0
        %1204 = vmatprep.subr.mxu0 0.0
        %1205 = vmatpush1.msra.mxu0 0.0
        %1206 = vmatprep.subr.mxu0 0.0
        %1207 = vmatpush1.msra.mxu0 0.0
        %1208 = vmatprep.subr.mxu0 0.0
        %1209 = vmatpush1.msra.mxu0 0.0
        %1210 = vmatprep.subr.mxu0 0.0
        %1211 = vmatpush1.msra.mxu0 0.0
        %1212 = vmatprep.subr.mxu0 0.0
        %1213 = vmatpush1.msra.mxu0 0.0
        %1214 = vmatprep.subr.mxu0 0.0
        %1215 = vmatpush1.msra.mxu0 0.0
        %1216 = vmatprep.subr.mxu0 0.0
        %1217 = vmatpush1.msra.mxu0 0.0
        %1218 = vmatprep.subr.mxu0 0.0
        %1219 = vmatpush1.msra.mxu0 0.0
        %1220 = vmatprep.subr.mxu0 0.0
        %1221 = vmatpush1.msra.mxu0 0.0
        %1222 = vmatprep.mubr.f32.mxu0 0.0
        %1223 = vmatmul.mubr.f32.gmra.mrb[0].mxu0 %v970
        %v1224 = vpop.f32.mrb[0].mxu0
        %v1225 = vadd.f32 %v966, %v1224
        %v1226 = vpop.f32.mrb[0].mxu0
        %1227 = vmatprep.mubr.f32.mxu0 0.0
        %1228 = vmatmul.mubr.f32.gmra.mrb[0].mxu0 %v973
        %v1229 = vpop.f32.mrb[0].mxu0
        %v1230 = vadd.f32 %v966, %v1229
        %v1231 = vpop.f32.mrb[0].mxu0
        %1232 = vmatprep.mubr.f32.mxu0 0.0
        %1233 = vmatmul.mubr.f32.gmra.mrb[0].mxu0 %v976
        %v1234 = vpop.f32.mrb[0].mxu0
        %v1235 = vadd.f32 %v966, %v1234
        %v1236 = vpop.f32.mrb[0].mxu0
        %1237 = vmatprep.mubr.f32.mxu0 0.0
        %1238 = vmatmul.mubr.f32.gmra.mrb[0].mxu0 %v979
        %v1239 = vpop.f32.mrb[0].mxu0
        %v1240 = vadd.f32 %v966, %v1239
        %v1241 = vpop.f32.mrb[0].mxu0
        %1242 = vmatprep.mubr.f32.mxu0 0.0
        %1243 = vmatmul.mubr.f32.gmra.mrb[0].mxu0 %v982
        %v1244 = vpop.f32.mrb[0].mxu0
        %v1245 = vadd.f32 %v966, %v1244
        %v1246 = vpop.f32.mrb[0].mxu0
        %1247 = vmatprep.mubr.f32.mxu0 0.0
        %1248 = vmatmul.mubr.f32.gmra.mrb[0].mxu0 %v985
        %v1249 = vpop.f32.mrb[0].mxu0
        %v1250 = vadd.f32 %v966, %v1249
        %v1251 = vpop.f32.mrb[0].mxu0
        %1252 = vmatprep.mubr.f32.mxu0 0.0
        %1253 = vmatmul.mubr.f32.gmra.mrb[0].mxu0 %v988
        %v1254 = vpop.f32.mrb[0].mxu0
        %v1255 = vadd.f32 %v966, %v1254
        %v1256 = vpop.f32.mrb[0].mxu0
        %1257 = vmatprep.mubr.f32.mxu0 0.0
        %1258 = vmatmul.mubr.f32.gmra.mrb[0].mxu0 %v991
        %v1259 = vpop.f32.mrb[0].mxu0
        %v1260 = vadd.f32 %v966, %v1259
        %v1261 = vpop.f32.mrb[0].mxu0
        %1262 = vmatprep.mubr.f32.mxu0 0.0
        %1263 = vmatmul.mubr.f32.gmra.mrb[0].mxu0 %v994
        %v1264 = vpop.f32.mrb[0].mxu0
        %v1265 = vadd.f32 %v966, %v1264
        %v1266 = vpop.f32.mrb[0].mxu0
        %1267 = vmatprep.mubr.f32.mxu0 0.0
        %1268 = vmatmul.mubr.f32.gmra.mrb[0].mxu0 %v997
        %v1269 = vpop.f32.mrb[0].mxu0
        %v1270 = vadd.f32 %v966, %v1269
        %v1271 = vpop.f32.mrb[0].mxu0
        %1272 = vmatprep.mubr.f32.mxu0 0.0
        %1273 = vmatmul.mubr.f32.gmra.mrb[0].mxu0 %v1000
        %v1274 = vpop.f32.mrb[0].mxu0
        %v1275 = vadd.f32 %v966, %v1274
        %v1276 = vpop.f32.mrb[0].mxu0
        %1277 = vmatprep.mubr.f32.mxu0 0.0
        %1278 = vmatmul.mubr.f32.gmra.mrb[0].mxu0 %v1003
        %v1279 = vpop.f32.mrb[0].mxu0
        %v1280 = vadd.f32 %v966, %v1279
        %v1281 = vpop.f32.mrb[0].mxu0
        %1282 = vmatprep.mubr.f32.mxu0 0.0
        %1283 = vmatmul.mubr.f32.gmra.mrb[0].mxu0 %v1006
        %v1284 = vpop.f32.mrb[0].mxu0
        %v1285 = vadd.f32 %v966, %v1284
        %v1286 = vpop.f32.mrb[0].mxu0
        %1287 = vmatprep.mubr.f32.mxu0 0.0
        %1288 = vmatmul.mubr.f32.gmra.mrb[0].mxu0 %v1009
        %v1289 = vpop.f32.mrb[0].mxu0
        %v1290 = vadd.f32 %v966, %v1289
        %v1291 = vpop.f32.mrb[0].mxu0
        %1292 = vmatprep.mubr.f32.mxu0 0.0
        %1293 = vmatmul.mubr.f32.gmra.mrb[0].mxu0 %v1012
        %v1294 = vpop.f32.mrb[0].mxu0
        %v1295 = vadd.f32 %v966, %v1294
        %v1296 = vpop.f32.mrb[0].mxu0
        %1297 = vmatprep.mubr.f32.mxu0 0.0
        %1298 = vmatmul.mubr.f32.gmra.mrb[0].mxu0 %v1015
        %v1299 = vpop.f32.mrb[0].mxu0
        %v1300 = vadd.f32 %v966, %v1299
        %v1301 = vpop.f32.mrb[0].mxu0
        %1302 = vmatprep.mubr.f32.mxu0 0.0
        %1303 = vmatmul.mubr.f32.gmra.mrb[0].mxu0 %v1018
        %v1304 = vpop.f32.mrb[0].mxu0
        %v1305 = vadd.f32 %v966, %v1304
        %v1306 = vpop.f32.mrb[0].mxu0
        %1307 = vmatprep.mubr.f32.mxu0 0.0
        %1308 = vmatmul.mubr.f32.gmra.mrb[0].mxu0 %v1021
        %v1309 = vpop.f32.mrb[0].mxu0
        %v1310 = vadd.f32 %v966, %v1309
        %v1311 = vpop.f32.mrb[0].mxu0
        %1312 = vmatprep.mubr.f32.mxu0 0.0
        %1313 = vmatmul.mubr.f32.gmra.mrb[0].mxu0 %v1024
        %v1314 = vpop.f32.mrb[0].mxu0
        %v1315 = vadd.f32 %v966, %v1314
        %v1316 = vpop.f32.mrb[0].mxu0
        %1317 = vmatprep.mubr.f32.mxu0 0.0
        %1318 = vmatmul.mubr.f32.gmra.mrb[0].mxu0 %v1027
        %v1319 = vpop.f32.mrb[0].mxu0
        %v1320 = vadd.f32 %v966, %v1319
        %v1321 = vpop.f32.mrb[0].mxu0
        %1322 = vmatprep.mubr.f32.mxu0 0.0
        %1323 = vmatmul.mubr.f32.gmra.mrb[0].mxu0 %v1030
        %v1324 = vpop.f32.mrb[0].mxu0
        %v1325 = vadd.f32 %v966, %v1324
        %v1326 = vpop.f32.mrb[0].mxu0
        %1327 = vmatprep.mubr.f32.mxu0 0.0
        %1328 = vmatmul.mubr.f32.gmra.mrb[0].mxu0 %v1033
        %v1329 = vpop.f32.mrb[0].mxu0
        %v1330 = vadd.f32 %v966, %v1329
        %v1331 = vpop.f32.mrb[0].mxu0
        %1332 = vmatprep.mubr.f32.mxu0 0.0
        %1333 = vmatmul.mubr.f32.gmra.mrb[0].mxu0 %v1036
        %v1334 = vpop.f32.mrb[0].mxu0
        %v1335 = vadd.f32 %v966, %v1334
        %v1336 = vpop.f32.mrb[0].mxu0
        %1337 = vmatprep.mubr.f32.mxu0 0.0
        %1338 = vmatmul.mubr.f32.gmra.mrb[0].mxu0 %v1039
        %v1339 = vpop.f32.mrb[0].mxu0
        %v1340 = vadd.f32 %v966, %v1339
        %v1341 = vpop.f32.mrb[0].mxu0
        %1342 = vmatprep.mubr.f32.mxu0 0.0
        %1343 = vmatmul.mubr.f32.gmra.mrb[0].mxu0 %v1042
        %v1344 = vpop.f32.mrb[0].mxu0
        %v1345 = vadd.f32 %v966, %v1344
        %v1346 = vpop.f32.mrb[0].mxu0
        %1347 = vmatprep.mubr.f32.mxu0 0.0
        %1348 = vmatmul.mubr.f32.gmra.mrb[0].mxu0 %v1045
        %v1349 = vpop.f32.mrb[0].mxu0
        %v1350 = vadd.f32 %v966, %v1349
        %v1351 = vpop.f32.mrb[0].mxu0
        %1352 = vmatprep.mubr.f32.mxu0 0.0
        %1353 = vmatmul.mubr.f32.gmra.mrb[0].mxu0 %v1048
        %v1354 = vpop.f32.mrb[0].mxu0
        %v1355 = vadd.f32 %v966, %v1354
        %v1356 = vpop.f32.mrb[0].mxu0
        %1357 = vmatprep.mubr.f32.mxu0 0.0
        %1358 = vmatmul.mubr.f32.gmra.mrb[0].mxu0 %v1051
        %v1359 = vpop.f32.mrb[0].mxu0
        %v1360 = vadd.f32 %v966, %v1359
        %v1361 = vpop.f32.mrb[0].mxu0
        %1362 = vmatprep.mubr.f32.mxu0 0.0
        %1363 = vmatmul.mubr.f32.gmra.mrb[0].mxu0 %v1054
        %v1364 = vpop.f32.mrb[0].mxu0
        %v1365 = vadd.f32 %v966, %v1364
        %v1366 = vpop.f32.mrb[0].mxu0
        %1367 = vmatprep.mubr.f32.mxu0 0.0
        %1368 = vmatmul.mubr.f32.gmra.mrb[0].mxu0 %v1057
        %v1369 = vpop.f32.mrb[0].mxu0
        %v1370 = vadd.f32 %v966, %v1369
        %v1371 = vpop.f32.mrb[0].mxu0
        %1372 = vmatprep.mubr.f32.mxu0 0.0
        %1373 = vmatmul.mubr.f32.gmra.mrb[0].mxu0 %v1060
        %v1374 = vpop.f32.mrb[0].mxu0
        %v1375 = vadd.f32 %v966, %v1374
        %v1376 = vpop.f32.mrb[0].mxu0
        %1377 = vmatprep.mubr.f32.mxu0 0.0
        %1378 = vmatmul.mubr.f32.gmra.mrb[0].mxu0 %v1063
        %v1379 = vpop.f32.mrb[0].mxu0
        %v1380 = vadd.f32 %v966, %v1379
        %v1381 = vpop.f32.mrb[0].mxu0
        %1382 = vmatprep.mubr.f32.mxu0 0.0
        %1383 = vmatmul.mubr.f32.gmra.mrb[0].mxu0 %v1066
        %v1384 = vpop.f32.mrb[0].mxu0
        %v1385 = vadd.f32 %v966, %v1384
        %v1386 = vpop.f32.mrb[0].mxu0
        %1387 = vmatprep.mubr.f32.mxu0 0.0
        %1388 = vmatmul.mubr.f32.gmra.mrb[0].mxu0 %v1069
        %v1389 = vpop.f32.mrb[0].mxu0
        %v1390 = vadd.f32 %v966, %v1389
        %v1391 = vpop.f32.mrb[0].mxu0
        %1392 = vmatprep.mubr.f32.mxu0 0.0
        %1393 = vmatmul.mubr.f32.gmra.mrb[0].mxu0 %v1072
        %v1394 = vpop.f32.mrb[0].mxu0
        %v1395 = vadd.f32 %v966, %v1394
        %v1396 = vpop.f32.mrb[0].mxu0
        %1397 = vmatprep.mubr.f32.mxu0 0.0
        %1398 = vmatmul.mubr.f32.gmra.mrb[0].mxu0 %v1075
        %v1399 = vpop.f32.mrb[0].mxu0
        %v1400 = vadd.f32 %v966, %v1399
        %v1401 = vpop.f32.mrb[0].mxu0
        %1402 = vmatprep.mubr.f32.mxu0 0.0
        %1403 = vmatmul.mubr.f32.gmra.mrb[0].mxu0 %v1078
        %v1404 = vpop.f32.mrb[0].mxu0
        %v1405 = vadd.f32 %v966, %v1404
        %v1406 = vpop.f32.mrb[0].mxu0
        %1407 = vmatprep.mubr.f32.mxu0 0.0
        %1408 = vmatmul.mubr.f32.gmra.mrb[0].mxu0 %v1081
        %v1409 = vpop.f32.mrb[0].mxu0
        %v1410 = vadd.f32 %v966, %v1409
        %v1411 = vpop.f32.mrb[0].mxu0
        %1412 = vmatprep.mubr.f32.mxu0 0.0
        %1413 = vmatmul.mubr.f32.gmra.mrb[0].mxu0 %v1084
        %v1414 = vpop.f32.mrb[0].mxu0
        %v1415 = vadd.f32 %v966, %v1414
        %v1416 = vpop.f32.mrb[0].mxu0
        %1417 = vmatprep.mubr.f32.mxu0 0.0
        %1418 = vmatmul.mubr.f32.gmra.mrb[0].mxu0 %v1087
        %v1419 = vpop.f32.mrb[0].mxu0
        %v1420 = vadd.f32 %v966, %v1419
        %v1421 = vpop.f32.mrb[0].mxu0
        %1422 = vmatprep.mubr.f32.mxu0 0.0
        %1423 = vmatmul.mubr.f32.gmra.mrb[0].mxu0 %v1090
        %v1424 = vpop.f32.mrb[0].mxu0
        %v1425 = vadd.f32 %v966, %v1424
        %v1426 = vpop.f32.mrb[0].mxu0
        %1427 = vmatprep.mubr.f32.mxu0 0.0
        %1428 = vmatmul.mubr.f32.gmra.mrb[0].mxu0 %v1093
        %v1429 = vpop.f32.mrb[0].mxu0
        %v1430 = vadd.f32 %v966, %v1429
        %v1431 = vpop.f32.mrb[0].mxu0
        %1432 = vmatprep.mubr.f32.mxu0 0.0
        %1433 = vmatmul.mubr.f32.gmra.mrb[0].mxu0 %v1096
        %v1434 = vpop.f32.mrb[0].mxu0
        %v1435 = vadd.f32 %v966, %v1434
        %v1436 = vpop.f32.mrb[0].mxu0
        %1437 = vmatprep.mubr.f32.mxu0 0.0
        %1438 = vmatmul.mubr.f32.gmra.mrb[0].mxu0 %v1099
        %v1439 = vpop.f32.mrb[0].mxu0
        %v1440 = vadd.f32 %v966, %v1439
        %v1441 = vpop.f32.mrb[0].mxu0
        %1442 = vmatprep.mubr.f32.mxu0 0.0
        %1443 = vmatmul.mubr.f32.gmra.mrb[0].mxu0 %v1102
        %v1444 = vpop.f32.mrb[0].mxu0
        %v1445 = vadd.f32 %v966, %v1444
        %v1446 = vpop.f32.mrb[0].mxu0
        %1447 = vmatprep.mubr.f32.mxu0 0.0
        %1448 = vmatmul.mubr.f32.gmra.mrb[0].mxu0 %v1105
        %v1449 = vpop.f32.mrb[0].mxu0
        %v1450 = vadd.f32 %v966, %v1449
        %v1451 = vpop.f32.mrb[0].mxu0
        %1452 = vmatprep.mubr.f32.mxu0 0.0
        %1453 = vmatmul.mubr.f32.gmra.mrb[0].mxu0 %v1108
        %v1454 = vpop.f32.mrb[0].mxu0
        %v1455 = vadd.f32 %v966, %v1454
        %v1456 = vpop.f32.mrb[0].mxu0
        %1457 = vmatprep.mubr.f32.mxu0 0.0
        %1458 = vmatmul.mubr.f32.gmra.mrb[0].mxu0 %v1111
        %v1459 = vpop.f32.mrb[0].mxu0
        %v1460 = vadd.f32 %v966, %v1459
        %v1461 = vpop.f32.mrb[0].mxu0
        %1462 = vmatprep.mubr.f32.mxu0 0.0
        %1463 = vmatmul.mubr.f32.gmra.mrb[0].mxu0 %v1114
        %v1464 = vpop.f32.mrb[0].mxu0
        %v1465 = vadd.f32 %v966, %v1464
        %v1466 = vpop.f32.mrb[0].mxu0
        %1467 = vmatprep.mubr.f32.mxu0 0.0
        %1468 = vmatmul.mubr.f32.gmra.mrb[0].mxu0 %v1117
        %v1469 = vpop.f32.mrb[0].mxu0
        %v1470 = vadd.f32 %v966, %v1469
        %v1471 = vpop.f32.mrb[0].mxu0
        %1472 = vmatprep.mubr.f32.mxu0 0.0
        %1473 = vmatmul.mubr.f32.gmra.mrb[0].mxu0 %v1120
        %v1474 = vpop.f32.mrb[0].mxu0
        %v1475 = vadd.f32 %v966, %v1474
        %v1476 = vpop.f32.mrb[0].mxu0
        %1477 = vmatprep.mubr.f32.mxu0 0.0
        %1478 = vmatmul.mubr.f32.gmra.mrb[0].mxu0 %v1123
        %v1479 = vpop.f32.mrb[0].mxu0
        %v1480 = vadd.f32 %v966, %v1479
        %v1481 = vpop.f32.mrb[0].mxu0
        %1482 = vmatprep.mubr.f32.mxu0 0.0
        %1483 = vmatmul.mubr.f32.gmra.mrb[0].mxu0 %v1126
        %v1484 = vpop.f32.mrb[0].mxu0
        %v1485 = vadd.f32 %v966, %v1484
        %v1486 = vpop.f32.mrb[0].mxu0
        %1487 = vmatprep.mubr.f32.mxu0 0.0
        %1488 = vmatmul.mubr.f32.gmra.mrb[0].mxu0 %v1129
        %v1489 = vpop.f32.mrb[0].mxu0
        %v1490 = vadd.f32 %v966, %v1489
        %v1491 = vpop.f32.mrb[0].mxu0
        %1492 = vmatprep.mubr.f32.mxu0 0.0
        %1493 = vmatmul.mubr.f32.gmra.mrb[0].mxu0 %v1132
        %v1494 = vpop.f32.mrb[0].mxu0
        %v1495 = vadd.f32 %v966, %v1494
        %v1496 = vpop.f32.mrb[0].mxu0
        %1497 = vmatprep.mubr.f32.mxu0 0.0
        %1498 = vmatmul.mubr.f32.gmra.mrb[0].mxu0 %v1135
        %v1499 = vpop.f32.mrb[0].mxu0
        %v1500 = vadd.f32 %v966, %v1499
        %v1501 = vpop.f32.mrb[0].mxu0
        %1502 = vmatprep.mubr.f32.mxu0 0.0
        %1503 = vmatmul.mubr.f32.gmra.mrb[0].mxu0 %v1138
        %v1504 = vpop.f32.mrb[0].mxu0
        %v1505 = vadd.f32 %v966, %v1504
        %v1506 = vpop.f32.mrb[0].mxu0
        %1507 = vmatprep.mubr.f32.mxu0 0.0
        %1508 = vmatmul.mubr.f32.gmra.mrb[0].mxu0 %v1141
        %v1509 = vpop.f32.mrb[0].mxu0
        %v1510 = vadd.f32 %v966, %v1509
        %v1511 = vpop.f32.mrb[0].mxu0
        %1512 = vmatprep.mubr.f32.mxu0 0.0
        %1513 = vmatmul.mubr.f32.gmra.mrb[0].mxu0 %v1144
        %v1514 = vpop.f32.mrb[0].mxu0
        %v1515 = vadd.f32 %v966, %v1514
        %v1516 = vpop.f32.mrb[0].mxu0
        %1517 = vmatprep.mubr.f32.mxu0 0.0
        %1518 = vmatmul.mubr.f32.gmra.mrb[0].mxu0 %v1147
        %v1519 = vpop.f32.mrb[0].mxu0
        %v1520 = vadd.f32 %v966, %v1519
        %v1521 = vpop.f32.mrb[0].mxu0
        %1522 = vmatprep.mubr.f32.mxu0 0.0
        %1523 = vmatmul.mubr.f32.gmra.mrb[0].mxu0 %v1150
        %v1524 = vpop.f32.mrb[0].mxu0
        %v1525 = vadd.f32 %v966, %v1524
        %v1526 = vpop.f32.mrb[0].mxu0
        %1527 = vmatprep.mubr.f32.mxu0 0.0
        %1528 = vmatmul.mubr.f32.gmra.mrb[0].mxu0 %v1153
        %v1529 = vpop.f32.mrb[0].mxu0
        %v1530 = vadd.f32 %v966, %v1529
        %v1531 = vpop.f32.mrb[0].mxu0
        %1532 = vmatprep.mubr.f32.mxu0 0.0
        %1533 = vmatmul.mubr.f32.gmra.mrb[0].mxu0 %v1156
        %v1534 = vpop.f32.mrb[0].mxu0
        %v1535 = vadd.f32 %v966, %v1534
        %v1536 = vpop.f32.mrb[0].mxu0
        %1537 = vdwg.mxu0
        %v1538 = vmax.f32 %v1225, 0.0
        %v1539 = vmax.f32 %v1230, 0.0
        %v1540 = vmax.f32 %v1235, 0.0
        %v1541 = vmax.f32 %v1240, 0.0
        %v1542 = vmax.f32 %v1245, 0.0
        %v1543 = vmax.f32 %v1250, 0.0
        %v1544 = vmax.f32 %v1255, 0.0
        %v1545 = vmax.f32 %v1260, 0.0
        %v1546 = vmax.f32 %v1265, 0.0
        %v1547 = vmax.f32 %v1270, 0.0
        %v1548 = vmax.f32 %v1275, 0.0
        %v1549 = vmax.f32 %v1280, 0.0
        %v1550 = vmax.f32 %v1285, 0.0
        %v1551 = vmax.f32 %v1290, 0.0
        %v1552 = vmax.f32 %v1295, 0.0
        %v1553 = vmax.f32 %v1300, 0.0
        %v1554 = vmax.f32 %v1305, 0.0
        %v1555 = vmax.f32 %v1310, 0.0
        %v1556 = vmax.f32 %v1315, 0.0
        %v1557 = vmax.f32 %v1320, 0.0
        %v1558 = vmax.f32 %v1325, 0.0
        %v1559 = vmax.f32 %v1330, 0.0
        %v1560 = vmax.f32 %v1335, 0.0
        %v1561 = vmax.f32 %v1340, 0.0
        %v1562 = vmax.f32 %v1345, 0.0
        %v1563 = vmax.f32 %v1350, 0.0
        %v1564 = vmax.f32 %v1355, 0.0
        %v1565 = vmax.f32 %v1360, 0.0
        %v1566 = vmax.f32 %v1365, 0.0
        %v1567 = vmax.f32 %v1370, 0.0
        %v1568 = vmax.f32 %v1375, 0.0
        %v1569 = vmax.f32 %v1380, 0.0
        %v1570 = vmax.f32 %v1385, 0.0
        %v1571 = vmax.f32 %v1390, 0.0
        %v1572 = vmax.f32 %v1395, 0.0
        %v1573 = vmax.f32 %v1400, 0.0
        %v1574 = vmax.f32 %v1405, 0.0
        %v1575 = vmax.f32 %v1410, 0.0
        %v1576 = vmax.f32 %v1415, 0.0
        %v1577 = vmax.f32 %v1420, 0.0
        %v1578 = vmax.f32 %v1425, 0.0
        %v1579 = vmax.f32 %v1430, 0.0
        %v1580 = vmax.f32 %v1435, 0.0
        %v1581 = vmax.f32 %v1440, 0.0
        %v1582 = vmax.f32 %v1445, 0.0
        %v1583 = vmax.f32 %v1450, 0.0
        %v1584 = vmax.f32 %v1455, 0.0
        %v1585 = vmax.f32 %v1460, 0.0
        %v1586 = vmax.f32 %v1465, 0.0
        %v1587 = vmax.f32 %v1470, 0.0
        %v1588 = vmax.f32 %v1475, 0.0
        %v1589 = vmax.f32 %v1480, 0.0
        %v1590 = vmax.f32 %v1485, 0.0
        %v1591 = vmax.f32 %v1490, 0.0
        %v1592 = vmax.f32 %v1495, 0.0
        %v1593 = vmax.f32 %v1500, 0.0
        %v1594 = vmax.f32 %v1505, 0.0
        %v1595 = vmax.f32 %v1510, 0.0
        %v1596 = vmax.f32 %v1515, 0.0
        %v1597 = vmax.f32 %v1520, 0.0
        %v1598 = vmax.f32 %v1525, 0.0
        %v1599 = vmax.f32 %v1530, 0.0
        %v1600 = vmax.f32 %v1535, 0.0
        %1601 = vst.msk [vmem:[%s226] sm:$0xff] %vm320, %v1538
        %1602 = vst.msk [vmem:[%s226 + $0x8] sm:$0xff] %vm320, %v1539
        %1603 = vst.msk [vmem:[%s226 + $0x10] sm:$0xff] %vm320, %v1540
        %1604 = vst.msk [vmem:[%s226 + $0x18] sm:$0xff] %vm320, %v1541
        %1605 = vst.msk [vmem:[%s226 + $0x20] sm:$0xff] %vm320, %v1542
        %1606 = vst.msk [vmem:[%s226 + $0x28] sm:$0xff] %vm320, %v1543
        %1607 = vst.msk [vmem:[%s226 + $0x30] sm:$0xff] %vm320, %v1544
        %1608 = vst.msk [vmem:[%s226 + $0x38] sm:$0xff] %vm320, %v1545
        %1609 = vst.msk [vmem:[%s226 + $0x40] sm:$0xff] %vm320, %v1546
        %1610 = vst.msk [vmem:[%s226 + $0x48] sm:$0xff] %vm320, %v1547
        %1611 = vst.msk [vmem:[%s226 + $0x50] sm:$0xff] %vm320, %v1548
        %1612 = vst.msk [vmem:[%s226 + $0x58] sm:$0xff] %vm320, %v1549
        %1613 = vst.msk [vmem:[%s226 + $0x60] sm:$0xff] %vm320, %v1550
        %1614 = vst.msk [vmem:[%s226 + $0x68] sm:$0xff] %vm320, %v1551
        %1615 = vst.msk [vmem:[%s226 + $0x70] sm:$0xff] %vm320, %v1552
        %1616 = vst.msk [vmem:[%s226 + $0x78] sm:$0xff] %vm320, %v1553
        %1617 = vst.msk [vmem:[%s226 + $0x80] sm:$0xff] %vm320, %v1554
        %1618 = vst.msk [vmem:[%s226 + $0x88] sm:$0xff] %vm320, %v1555
        %1619 = vst.msk [vmem:[%s226 + $0x90] sm:$0xff] %vm320, %v1556
        %1620 = vst.msk [vmem:[%s226 + $0x98] sm:$0xff] %vm320, %v1557
        %1621 = vst.msk [vmem:[%s226 + $0xa0] sm:$0xff] %vm320, %v1558
        %1622 = vst.msk [vmem:[%s226 + $0xa8] sm:$0xff] %vm320, %v1559
        %1623 = vst.msk [vmem:[%s226 + $0xb0] sm:$0xff] %vm320, %v1560
        %1624 = vst.msk [vmem:[%s226 + $0xb8] sm:$0xff] %vm320, %v1561
        %1625 = vst.msk [vmem:[%s226 + $0xc0] sm:$0xff] %vm320, %v1562
        %1626 = vst.msk [vmem:[%s226 + $0xc8] sm:$0xff] %vm320, %v1563
        %1627 = vst.msk [vmem:[%s226 + $0xd0] sm:$0xff] %vm320, %v1564
        %1628 = vst.msk [vmem:[%s226 + $0xd8] sm:$0xff] %vm320, %v1565
        %1629 = vst.msk [vmem:[%s226 + $0xe0] sm:$0xff] %vm320, %v1566
        %1630 = vst.msk [vmem:[%s226 + $0xe8] sm:$0xff] %vm320, %v1567
        %1631 = vst.msk [vmem:[%s226 + $0xf0] sm:$0xff] %vm320, %v1568
        %1632 = vst.msk [vmem:[%s226 + $0xf8] sm:$0xff] %vm320, %v1569
        %1633 = vst.msk [vmem:[%s226 + $0x100] sm:$0xff] %vm320, %v1570
        %1634 = vst.msk [vmem:[%s226 + $0x108] sm:$0xff] %vm320, %v1571
        %1635 = vst.msk [vmem:[%s226 + $0x110] sm:$0xff] %vm320, %v1572
        %1636 = vst.msk [vmem:[%s226 + $0x118] sm:$0xff] %vm320, %v1573
        %1637 = vst.msk [vmem:[%s226 + $0x120] sm:$0xff] %vm320, %v1574
        %1638 = vst.msk [vmem:[%s226 + $0x128] sm:$0xff] %vm320, %v1575
        %1639 = vst.msk [vmem:[%s226 + $0x130] sm:$0xff] %vm320, %v1576
        %1640 = vst.msk [vmem:[%s226 + $0x138] sm:$0xff] %vm320, %v1577
        %1641 = vst.msk [vmem:[%s226 + $0x140] sm:$0xff] %vm320, %v1578
        %1642 = vst.msk [vmem:[%s226 + $0x148] sm:$0xff] %vm320, %v1579
        %1643 = vst.msk [vmem:[%s226 + $0x150] sm:$0xff] %vm320, %v1580
        %1644 = vst.msk [vmem:[%s226 + $0x158] sm:$0xff] %vm320, %v1581
        %1645 = vst.msk [vmem:[%s226 + $0x160] sm:$0xff] %vm320, %v1582
        %1646 = vst.msk [vmem:[%s226 + $0x168] sm:$0xff] %vm320, %v1583
        %1647 = vst.msk [vmem:[%s226 + $0x170] sm:$0xff] %vm320, %v1584
        %1648 = vst.msk [vmem:[%s226 + $0x178] sm:$0xff] %vm320, %v1585
        %1649 = vst.msk [vmem:[%s226 + $0x180] sm:$0xff] %vm320, %v1586
        %1650 = vst.msk [vmem:[%s226 + $0x188] sm:$0xff] %vm320, %v1587
        %1651 = vst.msk [vmem:[%s226 + $0x190] sm:$0xff] %vm320, %v1588
        %1652 = vst.msk [vmem:[%s226 + $0x198] sm:$0xff] %vm320, %v1589
        %1653 = vst.msk [vmem:[%s226 + $0x1a0] sm:$0xff] %vm320, %v1590
        %1654 = vst.msk [vmem:[%s226 + $0x1a8] sm:$0xff] %vm320, %v1591
        %1655 = vst.msk [vmem:[%s226 + $0x1b0] sm:$0xff] %vm320, %v1592
        %1656 = vst.msk [vmem:[%s226 + $0x1b8] sm:$0xff] %vm320, %v1593
        %1657 = vst.msk [vmem:[%s226 + $0x1c0] sm:$0xff] %vm320, %v1594
        %1658 = vst.msk [vmem:[%s226 + $0x1c8] sm:$0xff] %vm320, %v1595
        %1659 = vst.msk [vmem:[%s226 + $0x1d0] sm:$0xff] %vm320, %v1596
        %1660 = vst.msk [vmem:[%s226 + $0x1d8] sm:$0xff] %vm320, %v1597
        %1661 = vst.msk [vmem:[%s226 + $0x1e0] sm:$0xff] %vm320, %v1598
        %1662 = vst.msk [vmem:[%s226 + $0x1e8] sm:$0xff] %vm320, %v1599
        %1663 = vst.msk [vmem:[%s226 + $0x1f0] sm:$0xff] %vm320, %v1600
        %s1664 = sand.u32 %s134, 1
        %s1665 = sand.u32 %s134, 1
        %s1666 = smul.addr %s1665, 504
        %s1667 = scalar_lea.vmem [#allocation2], %s1666
        // Predicated region
        $region41: #{_forward_impl.2} parent=39 // pred_check
          %p1668 = pneg %p144
        $region42: #{_forward_impl.2} parent=39 // pred_check_branch
          %1670 = sbr.rel (%p1668) target = $region44
        $region43: #{_forward_impl.2} parent=39 // pred_region
          %s1671 = smul.u32 63, %s16
          %s1672 = ssub.s32 125, %s1671
          %p1673 = scmp.lt.s32.totalorder %s1672, 63
          %s1674 = scalar_select %p1673, %s1672, 63
          %s1675 = smul.u32 128, %s1674
          %p1676 = scmp.ne.s32.totalorder 0, %s1675
          %s1677 = smul.addr %s1671, 8
          %s1678 = scalar_lea.vmem %s5, %s1677
          // Predicated region
          $region45: #{_forward_impl.2} parent=43 // pred_check
            %p1679 = pneg %p1676
          $region46: #{_forward_impl.2} parent=43 // pred_check_branch
            %1681 = sbr.rel (%p1679) target = $region48
          $region47: #{_forward_impl.2} parent=43 // pred_region
            // Predicated region
            $region49: #{_forward_impl.2} parent=47 // pred_check
              _
            $region50: #{_forward_impl.2} parent=47 // pred_check_branch
              %1683 = sbr.rel (0) target = $region52
            $region51: #{_forward_impl.2} parent=47 // pred_region
              // Predicated region
              $region71: #{_forward_impl.2} parent=51 // pred_check
                _
              $region72: #{_forward_impl.2} parent=51 // pred_check_branch
                %1857 = sbr.rel (0) target = $region74
              $region73: #{_forward_impl.2} parent=51 // pred_region
                %s1858 = sdiv.u32.pop %s1674, 63
                %s1859 = srem.u32.pop %s1674, 63
                // While loop
                $region75: #{_forward_impl.2} parent=73 // loop_pre_header
                  _
                $region76: #{_forward_impl.2} parent=73 // loop_header
                  %s1861 = sphi 0, %s1863
                  %p1862 = scmp.ge.s32.totalorder %s1861, %s1858
                  %s1866 = sphi 0, %s1997
                  %s1867 = sphi %s1667, %s2000
                  %s1868 = sphi %s1678, %s2001
                $region77: #{_forward_impl.2} parent=73 // loop_header_branch
                  %1865 = sbr.rel (%p1862) target = $region81
                $region78: #{_forward_impl.2} parent=73 // loop_body
                  %v1869 = vld [vmem:[%s1867] sm:$0xff]
                  %1870 = vst [vmem:[%s1868] sm:$0xff] %v1869
                  %v1871 = vld [vmem:[%s1867 + $0x8] sm:$0xff]
                  %1872 = vst [vmem:[%s1868 + $0x8] sm:$0xff] %v1871
                  %v1873 = vld [vmem:[%s1867 + $0x10] sm:$0xff]
                  %1874 = vst [vmem:[%s1868 + $0x10] sm:$0xff] %v1873
                  %v1875 = vld [vmem:[%s1867 + $0x18] sm:$0xff]
                  %1876 = vst [vmem:[%s1868 + $0x18] sm:$0xff] %v1875
                  %v1877 = vld [vmem:[%s1867 + $0x20] sm:$0xff]
                  %1878 = vst [vmem:[%s1868 + $0x20] sm:$0xff] %v1877
                  %v1879 = vld [vmem:[%s1867 + $0x28] sm:$0xff]
                  %1880 = vst [vmem:[%s1868 + $0x28] sm:$0xff] %v1879
                  %v1881 = vld [vmem:[%s1867 + $0x30] sm:$0xff]
                  %1882 = vst [vmem:[%s1868 + $0x30] sm:$0xff] %v1881
                  %v1883 = vld [vmem:[%s1867 + $0x38] sm:$0xff]
                  %1884 = vst [vmem:[%s1868 + $0x38] sm:$0xff] %v1883
                  %v1885 = vld [vmem:[%s1867 + $0x40] sm:$0xff]
                  %1886 = vst [vmem:[%s1868 + $0x40] sm:$0xff] %v1885
                  %v1887 = vld [vmem:[%s1867 + $0x48] sm:$0xff]
                  %1888 = vst [vmem:[%s1868 + $0x48] sm:$0xff] %v1887
                  %v1889 = vld [vmem:[%s1867 + $0x50] sm:$0xff]
                  %1890 = vst [vmem:[%s1868 + $0x50] sm:$0xff] %v1889
                  %v1891 = vld [vmem:[%s1867 + $0x58] sm:$0xff]
                  %1892 = vst [vmem:[%s1868 + $0x58] sm:$0xff] %v1891
                  %v1893 = vld [vmem:[%s1867 + $0x60] sm:$0xff]
                  %1894 = vst [vmem:[%s1868 + $0x60] sm:$0xff] %v1893
                  %v1895 = vld [vmem:[%s1867 + $0x68] sm:$0xff]
                  %1896 = vst [vmem:[%s1868 + $0x68] sm:$0xff] %v1895
                  %v1897 = vld [vmem:[%s1867 + $0x70] sm:$0xff]
                  %1898 = vst [vmem:[%s1868 + $0x70] sm:$0xff] %v1897
                  %v1899 = vld [vmem:[%s1867 + $0x78] sm:$0xff]
                  %1900 = vst [vmem:[%s1868 + $0x78] sm:$0xff] %v1899
                  %v1901 = vld [vmem:[%s1867 + $0x80] sm:$0xff]
                  %1902 = vst [vmem:[%s1868 + $0x80] sm:$0xff] %v1901
                  %v1903 = vld [vmem:[%s1867 + $0x88] sm:$0xff]
                  %1904 = vst [vmem:[%s1868 + $0x88] sm:$0xff] %v1903
                  %v1905 = vld [vmem:[%s1867 + $0x90] sm:$0xff]
                  %1906 = vst [vmem:[%s1868 + $0x90] sm:$0xff] %v1905
                  %v1907 = vld [vmem:[%s1867 + $0x98] sm:$0xff]
                  %1908 = vst [vmem:[%s1868 + $0x98] sm:$0xff] %v1907
                  %v1909 = vld [vmem:[%s1867 + $0xa0] sm:$0xff]
                  %1910 = vst [vmem:[%s1868 + $0xa0] sm:$0xff] %v1909
                  %v1911 = vld [vmem:[%s1867 + $0xa8] sm:$0xff]
                  %1912 = vst [vmem:[%s1868 + $0xa8] sm:$0xff] %v1911
                  %v1913 = vld [vmem:[%s1867 + $0xb0] sm:$0xff]
                  %1914 = vst [vmem:[%s1868 + $0xb0] sm:$0xff] %v1913
                  %v1915 = vld [vmem:[%s1867 + $0xb8] sm:$0xff]
                  %1916 = vst [vmem:[%s1868 + $0xb8] sm:$0xff] %v1915
                  %v1917 = vld [vmem:[%s1867 + $0xc0] sm:$0xff]
                  %1918 = vst [vmem:[%s1868 + $0xc0] sm:$0xff] %v1917
                  %v1919 = vld [vmem:[%s1867 + $0xc8] sm:$0xff]
                  %1920 = vst [vmem:[%s1868 + $0xc8] sm:$0xff] %v1919
                  %v1921 = vld [vmem:[%s1867 + $0xd0] sm:$0xff]
                  %1922 = vst [vmem:[%s1868 + $0xd0] sm:$0xff] %v1921
                  %v1923 = vld [vmem:[%s1867 + $0xd8] sm:$0xff]
                  %1924 = vst [vmem:[%s1868 + $0xd8] sm:$0xff] %v1923
                  %v1925 = vld [vmem:[%s1867 + $0xe0] sm:$0xff]
                  %1926 = vst [vmem:[%s1868 + $0xe0] sm:$0xff] %v1925
                  %v1927 = vld [vmem:[%s1867 + $0xe8] sm:$0xff]
                  %1928 = vst [vmem:[%s1868 + $0xe8] sm:$0xff] %v1927
                  %v1929 = vld [vmem:[%s1867 + $0xf0] sm:$0xff]
                  %1930 = vst [vmem:[%s1868 + $0xf0] sm:$0xff] %v1929
                  %v1931 = vld [vmem:[%s1867 + $0xf8] sm:$0xff]
                  %1932 = vst [vmem:[%s1868 + $0xf8] sm:$0xff] %v1931
                  %v1933 = vld [vmem:[%s1867 + $0x100] sm:$0xff]
                  %1934 = vst [vmem:[%s1868 + $0x100] sm:$0xff] %v1933
                  %v1935 = vld [vmem:[%s1867 + $0x108] sm:$0xff]
                  %1936 = vst [vmem:[%s1868 + $0x108] sm:$0xff] %v1935
                  %v1937 = vld [vmem:[%s1867 + $0x110] sm:$0xff]
                  %1938 = vst [vmem:[%s1868 + $0x110] sm:$0xff] %v1937
                  %v1939 = vld [vmem:[%s1867 + $0x118] sm:$0xff]
                  %1940 = vst [vmem:[%s1868 + $0x118] sm:$0xff] %v1939
                  %v1941 = vld [vmem:[%s1867 + $0x120] sm:$0xff]
                  %1942 = vst [vmem:[%s1868 + $0x120] sm:$0xff] %v1941
                  %v1943 = vld [vmem:[%s1867 + $0x128] sm:$0xff]
                  %1944 = vst [vmem:[%s1868 + $0x128] sm:$0xff] %v1943
                  %v1945 = vld [vmem:[%s1867 + $0x130] sm:$0xff]
                  %1946 = vst [vmem:[%s1868 + $0x130] sm:$0xff] %v1945
                  %v1947 = vld [vmem:[%s1867 + $0x138] sm:$0xff]
                  %1948 = vst [vmem:[%s1868 + $0x138] sm:$0xff] %v1947
                  %v1949 = vld [vmem:[%s1867 + $0x140] sm:$0xff]
                  %1950 = vst [vmem:[%s1868 + $0x140] sm:$0xff] %v1949
                  %v1951 = vld [vmem:[%s1867 + $0x148] sm:$0xff]
                  %1952 = vst [vmem:[%s1868 + $0x148] sm:$0xff] %v1951
                  %v1953 = vld [vmem:[%s1867 + $0x150] sm:$0xff]
                  %1954 = vst [vmem:[%s1868 + $0x150] sm:$0xff] %v1953
                  %v1955 = vld [vmem:[%s1867 + $0x158] sm:$0xff]
                  %1956 = vst [vmem:[%s1868 + $0x158] sm:$0xff] %v1955
                  %v1957 = vld [vmem:[%s1867 + $0x160] sm:$0xff]
                  %1958 = vst [vmem:[%s1868 + $0x160] sm:$0xff] %v1957
                  %v1959 = vld [vmem:[%s1867 + $0x168] sm:$0xff]
                  %1960 = vst [vmem:[%s1868 + $0x168] sm:$0xff] %v1959
                  %v1961 = vld [vmem:[%s1867 + $0x170] sm:$0xff]
                  %1962 = vst [vmem:[%s1868 + $0x170] sm:$0xff] %v1961
                  %v1963 = vld [vmem:[%s1867 + $0x178] sm:$0xff]
                  %1964 = vst [vmem:[%s1868 + $0x178] sm:$0xff] %v1963
                  %v1965 = vld [vmem:[%s1867 + $0x180] sm:$0xff]
                  %1966 = vst [vmem:[%s1868 + $0x180] sm:$0xff] %v1965
                  %v1967 = vld [vmem:[%s1867 + $0x188] sm:$0xff]
                  %1968 = vst [vmem:[%s1868 + $0x188] sm:$0xff] %v1967
                  %v1969 = vld [vmem:[%s1867 + $0x190] sm:$0xff]
                  %1970 = vst [vmem:[%s1868 + $0x190] sm:$0xff] %v1969
                  %v1971 = vld [vmem:[%s1867 + $0x198] sm:$0xff]
                  %1972 = vst [vmem:[%s1868 + $0x198] sm:$0xff] %v1971
                  %v1973 = vld [vmem:[%s1867 + $0x1a0] sm:$0xff]
                  %1974 = vst [vmem:[%s1868 + $0x1a0] sm:$0xff] %v1973
                  %v1975 = vld [vmem:[%s1867 + $0x1a8] sm:$0xff]
                  %1976 = vst [vmem:[%s1868 + $0x1a8] sm:$0xff] %v1975
                  %v1977 = vld [vmem:[%s1867 + $0x1b0] sm:$0xff]
                  %1978 = vst [vmem:[%s1868 + $0x1b0] sm:$0xff] %v1977
                  %v1979 = vld [vmem:[%s1867 + $0x1b8] sm:$0xff]
                  %1980 = vst [vmem:[%s1868 + $0x1b8] sm:$0xff] %v1979
                  %v1981 = vld [vmem:[%s1867 + $0x1c0] sm:$0xff]
                  %1982 = vst [vmem:[%s1868 + $0x1c0] sm:$0xff] %v1981
                  %v1983 = vld [vmem:[%s1867 + $0x1c8] sm:$0xff]
                  %1984 = vst [vmem:[%s1868 + $0x1c8] sm:$0xff] %v1983
                  %v1985 = vld [vmem:[%s1867 + $0x1d0] sm:$0xff]
                  %1986 = vst [vmem:[%s1868 + $0x1d0] sm:$0xff] %v1985
                  %v1987 = vld [vmem:[%s1867 + $0x1d8] sm:$0xff]
                  %1988 = vst [vmem:[%s1868 + $0x1d8] sm:$0xff] %v1987
                  %v1989 = vld [vmem:[%s1867 + $0x1e0] sm:$0xff]
                  %1990 = vst [vmem:[%s1868 + $0x1e0] sm:$0xff] %v1989
                  %v1991 = vld [vmem:[%s1867 + $0x1e8] sm:$0xff]
                  %1992 = vst [vmem:[%s1868 + $0x1e8] sm:$0xff] %v1991
                  %v1993 = vld [vmem:[%s1867 + $0x1f0] sm:$0xff]
                  %1994 = vst [vmem:[%s1868 + $0x1f0] sm:$0xff] %v1993
                  %s1995 = sadd.s32 1, %s1866
                  %p1996 = scmp.ge.s32.totalorder %s1995, %s1858
                  %s1997 = scalar_select %p1996, 0, %s1995
                  %s1998 = smul.u32 %s1997, 504
                  %s1999 = smul.u32 %s1997, 504
                  %s2000 = scalar_lea.vmem %s1667, %s1998 [#allocation2]
                  %s2001 = scalar_lea.vmem %s1678, %s1999
                $region79: #{_forward_impl.2} parent=73 // loop_footer
                  %s1863 = sadd.s32 %s1861, 1
                $region80: #{_forward_impl.2} parent=73 // loop_footer_branch
                  %1860 = sbr.rel target = $region76
                $region81: #{_forward_impl.2} parent=73 // loop_exit
                  _
                %s2002 = sdiv.u32.pop %s1674, 63
                %s2003 = srem.u32.pop %s1674, 63
                %s2004 = smul.u32 %s2002, 63
                %s2005 = smul.u32 8, %s2004
                %s2006 = scalar_lea.vmem %s1667, %s2005 [#allocation2]
                %s2007 = smul.u32 8, %s2004
                %s2008 = scalar_lea.vmem %s1678, %s2007
                // While loop
                $region82: #{_forward_impl.2} parent=73 // loop_pre_header
                  _
                $region83: #{_forward_impl.2} parent=73 // loop_header
                  %s2010 = sphi 0, %s2012
                  %p2011 = scmp.ge.s32.totalorder %s2010, %s2003
                  %s2015 = sphi 0, %s2022
                  %s2016 = sphi %s2006, %s2025
                  %s2017 = sphi %s2008, %s2026
                $region84: #{_forward_impl.2} parent=73 // loop_header_branch
                  %2014 = sbr.rel (%p2011) target = $region88
                $region85: #{_forward_impl.2} parent=73 // loop_body
                  %v2018 = vld [vmem:[%s2016] sm:$0xff]
                  %2019 = vst [vmem:[%s2017] sm:$0xff] %v2018
                  %s2020 = sadd.s32 1, %s2015
                  %p2021 = scmp.ge.s32.totalorder %s2020, %s2003
                  %s2022 = scalar_select %p2021, 0, %s2020
                  %s2023 = smul.u32 %s2022, 8
                  %s2024 = smul.u32 %s2022, 8
                  %s2025 = scalar_lea.vmem %s2006, %s2023 [#allocation2]
                  %s2026 = scalar_lea.vmem %s2008, %s2024
                $region86: #{_forward_impl.2} parent=73 // loop_footer
                  %s2012 = sadd.s32 %s2010, 1
                $region87: #{_forward_impl.2} parent=73 // loop_footer_branch
                  %2009 = sbr.rel target = $region83
                $region88: #{_forward_impl.2} parent=73 // loop_exit
                  _
              $region74: #{_forward_impl.2} parent=51 // pred_fallthru
                _
              // Predicated region
              $region89: #{_forward_impl.2} parent=51 // pred_check
                _
              $region90: #{_forward_impl.2} parent=51 // pred_check_branch
                %2028 = sbr.rel target = $region92
              $region91: #{_forward_impl.2} parent=51 // pred_region
                _
              $region92: #{_forward_impl.2} parent=51 // pred_fallthru
                _
            $region52: #{_forward_impl.2} parent=47 // pred_fallthru
              _
            // Predicated region
            $region53: #{_forward_impl.2} parent=47 // pred_check
              _
            $region54: #{_forward_impl.2} parent=47 // pred_check_branch
              %1685 = sbr.rel target = $region56
            $region55: #{_forward_impl.2} parent=47 // pred_region
              %s1687 = sdiv.u32.pop %s1674, 63
              %s1688 = srem.u32.pop %s1674, 63
              // While loop
              $region57: #{_forward_impl.2} parent=55 // loop_pre_header
                _
              $region58: #{_forward_impl.2} parent=55 // loop_header
                %s1690 = sphi 0, %s1692
                %p1691 = scmp.ge.s32.totalorder %s1690, %s1687
                %s1695 = sphi 0, %s1826
                %s1696 = sphi %s1667, %s1829
                %s1697 = sphi %s1678, %s1830
              $region59: #{_forward_impl.2} parent=55 // loop_header_branch
                %1694 = sbr.rel (%p1691) target = $region63
              $region60: #{_forward_impl.2} parent=55 // loop_body
                %v1698 = vld [vmem:[%s1696] sm:$0xff]
                %1699 = vst [vmem:[%s1697] sm:$0xff] %v1698
                %v1700 = vld [vmem:[%s1696 + $0x8] sm:$0xff]
                %1701 = vst [vmem:[%s1697 + $0x8] sm:$0xff] %v1700
                %v1702 = vld [vmem:[%s1696 + $0x10] sm:$0xff]
                %1703 = vst [vmem:[%s1697 + $0x10] sm:$0xff] %v1702
                %v1704 = vld [vmem:[%s1696 + $0x18] sm:$0xff]
                %1705 = vst [vmem:[%s1697 + $0x18] sm:$0xff] %v1704
                %v1706 = vld [vmem:[%s1696 + $0x20] sm:$0xff]
                %1707 = vst [vmem:[%s1697 + $0x20] sm:$0xff] %v1706
                %v1708 = vld [vmem:[%s1696 + $0x28] sm:$0xff]
                %1709 = vst [vmem:[%s1697 + $0x28] sm:$0xff] %v1708
                %v1710 = vld [vmem:[%s1696 + $0x30] sm:$0xff]
                %1711 = vst [vmem:[%s1697 + $0x30] sm:$0xff] %v1710
                %v1712 = vld [vmem:[%s1696 + $0x38] sm:$0xff]
                %1713 = vst [vmem:[%s1697 + $0x38] sm:$0xff] %v1712
                %v1714 = vld [vmem:[%s1696 + $0x40] sm:$0xff]
                %1715 = vst [vmem:[%s1697 + $0x40] sm:$0xff] %v1714
                %v1716 = vld [vmem:[%s1696 + $0x48] sm:$0xff]
                %1717 = vst [vmem:[%s1697 + $0x48] sm:$0xff] %v1716
                %v1718 = vld [vmem:[%s1696 + $0x50] sm:$0xff]
                %1719 = vst [vmem:[%s1697 + $0x50] sm:$0xff] %v1718
                %v1720 = vld [vmem:[%s1696 + $0x58] sm:$0xff]
                %1721 = vst [vmem:[%s1697 + $0x58] sm:$0xff] %v1720
                %v1722 = vld [vmem:[%s1696 + $0x60] sm:$0xff]
                %1723 = vst [vmem:[%s1697 + $0x60] sm:$0xff] %v1722
                %v1724 = vld [vmem:[%s1696 + $0x68] sm:$0xff]
                %1725 = vst [vmem:[%s1697 + $0x68] sm:$0xff] %v1724
                %v1726 = vld [vmem:[%s1696 + $0x70] sm:$0xff]
                %1727 = vst [vmem:[%s1697 + $0x70] sm:$0xff] %v1726
                %v1728 = vld [vmem:[%s1696 + $0x78] sm:$0xff]
                %1729 = vst [vmem:[%s1697 + $0x78] sm:$0xff] %v1728
                %v1730 = vld [vmem:[%s1696 + $0x80] sm:$0xff]
                %1731 = vst [vmem:[%s1697 + $0x80] sm:$0xff] %v1730
                %v1732 = vld [vmem:[%s1696 + $0x88] sm:$0xff]
                %1733 = vst [vmem:[%s1697 + $0x88] sm:$0xff] %v1732
                %v1734 = vld [vmem:[%s1696 + $0x90] sm:$0xff]
                %1735 = vst [vmem:[%s1697 + $0x90] sm:$0xff] %v1734
                %v1736 = vld [vmem:[%s1696 + $0x98] sm:$0xff]
                %1737 = vst [vmem:[%s1697 + $0x98] sm:$0xff] %v1736
                %v1738 = vld [vmem:[%s1696 + $0xa0] sm:$0xff]
                %1739 = vst [vmem:[%s1697 + $0xa0] sm:$0xff] %v1738
                %v1740 = vld [vmem:[%s1696 + $0xa8] sm:$0xff]
                %1741 = vst [vmem:[%s1697 + $0xa8] sm:$0xff] %v1740
                %v1742 = vld [vmem:[%s1696 + $0xb0] sm:$0xff]
                %1743 = vst [vmem:[%s1697 + $0xb0] sm:$0xff] %v1742
                %v1744 = vld [vmem:[%s1696 + $0xb8] sm:$0xff]
                %1745 = vst [vmem:[%s1697 + $0xb8] sm:$0xff] %v1744
                %v1746 = vld [vmem:[%s1696 + $0xc0] sm:$0xff]
                %1747 = vst [vmem:[%s1697 + $0xc0] sm:$0xff] %v1746
                %v1748 = vld [vmem:[%s1696 + $0xc8] sm:$0xff]
                %1749 = vst [vmem:[%s1697 + $0xc8] sm:$0xff] %v1748
                %v1750 = vld [vmem:[%s1696 + $0xd0] sm:$0xff]
                %1751 = vst [vmem:[%s1697 + $0xd0] sm:$0xff] %v1750
                %v1752 = vld [vmem:[%s1696 + $0xd8] sm:$0xff]
                %1753 = vst [vmem:[%s1697 + $0xd8] sm:$0xff] %v1752
                %v1754 = vld [vmem:[%s1696 + $0xe0] sm:$0xff]
                %1755 = vst [vmem:[%s1697 + $0xe0] sm:$0xff] %v1754
                %v1756 = vld [vmem:[%s1696 + $0xe8] sm:$0xff]
                %1757 = vst [vmem:[%s1697 + $0xe8] sm:$0xff] %v1756
                %v1758 = vld [vmem:[%s1696 + $0xf0] sm:$0xff]
                %1759 = vst [vmem:[%s1697 + $0xf0] sm:$0xff] %v1758
                %v1760 = vld [vmem:[%s1696 + $0xf8] sm:$0xff]
                %1761 = vst [vmem:[%s1697 + $0xf8] sm:$0xff] %v1760
                %v1762 = vld [vmem:[%s1696 + $0x100] sm:$0xff]
                %1763 = vst [vmem:[%s1697 + $0x100] sm:$0xff] %v1762
                %v1764 = vld [vmem:[%s1696 + $0x108] sm:$0xff]
                %1765 = vst [vmem:[%s1697 + $0x108] sm:$0xff] %v1764
                %v1766 = vld [vmem:[%s1696 + $0x110] sm:$0xff]
                %1767 = vst [vmem:[%s1697 + $0x110] sm:$0xff] %v1766
                %v1768 = vld [vmem:[%s1696 + $0x118] sm:$0xff]
                %1769 = vst [vmem:[%s1697 + $0x118] sm:$0xff] %v1768
                %v1770 = vld [vmem:[%s1696 + $0x120] sm:$0xff]
                %1771 = vst [vmem:[%s1697 + $0x120] sm:$0xff] %v1770
                %v1772 = vld [vmem:[%s1696 + $0x128] sm:$0xff]
                %1773 = vst [vmem:[%s1697 + $0x128] sm:$0xff] %v1772
                %v1774 = vld [vmem:[%s1696 + $0x130] sm:$0xff]
                %1775 = vst [vmem:[%s1697 + $0x130] sm:$0xff] %v1774
                %v1776 = vld [vmem:[%s1696 + $0x138] sm:$0xff]
                %1777 = vst [vmem:[%s1697 + $0x138] sm:$0xff] %v1776
                %v1778 = vld [vmem:[%s1696 + $0x140] sm:$0xff]
                %1779 = vst [vmem:[%s1697 + $0x140] sm:$0xff] %v1778
                %v1780 = vld [vmem:[%s1696 + $0x148] sm:$0xff]
                %1781 = vst [vmem:[%s1697 + $0x148] sm:$0xff] %v1780
                %v1782 = vld [vmem:[%s1696 + $0x150] sm:$0xff]
                %1783 = vst [vmem:[%s1697 + $0x150] sm:$0xff] %v1782
                %v1784 = vld [vmem:[%s1696 + $0x158] sm:$0xff]
                %1785 = vst [vmem:[%s1697 + $0x158] sm:$0xff] %v1784
                %v1786 = vld [vmem:[%s1696 + $0x160] sm:$0xff]
                %1787 = vst [vmem:[%s1697 + $0x160] sm:$0xff] %v1786
                %v1788 = vld [vmem:[%s1696 + $0x168] sm:$0xff]
                %1789 = vst [vmem:[%s1697 + $0x168] sm:$0xff] %v1788
                %v1790 = vld [vmem:[%s1696 + $0x170] sm:$0xff]
                %1791 = vst [vmem:[%s1697 + $0x170] sm:$0xff] %v1790
                %v1792 = vld [vmem:[%s1696 + $0x178] sm:$0xff]
                %1793 = vst [vmem:[%s1697 + $0x178] sm:$0xff] %v1792
                %v1794 = vld [vmem:[%s1696 + $0x180] sm:$0xff]
                %1795 = vst [vmem:[%s1697 + $0x180] sm:$0xff] %v1794
                %v1796 = vld [vmem:[%s1696 + $0x188] sm:$0xff]
                %1797 = vst [vmem:[%s1697 + $0x188] sm:$0xff] %v1796
                %v1798 = vld [vmem:[%s1696 + $0x190] sm:$0xff]
                %1799 = vst [vmem:[%s1697 + $0x190] sm:$0xff] %v1798
                %v1800 = vld [vmem:[%s1696 + $0x198] sm:$0xff]
                %1801 = vst [vmem:[%s1697 + $0x198] sm:$0xff] %v1800
                %v1802 = vld [vmem:[%s1696 + $0x1a0] sm:$0xff]
                %1803 = vst [vmem:[%s1697 + $0x1a0] sm:$0xff] %v1802
                %v1804 = vld [vmem:[%s1696 + $0x1a8] sm:$0xff]
                %1805 = vst [vmem:[%s1697 + $0x1a8] sm:$0xff] %v1804
                %v1806 = vld [vmem:[%s1696 + $0x1b0] sm:$0xff]
                %1807 = vst [vmem:[%s1697 + $0x1b0] sm:$0xff] %v1806
                %v1808 = vld [vmem:[%s1696 + $0x1b8] sm:$0xff]
                %1809 = vst [vmem:[%s1697 + $0x1b8] sm:$0xff] %v1808
                %v1810 = vld [vmem:[%s1696 + $0x1c0] sm:$0xff]
                %1811 = vst [vmem:[%s1697 + $0x1c0] sm:$0xff] %v1810
                %v1812 = vld [vmem:[%s1696 + $0x1c8] sm:$0xff]
                %1813 = vst [vmem:[%s1697 + $0x1c8] sm:$0xff] %v1812
                %v1814 = vld [vmem:[%s1696 + $0x1d0] sm:$0xff]
                %1815 = vst [vmem:[%s1697 + $0x1d0] sm:$0xff] %v1814
                %v1816 = vld [vmem:[%s1696 + $0x1d8] sm:$0xff]
                %1817 = vst [vmem:[%s1697 + $0x1d8] sm:$0xff] %v1816
                %v1818 = vld [vmem:[%s1696 + $0x1e0] sm:$0xff]
                %1819 = vst [vmem:[%s1697 + $0x1e0] sm:$0xff] %v1818
                %v1820 = vld [vmem:[%s1696 + $0x1e8] sm:$0xff]
                %1821 = vst [vmem:[%s1697 + $0x1e8] sm:$0xff] %v1820
                %v1822 = vld [vmem:[%s1696 + $0x1f0] sm:$0xff]
                %1823 = vst [vmem:[%s1697 + $0x1f0] sm:$0xff] %v1822
                %s1824 = sadd.s32 1, %s1695
                %p1825 = scmp.ge.s32.totalorder %s1824, %s1687
                %s1826 = scalar_select %p1825, 0, %s1824
                %s1827 = smul.u32 %s1826, 504
                %s1828 = smul.u32 %s1826, 504
                %s1829 = scalar_lea.vmem %s1667, %s1827 [#allocation2]
                %s1830 = scalar_lea.vmem %s1678, %s1828
              $region61: #{_forward_impl.2} parent=55 // loop_footer
                %s1692 = sadd.s32 %s1690, 1
              $region62: #{_forward_impl.2} parent=55 // loop_footer_branch
                %1689 = sbr.rel target = $region58
              $region63: #{_forward_impl.2} parent=55 // loop_exit
                _
              %s1831 = sdiv.u32.pop %s1674, 63
              %s1832 = srem.u32.pop %s1674, 63
              %s1833 = smul.u32 %s1831, 63
              %s1834 = smul.u32 8, %s1833
              %s1835 = scalar_lea.vmem %s1667, %s1834 [#allocation2]
              %s1836 = smul.u32 8, %s1833
              %s1837 = scalar_lea.vmem %s1678, %s1836
              // While loop
              $region64: #{_forward_impl.2} parent=55 // loop_pre_header
                _
              $region65: #{_forward_impl.2} parent=55 // loop_header
                %s1839 = sphi 0, %s1841
                %p1840 = scmp.ge.s32.totalorder %s1839, %s1832
                %s1844 = sphi 0, %s1851
                %s1845 = sphi %s1835, %s1854
                %s1846 = sphi %s1837, %s1855
              $region66: #{_forward_impl.2} parent=55 // loop_header_branch
                %1843 = sbr.rel (%p1840) target = $region70
              $region67: #{_forward_impl.2} parent=55 // loop_body
                %v1847 = vld [vmem:[%s1845] sm:$0xff]
                %1848 = vst [vmem:[%s1846] sm:$0xff] %v1847
                %s1849 = sadd.s32 1, %s1844
                %p1850 = scmp.ge.s32.totalorder %s1849, %s1832
                %s1851 = scalar_select %p1850, 0, %s1849
                %s1852 = smul.u32 %s1851, 8
                %s1853 = smul.u32 %s1851, 8
                %s1854 = scalar_lea.vmem %s1835, %s1852 [#allocation2]
                %s1855 = scalar_lea.vmem %s1837, %s1853
              $region68: #{_forward_impl.2} parent=55 // loop_footer
                %s1841 = sadd.s32 %s1839, 1
              $region69: #{_forward_impl.2} parent=55 // loop_footer_branch
                %1838 = sbr.rel target = $region65
              $region70: #{_forward_impl.2} parent=55 // loop_exit
                _
            $region56: #{_forward_impl.2} parent=47 // pred_fallthru
              _
          $region48: #{_forward_impl.2} parent=43 // pred_fallthru
            _
          %2029 = vnop
        $region44: #{_forward_impl.2} parent=39 // pred_fallthru
          _
      $region40: #{_forward_impl.2} parent=5 // pred_fallthru
        _
      %p2030 = scmp.le.s32.totalorder 2, %s11
      // Predicated region
      $region93: #{_forward_impl.2} parent=5 // pred_check
        %p2031 = pneg %p2030
      $region94: #{_forward_impl.2} parent=5 // pred_check_branch
        %2033 = sbr.rel (%p2031) target = $region96
      $region95: #{_forward_impl.2} parent=5 // pred_region
        %s2034 = ssub.s32 %s11, 2
        // Predicated region
        $region97: #{_forward_impl.2} parent=95 // pred_check
          %p2035 = pneg %p150
        $region98: #{_forward_impl.2} parent=95 // pred_check_branch
          %2037 = sbr.rel (%p2035) target = $region100
        $region99: #{_forward_impl.2} parent=95 // pred_region
          %s2038 = sand.u32 %s135, 1
          %s2039 = sand.u32 %s135, 1
          %s2040 = smul.addr %s2039, 504
          %s2041 = scalar_lea.vmem [#allocation2], %s2040
        $region100: #{_forward_impl.2} parent=95 // pred_fallthru
          _
      $region96: #{_forward_impl.2} parent=5 // pred_fallthru
        _
    $region6: #{_forward_impl.2} parent=1 // loop_footer
      %s15 = sadd.s32 1, %s11
    $region7: #{_forward_impl.2} parent=1 // loop_footer_branch
      %10 = sbr.rel target = $region3
    $region8: #{_forward_impl.2} parent=1 // loop_exit
      _

// kernel: _forward_impl.3
$region0: #{_forward_impl.3}
  #allocation0 [shape = 'u32[]', space=smem, size = 0x4, offset = 0x4, fixed_abs, tag = 'smem constant byte address 0x4 - core index']
  #allocation1 [shape = 'u32[144,128]{1,0:T(1,128)}', space=vmem, size = 0x12000, scoped, tag = 'internal scratch']
  %s0 = inlined_call_operand.vmem [shape: f32[2500,16], index: 0, kind: input, shape index: {}]
  %s1 = inlined_call_operand.vmem [shape: f32[16,32], index: 1, kind: input, shape index: {}]
  %s2 = inlined_call_operand.vmem [shape: f32[32,16], index: 2, kind: input, shape index: {}]
  %s3 = inlined_call_operand.vmem [shape: f32[1,32], index: 3, kind: input, shape index: {}]
  %s4 = inlined_call_operand.vmem [shape: f32[1,16], index: 4, kind: input, shape index: {}]
  %s5 = inlined_call_operand.vmem [shape: f32[2500,16], index: 5, kind: output, shape index: {}]
  %s6 = sld [smem:[#allocation0]]
  $region101: #{_forward_impl.3} parent=0
    _
  %s8 = ssub.s32 1, %s6
  %s9 = scalar_select 0, %s8, %s6
  $region1: #{_forward_impl.3} parent=0
    #allocation2 [shape = 'u8[1048576]{0}', space=vmem, size = 0x100000, scoped, tag = 'output window, operand 0']
    loop: start=0, step=1, limit=5
    $region2: #{_forward_impl.3} parent=1 // loop_pre_header
      _
    $region3: #{_forward_impl.3} parent=1 // loop_header
      %s11 = sphi 0, %s15
      %p12 = scmp.ge.s32.totalorder %s11, 5
      %s21 = sphi 0, %s23
      %s24 = sphi 0, %s21
      %s25 = sphi 0, %s24
      %s41 = sphi 0, %s25
      %s45 = sphi 0, %s45
      %s47 = sphi 0, %s45
      %s48 = sphi 0, %s47
      %s62 = sphi 0, %s48
      %s66 = sphi 0, %s66
      %s68 = sphi 0, %s66
      %s69 = sphi 0, %s68
      %s83 = sphi 0, %s69
      %s87 = sphi 0, %s87
      %s89 = sphi 0, %s87
      %s90 = sphi 0, %s89
      %s104 = sphi 0, %s90
      %s108 = sphi 0, %s108
      %s110 = sphi 0, %s108
      %s111 = sphi 0, %s110
      %s125 = sphi 0, %s111
      %s131 = sphi 0, %s133
      %s134 = sphi 0, %s131
      %s135 = sphi 0, %s134
      %s151 = sphi 0, %s135
    $region4: #{_forward_impl.3} parent=1 // loop_header_branch
      %14 = sbr.rel (%p12) target = $region8
    $region5: #{_forward_impl.3} parent=1 // loop_body
      %s16 = ssub.s32 %s11, 1
      %s17 = ssub.s32 %s11, 2
      %s18 = sadd.s32 %s11, 1
      %s19 = ssub.s32 %s11, %s18
      %p20 = scmp.eq.s32.totalorder %s19, 0
      %s22 = sadd.s32 %s21, 1
      %s23 = scalar_select %p20, %s21, %s22
      %p26 = pneg %p20
      %p27 = scmp.eq.s32.totalorder %s11, 2
      %p28 = por %p26, %p27
      %p29 = scmp.ne.s32.totalorder %s21, %s24
      %p30 = scmp.eq.s32.totalorder %s11, 0
      %p31 = por %p29, %p30
      %p32 = scmp.ne.s32.totalorder %s21, %s24
      %p33 = scmp.eq.s32.totalorder %s16, 2
      %p34 = por %p32, %p33
      %p35 = scmp.ne.s32.totalorder %s24, %s25
      %p36 = scmp.eq.s32.totalorder %s16, 0
      %p37 = por %p35, %p36
      %p38 = scmp.ne.s32.totalorder %s24, %s25
      %p39 = scmp.eq.s32.totalorder %s17, 2
      %p40 = por %p38, %p39
      %p42 = scmp.ne.s32.totalorder %s25, %s41
      %p43 = scmp.eq.s32.totalorder %s17, 0
      %p44 = por %p42, %p43
      %s46 = sadd.s32 %s45, 1
      %p49 = scmp.eq.s32.totalorder %s11, 2
      %p50 = scmp.ne.s32.totalorder %s45, %s47
      %p51 = scmp.eq.s32.totalorder %s11, 0
      %p52 = por %p50, %p51
      %p53 = scmp.ne.s32.totalorder %s45, %s47
      %p54 = scmp.eq.s32.totalorder %s16, 2
      %p55 = por %p53, %p54
      %p56 = scmp.ne.s32.totalorder %s47, %s48
      %p57 = scmp.eq.s32.totalorder %s16, 0
      %p58 = por %p56, %p57
      %p59 = scmp.ne.s32.totalorder %s47, %s48
      %p60 = scmp.eq.s32.totalorder %s17, 2
      %p61 = por %p59, %p60
      %p63 = scmp.ne.s32.totalorder %s48, %s62
      %p64 = scmp.eq.s32.totalorder %s17, 0
      %p65 = por %p63, %p64
      %s67 = sadd.s32 %s66, 1
      %p70 = scmp.eq.s32.totalorder %s11, 2
      %p71 = scmp.ne.s32.totalorder %s66, %s68
      %p72 = scmp.eq.s32.totalorder %s11, 0
      %p73 = por %p71, %p72
      %p74 = scmp.ne.s32.totalorder %s66, %s68
      %p75 = scmp.eq.s32.totalorder %s16, 2
      %p76 = por %p74, %p75
      %p77 = scmp.ne.s32.totalorder %s68, %s69
      %p78 = scmp.eq.s32.totalorder %s16, 0
      %p79 = por %p77, %p78
      %p80 = scmp.ne.s32.totalorder %s68, %s69
      %p81 = scmp.eq.s32.totalorder %s17, 2
      %p82 = por %p80, %p81
      %p84 = scmp.ne.s32.totalorder %s69, %s83
      %p85 = scmp.eq.s32.totalorder %s17, 0
      %p86 = por %p84, %p85
      %s88 = sadd.s32 %s87, 1
      %p91 = scmp.eq.s32.totalorder %s11, 2
      %p92 = scmp.ne.s32.totalorder %s87, %s89
      %p93 = scmp.eq.s32.totalorder %s11, 0
      %p94 = por %p92, %p93
      %p95 = scmp.ne.s32.totalorder %s87, %s89
      %p96 = scmp.eq.s32.totalorder %s16, 2
      %p97 = por %p95, %p96
      %p98 = scmp.ne.s32.totalorder %s89, %s90
      %p99 = scmp.eq.s32.totalorder %s16, 0
      %p100 = por %p98, %p99
      %p101 = scmp.ne.s32.totalorder %s89, %s90
      %p102 = scmp.eq.s32.totalorder %s17, 2
      %p103 = por %p101, %p102
      %p105 = scmp.ne.s32.totalorder %s90, %s104
      %p106 = scmp.eq.s32.totalorder %s17, 0
      %p107 = por %p105, %p106
      %s109 = sadd.s32 %s108, 1
      %p112 = scmp.eq.s32.totalorder %s11, 2
      %p113 = scmp.ne.s32.totalorder %s108, %s110
      %p114 = scmp.eq.s32.totalorder %s11, 0
      %p115 = por %p113, %p114
      %p116 = scmp.ne.s32.totalorder %s108, %s110
      %p117 = scmp.eq.s32.totalorder %s16, 2
      %p118 = por %p116, %p117
      %p119 = scmp.ne.s32.totalorder %s110, %s111
      %p120 = scmp.eq.s32.totalorder %s16, 0
      %p121 = por %p119, %p120
      %p122 = scmp.ne.s32.totalorder %s110, %s111
      %p123 = scmp.eq.s32.totalorder %s17, 2
      %p124 = por %p122, %p123
      %p126 = scmp.ne.s32.totalorder %s111, %s125
      %p127 = scmp.eq.s32.totalorder %s17, 0
      %p128 = por %p126, %p127
      %s129 = ssub.s32 %s11, %s18
      %p130 = scmp.eq.s32.totalorder %s129, 0
      %s132 = sadd.s32 %s131, 1
      %s133 = scalar_select %p130, %s131, %s132
      %p136 = pneg %p130
      %p137 = scmp.eq.s32.totalorder %s11, 2
      %p138 = por %p136, %p137
      %p139 = scmp.ne.s32.totalorder %s131, %s134
      %p140 = scmp.eq.s32.totalorder %s11, 0
      %p141 = por %p139, %p140
      %p142 = scmp.ne.s32.totalorder %s131, %s134
      %p143 = scmp.eq.s32.totalorder %s16, 2
      %p144 = por %p142, %p143
      %p145 = scmp.ne.s32.totalorder %s134, %s135
      %p146 = scmp.eq.s32.totalorder %s16, 0
      %p147 = por %p145, %p146
      %p148 = scmp.ne.s32.totalorder %s134, %s135
      %p149 = scmp.eq.s32.totalorder %s17, 2
      %p150 = por %p148, %p149
      %p152 = scmp.ne.s32.totalorder %s135, %s151
      %p153 = scmp.eq.s32.totalorder %s17, 0
      %p154 = por %p152, %p153
      %p155 = scmp.le.s32.totalorder 1, %s11
      %p156 = scmp.lt.s32.totalorder %s11, 4
      %p157 = pnand %p155, %p156
      %p158 = pneg %p157
      // Predicated region
      $region9: #{_forward_impl.3} parent=5 // pred_check
        _
      $region10: #{_forward_impl.3} parent=5 // pred_check_branch
        %160 = sbr.rel (%p157) target = $region12
      $region11: #{_forward_impl.3} parent=5 // pred_region
        %s161 = ssub.s32 %s11, 1
        // Predicated region
        $region13: #{_forward_impl.3} parent=11 // pred_check
          %p162 = pneg %p58
        $region14: #{_forward_impl.3} parent=11 // pred_check_branch
          %164 = sbr.rel (%p162) target = $region16
        $region15: #{_forward_impl.3} parent=11 // pred_region
          _
        $region16: #{_forward_impl.3} parent=11 // pred_fallthru
          _
        // Predicated region
        $region17: #{_forward_impl.3} parent=11 // pred_check
          %p165 = pneg %p79
        $region18: #{_forward_impl.3} parent=11 // pred_check_branch
          %167 = sbr.rel (%p165) target = $region20
        $region19: #{_forward_impl.3} parent=11 // pred_region
          _
        $region20: #{_forward_impl.3} parent=11 // pred_fallthru
          _
        // Predicated region
        $region21: #{_forward_impl.3} parent=11 // pred_check
          %p168 = pneg %p100
        $region22: #{_forward_impl.3} parent=11 // pred_check_branch
          %170 = sbr.rel (%p168) target = $region24
        $region23: #{_forward_impl.3} parent=11 // pred_region
          _
        $region24: #{_forward_impl.3} parent=11 // pred_fallthru
          _
        // Predicated region
        $region25: #{_forward_impl.3} parent=11 // pred_check
          %p171 = pneg %p121
        $region26: #{_forward_impl.3} parent=11 // pred_check_branch
          %173 = sbr.rel (%p171) target = $region28
        $region27: #{_forward_impl.3} parent=11 // pred_region
          _
        $region28: #{_forward_impl.3} parent=11 // pred_fallthru
          _
      $region12: #{_forward_impl.3} parent=5 // pred_fallthru
        _
      %p174 = scmp.lt.s32.totalorder %s11, 3
      // Predicated region
      $region29: #{_forward_impl.3} parent=5 // pred_check
        %p175 = pneg %p174
      $region30: #{_forward_impl.3} parent=5 // pred_check_branch
        %177 = sbr.rel (%p175) target = $region32
      $region31: #{_forward_impl.3} parent=5 // pred_region
        // Predicated region
        $region33: #{_forward_impl.3} parent=31 // pred_check
          %p178 = pneg %p31
        $region34: #{_forward_impl.3} parent=31 // pred_check_branch
          %180 = sbr.rel (%p178) target = $region36
        $region35: #{_forward_impl.3} parent=31 // pred_region
          %s181 = smul.u32 128, %s11
          %s182 = ssub.s32 313, %s181
          %p183 = scmp.lt.s32.totalorder %s182, 128
          %s184 = scalar_select %p183, %s182, 128
          %s185 = smul.u32 128, %s184
          %p186 = scmp.lt.s32.totalorder %s181, 312
          %s187 = scalar_select %p186, %s181, 312
          %s188 = smul.addr %s187, 8
          %s189 = scalar_lea.vmem %s0, %s188
          %s190 = smul.u32 128, %s11
          %s191 = ssub.s32 313, %s190
          %p192 = scmp.lt.s32.totalorder %s191, 128
          %s193 = scalar_select %p192, %s191, 128
          %s194 = smul.u32 128, %s193
        $region36: #{_forward_impl.3} parent=31 // pred_fallthru
          _
      $region32: #{_forward_impl.3} parent=5 // pred_fallthru
        _
      %p195 = scmp.le.s32.totalorder 1, %s11
      %p196 = scmp.lt.s32.totalorder %s11, 4
      %p197 = pnand %p195, %p196
      %p198 = pneg %p197
      // Predicated region
      $region37: #{_forward_impl.3} parent=5 // pred_check
        _
      $region38: #{_forward_impl.3} parent=5 // pred_check_branch
        %200 = sbr.rel (%p197) target = $region40
      $region39: #{_forward_impl.3} parent=5 // pred_region
        %s201 = ssub.s32 %s11, 1
        %s202 = smul.u32 128, %s16
        %s203 = ssub.s32 313, %s202
        %p204 = scmp.lt.s32.totalorder %s203, 128
        %s205 = scalar_select %p204, %s203, 128
        %s206 = smul.u32 128, %s205
        %p207 = scmp.lt.s32.totalorder %s202, 312
        %s208 = scalar_select %p207, %s202, 312
        %s209 = smul.addr %s208, 8
        %s210 = scalar_lea.vmem %s0, %s209
        %p211 = pneg %p37
        %p212 = pneg %p34
        %p213 = pneg %p58
        %p214 = pneg %p55
        %p215 = pneg %p79
        %p216 = pneg %p76
        %p217 = pneg %p100
        %p218 = pneg %p97
        %p219 = pneg %p121
        %p220 = pneg %p118
        %p221 = pneg %p147
        %p222 = pneg %p144
        %s223 = sand.u32 %s134, 1
        %s224 = sand.u32 %s134, 1
        %s225 = smul.addr %s224, 1024
        %s226 = scalar_lea.vmem [#allocation2], %s225
        %s227 = smul.u32 128, %s16
        %s228 = ssub.s32 313, %s227
        %p229 = scmp.lt.s32.totalorder %s228, 128
        %s230 = scalar_select %p229, %s228, 128
        %s231 = smul.u32 128, %s230
        %p232 = scmp.lt.s32.totalorder %s227, 312
        %s233 = scalar_select %p232, %s227, 312
        %s234 = smul.addr %s233, 8
        %s235 = scalar_lea.vmem %s0, %s234
        %s236 = smul.u32 128, %s16
        %s237 = ssub.s32 313, %s236
        %p238 = scmp.lt.s32.totalorder %s237, 128
        %s239 = scalar_select %p238, %s237, 128
        %s240 = smul.u32 128, %s239
        %s241 = smul.u32 128, %s16
        %s242 = ssub.s32 313, %s241
        %p243 = scmp.lt.s32.totalorder %s242, 128
        %s244 = scalar_select %p243, %s242, 128
        %s245 = smul.u32 128, %s244
        %v246 = vld [vmem:[%s235] sm:$0xff]
        %v247 = vld [vmem:[%s235 + $0x8] sm:$0xff]
        %v248 = vld [vmem:[%s235 + $0x10] sm:$0xff]
        %v249 = vld [vmem:[%s235 + $0x18] sm:$0xff]
        %v250 = vld [vmem:[%s235 + $0x20] sm:$0xff]
        %v251 = vld [vmem:[%s235 + $0x28] sm:$0xff]
        %v252 = vld [vmem:[%s235 + $0x30] sm:$0xff]
        %v253 = vld [vmem:[%s235 + $0x38] sm:$0xff]
        %v254 = vld [vmem:[%s235 + $0x40] sm:$0xff]
        %v255 = vld [vmem:[%s235 + $0x48] sm:$0xff]
        %v256 = vld [vmem:[%s235 + $0x50] sm:$0xff]
        %v257 = vld [vmem:[%s235 + $0x58] sm:$0xff]
        %v258 = vld [vmem:[%s235 + $0x60] sm:$0xff]
        %v259 = vld [vmem:[%s235 + $0x68] sm:$0xff]
        %v260 = vld [vmem:[%s235 + $0x70] sm:$0xff]
        %v261 = vld [vmem:[%s235 + $0x78] sm:$0xff]
        %v262 = vld [vmem:[%s235 + $0x80] sm:$0xff]
        %v263 = vld [vmem:[%s235 + $0x88] sm:$0xff]
        %v264 = vld [vmem:[%s235 + $0x90] sm:$0xff]
        %v265 = vld [vmem:[%s235 + $0x98] sm:$0xff]
        %v266 = vld [vmem:[%s235 + $0xa0] sm:$0xff]
        %v267 = vld [vmem:[%s235 + $0xa8] sm:$0xff]
        %v268 = vld [vmem:[%s235 + $0xb0] sm:$0xff]
        %v269 = vld [vmem:[%s235 + $0xb8] sm:$0xff]
        %v270 = vld [vmem:[%s235 + $0xc0] sm:$0xff]
        %v271 = vld [vmem:[%s235 + $0xc8] sm:$0xff]
        %v272 = vld [vmem:[%s235 + $0xd0] sm:$0xff]
        %v273 = vld [vmem:[%s235 + $0xd8] sm:$0xff]
        %v274 = vld [vmem:[%s235 + $0xe0] sm:$0xff]
        %v275 = vld [vmem:[%s235 + $0xe8] sm:$0xff]
        %v276 = vld [vmem:[%s235 + $0xf0] sm:$0xff]
        %v277 = vld [vmem:[%s235 + $0xf8] sm:$0xff]
        %v278 = vld [vmem:[%s235 + $0x100] sm:$0xff]
        %v279 = vld [vmem:[%s235 + $0x108] sm:$0xff]
        %v280 = vld [vmem:[%s235 + $0x110] sm:$0xff]
        %v281 = vld [vmem:[%s235 + $0x118] sm:$0xff]
        %v282 = vld [vmem:[%s235 + $0x120] sm:$0xff]
        %v283 = vld [vmem:[%s235 + $0x128] sm:$0xff]
        %v284 = vld [vmem:[%s235 + $0x130] sm:$0xff]
        %v285 = vld [vmem:[%s235 + $0x138] sm:$0xff]
        %v286 = vld [vmem:[%s235 + $0x140] sm:$0xff]
        %v287 = vld [vmem:[%s235 + $0x148] sm:$0xff]
        %v288 = vld [vmem:[%s235 + $0x150] sm:$0xff]
        %v289 = vld [vmem:[%s235 + $0x158] sm:$0xff]
        %v290 = vld [vmem:[%s235 + $0x160] sm:$0xff]
        %v291 = vld [vmem:[%s235 + $0x168] sm:$0xff]
        %v292 = vld [vmem:[%s235 + $0x170] sm:$0xff]
        %v293 = vld [vmem:[%s235 + $0x178] sm:$0xff]
        %v294 = vld [vmem:[%s235 + $0x180] sm:$0xff]
        %v295 = vld [vmem:[%s235 + $0x188] sm:$0xff]
        %v296 = vld [vmem:[%s235 + $0x190] sm:$0xff]
        %v297 = vld [vmem:[%s235 + $0x198] sm:$0xff]
        %v298 = vld [vmem:[%s235 + $0x1a0] sm:$0xff]
        %v299 = vld [vmem:[%s235 + $0x1a8] sm:$0xff]
        %v300 = vld [vmem:[%s235 + $0x1b0] sm:$0xff]
        %v301 = vld [vmem:[%s235 + $0x1b8] sm:$0xff]
        %v302 = vld [vmem:[%s235 + $0x1c0] sm:$0xff]
        %v303 = vld [vmem:[%s235 + $0x1c8] sm:$0xff]
        %v304 = vld [vmem:[%s235 + $0x1d0] sm:$0xff]
        %v305 = vld [vmem:[%s235 + $0x1d8] sm:$0xff]
        %v306 = vld [vmem:[%s235 + $0x1e0] sm:$0xff]
        %v307 = vld [vmem:[%s235 + $0x1e8] sm:$0xff]
        %v308 = vld [vmem:[%s235 + $0x1f0] sm:$0xff]
        %v309 = vld [vmem:[%s235 + $0x1f8] sm:$0xff]
        %v310 = vld [vmem:[%s235 + $0x200] sm:$0xff]
        %v311 = vld [vmem:[%s235 + $0x208] sm:$0xff]
        %v312 = vld [vmem:[%s235 + $0x210] sm:$0xff]
        %v313 = vld [vmem:[%s235 + $0x218] sm:$0xff]
        %v314 = vld [vmem:[%s235 + $0x220] sm:$0xff]
        %v315 = vld [vmem:[%s235 + $0x228] sm:$0xff]
        %v316 = vld [vmem:[%s235 + $0x230] sm:$0xff]
        %v317 = vld [vmem:[%s235 + $0x238] sm:$0xff]
        %v318 = vld [vmem:[%s235 + $0x240] sm:$0xff]
        %v319 = vld [vmem:[%s235 + $0x248] sm:$0xff]
        %v320 = vld [vmem:[%s235 + $0x250] sm:$0xff]
        %v321 = vld [vmem:[%s235 + $0x258] sm:$0xff]
        %v322 = vld [vmem:[%s235 + $0x260] sm:$0xff]
        %v323 = vld [vmem:[%s235 + $0x268] sm:$0xff]
        %v324 = vld [vmem:[%s235 + $0x270] sm:$0xff]
        %v325 = vld [vmem:[%s235 + $0x278] sm:$0xff]
        %v326 = vld [vmem:[%s235 + $0x280] sm:$0xff]
        %v327 = vld [vmem:[%s235 + $0x288] sm:$0xff]
        %v328 = vld [vmem:[%s235 + $0x290] sm:$0xff]
        %v329 = vld [vmem:[%s235 + $0x298] sm:$0xff]
        %v330 = vld [vmem:[%s235 + $0x2a0] sm:$0xff]
        %v331 = vld [vmem:[%s235 + $0x2a8] sm:$0xff]
        %v332 = vld [vmem:[%s235 + $0x2b0] sm:$0xff]
        %v333 = vld [vmem:[%s235 + $0x2b8] sm:$0xff]
        %v334 = vld [vmem:[%s235 + $0x2c0] sm:$0xff]
        %v335 = vld [vmem:[%s235 + $0x2c8] sm:$0xff]
        %v336 = vld [vmem:[%s235 + $0x2d0] sm:$0xff]
        %v337 = vld [vmem:[%s235 + $0x2d8] sm:$0xff]
        %v338 = vld [vmem:[%s235 + $0x2e0] sm:$0xff]
        %v339 = vld [vmem:[%s235 + $0x2e8] sm:$0xff]
        %v340 = vld [vmem:[%s235 + $0x2f0] sm:$0xff]
        %v341 = vld [vmem:[%s235 + $0x2f8] sm:$0xff]
        %v342 = vld [vmem:[%s235 + $0x300] sm:$0xff]
        %v343 = vld [vmem:[%s235 + $0x308] sm:$0xff]
        %v344 = vld [vmem:[%s235 + $0x310] sm:$0xff]
        %v345 = vld [vmem:[%s235 + $0x318] sm:$0xff]
        %v346 = vld [vmem:[%s235 + $0x320] sm:$0xff]
        %v347 = vld [vmem:[%s235 + $0x328] sm:$0xff]
        %v348 = vld [vmem:[%s235 + $0x330] sm:$0xff]
        %v349 = vld [vmem:[%s235 + $0x338] sm:$0xff]
        %v350 = vld [vmem:[%s235 + $0x340] sm:$0xff]
        %v351 = vld [vmem:[%s235 + $0x348] sm:$0xff]
        %v352 = vld [vmem:[%s235 + $0x350] sm:$0xff]
        %v353 = vld [vmem:[%s235 + $0x358] sm:$0xff]
        %v354 = vld [vmem:[%s235 + $0x360] sm:$0xff]
        %v355 = vld [vmem:[%s235 + $0x368] sm:$0xff]
        %v356 = vld [vmem:[%s235 + $0x370] sm:$0xff]
        %v357 = vld [vmem:[%s235 + $0x378] sm:$0xff]
        %v358 = vld [vmem:[%s235 + $0x380] sm:$0xff]
        %v359 = vld [vmem:[%s235 + $0x388] sm:$0xff]
        %v360 = vld [vmem:[%s235 + $0x390] sm:$0xff]
        %v361 = vld [vmem:[%s235 + $0x398] sm:$0xff]
        %v362 = vld [vmem:[%s235 + $0x3a0] sm:$0xff]
        %v363 = vld [vmem:[%s235 + $0x3a8] sm:$0xff]
        %v364 = vld [vmem:[%s235 + $0x3b0] sm:$0xff]
        %v365 = vld [vmem:[%s235 + $0x3b8] sm:$0xff]
        %v366 = vld [vmem:[%s235 + $0x3c0] sm:$0xff]
        %v367 = vld [vmem:[%s235 + $0x3c8] sm:$0xff]
        %v368 = vld [vmem:[%s235 + $0x3d0] sm:$0xff]
        %v369 = vld [vmem:[%s235 + $0x3d8] sm:$0xff]
        %v370 = vld [vmem:[%s235 + $0x3e0] sm:$0xff]
        %v371 = vld [vmem:[%s235 + $0x3e8] sm:$0xff]
        %v372 = vld [vmem:[%s235 + $0x3f0] sm:$0xff]
        %v373 = vld [vmem:[%s235 + $0x3f8] sm:$0xff]
        %v374 = vld [vmem:[%s1] sm:$0xff]
        %v375 = vld [vmem:[%s1 + $0x8] sm:$0xff]
        %v376 = vld [vmem:[%s3] sm:$0x1]
        %v378 = vlaneseq
        %v379 = vshrl.u32 %v378, 7
        %v380 = vsub.s32 0, %v379
        %v381 = vrot.slane %v376, %v380
        %vm383 = vcmask 130048
        %v385 = vsel %vm383, %v246, 0
        %v388 = vsel %vm383, %v247, 0
        %v391 = vsel %vm383, %v248, 0
        %v394 = vsel %vm383, %v249, 0
        %v397 = vsel %vm383, %v250, 0
        %v400 = vsel %vm383, %v251, 0
        %v403 = vsel %vm383, %v252, 0
        %v406 = vsel %vm383, %v253, 0
        %v409 = vsel %vm383, %v254, 0
        %v412 = vsel %vm383, %v255, 0
        %v415 = vsel %vm383, %v256, 0
        %v418 = vsel %vm383, %v257, 0
        %v421 = vsel %vm383, %v258, 0
        %v424 = vsel %vm383, %v259, 0
        %v427 = vsel %vm383, %v260, 0
        %v430 = vsel %vm383, %v261, 0
        %v433 = vsel %vm383, %v262, 0
        %v436 = vsel %vm383, %v263, 0
        %v439 = vsel %vm383, %v264, 0
        %v442 = vsel %vm383, %v265, 0
        %v445 = vsel %vm383, %v266, 0
        %v448 = vsel %vm383, %v267, 0
        %v451 = vsel %vm383, %v268, 0
        %v454 = vsel %vm383, %v269, 0
        %v457 = vsel %vm383, %v270, 0
        %v460 = vsel %vm383, %v271, 0
        %v463 = vsel %vm383, %v272, 0
        %v466 = vsel %vm383, %v273, 0
        %v469 = vsel %vm383, %v274, 0
        %v472 = vsel %vm383, %v275, 0
        %v475 = vsel %vm383, %v276, 0
        %v478 = vsel %vm383, %v277, 0
        %v481 = vsel %vm383, %v278, 0
        %v484 = vsel %vm383, %v279, 0
        %v487 = vsel %vm383, %v280, 0
        %v490 = vsel %vm383, %v281, 0
        %v493 = vsel %vm383, %v282, 0
        %v496 = vsel %vm383, %v283, 0
        %v499 = vsel %vm383, %v284, 0
        %v502 = vsel %vm383, %v285, 0
        %v505 = vsel %vm383, %v286, 0
        %v508 = vsel %vm383, %v287, 0
        %v511 = vsel %vm383, %v288, 0
        %v514 = vsel %vm383, %v289, 0
        %v517 = vsel %vm383, %v290, 0
        %v520 = vsel %vm383, %v291, 0
        %v523 = vsel %vm383, %v292, 0
        %v526 = vsel %vm383, %v293, 0
        %v529 = vsel %vm383, %v294, 0
        %v532 = vsel %vm383, %v295, 0
        %v535 = vsel %vm383, %v296, 0
        %v538 = vsel %vm383, %v297, 0
        %v541 = vsel %vm383, %v298, 0
        %v544 = vsel %vm383, %v299, 0
        %v547 = vsel %vm383, %v300, 0
        %v550 = vsel %vm383, %v301, 0
        %v553 = vsel %vm383, %v302, 0
        %v556 = vsel %vm383, %v303, 0
        %v559 = vsel %vm383, %v304, 0
        %v562 = vsel %vm383, %v305, 0
        %v565 = vsel %vm383, %v306, 0
        %v568 = vsel %vm383, %v307, 0
        %v571 = vsel %vm383, %v308, 0
        %v574 = vsel %vm383, %v309, 0
        %v577 = vsel %vm383, %v310, 0
        %v580 = vsel %vm383, %v311, 0
        %v583 = vsel %vm383, %v312, 0
        %v586 = vsel %vm383, %v313, 0
        %v589 = vsel %vm383, %v314, 0
        %v592 = vsel %vm383, %v315, 0
        %v595 = vsel %vm383, %v316, 0
        %v598 = vsel %vm383, %v317, 0
        %v601 = vsel %vm383, %v318, 0
        %v604 = vsel %vm383, %v319, 0
        %v607 = vsel %vm383, %v320, 0
        %v610 = vsel %vm383, %v321, 0
        %v613 = vsel %vm383, %v322, 0
        %v616 = vsel %vm383, %v323, 0
        %v619 = vsel %vm383, %v324, 0
        %v622 = vsel %vm383, %v325, 0
        %v625 = vsel %vm383, %v326, 0
        %v628 = vsel %vm383, %v327, 0
        %v631 = vsel %vm383, %v328, 0
        %v634 = vsel %vm383, %v329, 0
        %v637 = vsel %vm383, %v330, 0
        %v640 = vsel %vm383, %v331, 0
        %v643 = vsel %vm383, %v332, 0
        %v646 = vsel %vm383, %v333, 0
        %v649 = vsel %vm383, %v334, 0
        %v652 = vsel %vm383, %v335, 0
        %v655 = vsel %vm383, %v336, 0
        %v658 = vsel %vm383, %v337, 0
        %v661 = vsel %vm383, %v338, 0
        %v664 = vsel %vm383, %v339, 0
        %v667 = vsel %vm383, %v340, 0
        %v670 = vsel %vm383, %v341, 0
        %v673 = vsel %vm383, %v342, 0
        %v676 = vsel %vm383, %v343, 0
        %v679 = vsel %vm383, %v344, 0
        %v682 = vsel %vm383, %v345, 0
        %v685 = vsel %vm383, %v346, 0
        %v688 = vsel %vm383, %v347, 0
        %v691 = vsel %vm383, %v348, 0
        %v694 = vsel %vm383, %v349, 0
        %v697 = vsel %vm383, %v350, 0
        %v700 = vsel %vm383, %v351, 0
        %v703 = vsel %vm383, %v352, 0
        %v706 = vsel %vm383, %v353, 0
        %v709 = vsel %vm383, %v354, 0
        %v712 = vsel %vm383, %v355, 0
        %v715 = vsel %vm383, %v356, 0
        %v718 = vsel %vm383, %v357, 0
        %v721 = vsel %vm383, %v358, 0
        %v724 = vsel %vm383, %v359, 0
        %v727 = vsel %vm383, %v360, 0
        %v730 = vsel %vm383, %v361, 0
        %v733 = vsel %vm383, %v362, 0
        %v736 = vsel %vm383, %v363, 0
        %v739 = vsel %vm383, %v364, 0
        %v742 = vsel %vm383, %v365, 0
        %v745 = vsel %vm383, %v366, 0
        %v748 = vsel %vm383, %v367, 0
        %v751 = vsel %vm383, %v368, 0
        %v754 = vsel %vm383, %v369, 0
        %v757 = vsel %vm383, %v370, 0
        %v760 = vsel %vm383, %v371, 0
        %v763 = vsel %vm383, %v372, 0
        %v766 = vsel %vm383, %v373, 0
        %768 = vmatprep.subr.mxu0 0.0
        %769 = vmatpush1.msra.mxu0 %v374
        %770 = vmatprep.subr.mxu0 0.0
        %771 = vmatpush1.msra.mxu0 %v375
        %772 = vmatprep.subr.mxu0 0.0
        %773 = vmatpush1.msra.mxu0 0.0
        %774 = vmatprep.subr.mxu0 0.0
        %775 = vmatpush1.msra.mxu0 0.0
        %776 = vmatprep.subr.mxu0 0.0
        %777 = vmatpush1.msra.mxu0 0.0
        %778 = vmatprep.subr.mxu0 0.0
        %779 = vmatpush1.msra.mxu0 0.0
        %780 = vmatprep.subr.mxu0 0.0
        %781 = vmatpush1.msra.mxu0 0.0
        %782 = vmatprep.subr.mxu0 0.0
        %783 = vmatpush1.msra.mxu0 0.0
        %784 = vmatprep.subr.mxu0 0.0
        %785 = vmatpush1.msra.mxu0 0.0
        %786 = vmatprep.subr.mxu0 0.0
        %787 = vmatpush1.msra.mxu0 0.0
        %788 = vmatprep.subr.mxu0 0.0
        %789 = vmatpush1.msra.mxu0 0.0
        %790 = vmatprep.subr.mxu0 0.0
        %791 = vmatpush1.msra.mxu0 0.0
        %792 = vmatprep.subr.mxu0 0.0
        %793 = vmatpush1.msra.mxu0 0.0
        %794 = vmatprep.subr.mxu0 0.0
        %795 = vmatpush1.msra.mxu0 0.0
        %796 = vmatprep.subr.mxu0 0.0
        %797 = vmatpush1.msra.mxu0 0.0
        %798 = vmatprep.subr.mxu0 0.0
        %799 = vmatpush1.msra.mxu0 0.0
        %800 = vmatprep.subr.mxu0 0.0
        %801 = vmatpush1.msra.mxu0 0.0
        %802 = vmatprep.subr.mxu0 0.0
        %803 = vmatpush1.msra.mxu0 0.0
        %804 = vmatprep.subr.mxu0 0.0
        %805 = vmatpush1.msra.mxu0 0.0
        %806 = vmatprep.subr.mxu0 0.0
        %807 = vmatpush1.msra.mxu0 0.0
        %808 = vmatprep.subr.mxu0 0.0
        %809 = vmatpush1.msra.mxu0 0.0
        %810 = vmatprep.subr.mxu0 0.0
        %811 = vmatpush1.msra.mxu0 0.0
        %812 = vmatprep.subr.mxu0 0.0
        %813 = vmatpush1.msra.mxu0 0.0
        %814 = vmatprep.subr.mxu0 0.0
        %815 = vmatpush1.msra.mxu0 0.0
        %816 = vmatprep.subr.mxu0 0.0
        %817 = vmatpush1.msra.mxu0 0.0
        %818 = vmatprep.subr.mxu0 0.0
        %819 = vmatpush1.msra.mxu0 0.0
        %820 = vmatprep.subr.mxu0 0.0
        %821 = vmatpush1.msra.mxu0 0.0
        %822 = vmatprep.subr.mxu0 0.0
        %823 = vmatpush1.msra.mxu0 0.0
        %824 = vmatprep.subr.mxu0 0.0
        %825 = vmatpush1.msra.mxu0 0.0
        %826 = vmatprep.subr.mxu0 0.0
        %827 = vmatpush1.msra.mxu0 0.0
        %828 = vmatprep.subr.mxu0 0.0
        %829 = vmatpush1.msra.mxu0 0.0
        %830 = vmatprep.subr.mxu0 0.0
        %831 = vmatpush1.msra.mxu0 0.0
        %832 = vmatprep.mubr.f32.mxu0 0.0
        %833 = vmatmul.mubr.f32.gmra.mrb[0].mxu0 %v385
        %v834 = vpop.f32.mrb[0].mxu0
        %v835 = vadd.f32 %v381, %v834
        %v836 = vpop.f32.mrb[0].mxu0
        %837 = vmatprep.mubr.f32.mxu0 0.0
        %838 = vmatmul.mubr.f32.gmra.mrb[0].mxu0 %v388
        %v839 = vpop.f32.mrb[0].mxu0
        %v840 = vadd.f32 %v381, %v839
        %v841 = vpop.f32.mrb[0].mxu0
        %842 = vmatprep.mubr.f32.mxu0 0.0
        %843 = vmatmul.mubr.f32.gmra.mrb[0].mxu0 %v391
        %v844 = vpop.f32.mrb[0].mxu0
        %v845 = vadd.f32 %v381, %v844
        %v846 = vpop.f32.mrb[0].mxu0
        %847 = vmatprep.mubr.f32.mxu0 0.0
        %848 = vmatmul.mubr.f32.gmra.mrb[0].mxu0 %v394
        %v849 = vpop.f32.mrb[0].mxu0
        %v850 = vadd.f32 %v381, %v849
        %v851 = vpop.f32.mrb[0].mxu0
        %852 = vmatprep.mubr.f32.mxu0 0.0
        %853 = vmatmul.mubr.f32.gmra.mrb[0].mxu0 %v397
        %v854 = vpop.f32.mrb[0].mxu0
        %v855 = vadd.f32 %v381, %v854
        %v856 = vpop.f32.mrb[0].mxu0
        %857 = vmatprep.mubr.f32.mxu0 0.0
        %858 = vmatmul.mubr.f32.gmra.mrb[0].mxu0 %v400
        %v859 = vpop.f32.mrb[0].mxu0
        %v860 = vadd.f32 %v381, %v859
        %v861 = vpop.f32.mrb[0].mxu0
        %862 = vmatprep.mubr.f32.mxu0 0.0
        %863 = vmatmul.mubr.f32.gmra.mrb[0].mxu0 %v403
        %v864 = vpop.f32.mrb[0].mxu0
        %v865 = vadd.f32 %v381, %v864
        %v866 = vpop.f32.mrb[0].mxu0
        %867 = vmatprep.mubr.f32.mxu0 0.0
        %868 = vmatmul.mubr.f32.gmra.mrb[0].mxu0 %v406
        %v869 = vpop.f32.mrb[0].mxu0
        %v870 = vadd.f32 %v381, %v869
        %v871 = vpop.f32.mrb[0].mxu0
        %872 = vmatprep.mubr.f32.mxu0 0.0
        %873 = vmatmul.mubr.f32.gmra.mrb[0].mxu0 %v409
        %v874 = vpop.f32.mrb[0].mxu0
        %v875 = vadd.f32 %v381, %v874
        %v876 = vpop.f32.mrb[0].mxu0
        %877 = vmatprep.mubr.f32.mxu0 0.0
        %878 = vmatmul.mubr.f32.gmra.mrb[0].mxu0 %v412
        %v879 = vpop.f32.mrb[0].mxu0
        %v880 = vadd.f32 %v381, %v879
        %v881 = vpop.f32.mrb[0].mxu0
        %882 = vmatprep.mubr.f32.mxu0 0.0
        %883 = vmatmul.mubr.f32.gmra.mrb[0].mxu0 %v415
        %v884 = vpop.f32.mrb[0].mxu0
        %v885 = vadd.f32 %v381, %v884
        %v886 = vpop.f32.mrb[0].mxu0
        %887 = vmatprep.mubr.f32.mxu0 0.0
        %888 = vmatmul.mubr.f32.gmra.mrb[0].mxu0 %v418
        %v889 = vpop.f32.mrb[0].mxu0
        %v890 = vadd.f32 %v381, %v889
        %v891 = vpop.f32.mrb[0].mxu0
        %892 = vmatprep.mubr.f32.mxu0 0.0
        %893 = vmatmul.mubr.f32.gmra.mrb[0].mxu0 %v421
        %v894 = vpop.f32.mrb[0].mxu0
        %v895 = vadd.f32 %v381, %v894
        %v896 = vpop.f32.mrb[0].mxu0
        %897 = vmatprep.mubr.f32.mxu0 0.0
        %898 = vmatmul.mubr.f32.gmra.mrb[0].mxu0 %v424
        %v899 = vpop.f32.mrb[0].mxu0
        %v900 = vadd.f32 %v381, %v899
        %v901 = vpop.f32.mrb[0].mxu0
        %902 = vmatprep.mubr.f32.mxu0 0.0
        %903 = vmatmul.mubr.f32.gmra.mrb[0].mxu0 %v427
        %v904 = vpop.f32.mrb[0].mxu0
        %v905 = vadd.f32 %v381, %v904
        %v906 = vpop.f32.mrb[0].mxu0
        %907 = vmatprep.mubr.f32.mxu0 0.0
        %908 = vmatmul.mubr.f32.gmra.mrb[0].mxu0 %v430
        %v909 = vpop.f32.mrb[0].mxu0
        %v910 = vadd.f32 %v381, %v909
        %v911 = vpop.f32.mrb[0].mxu0
        %912 = vmatprep.mubr.f32.mxu0 0.0
        %913 = vmatmul.mubr.f32.gmra.mrb[0].mxu0 %v433
        %v914 = vpop.f32.mrb[0].mxu0
        %v915 = vadd.f32 %v381, %v914
        %v916 = vpop.f32.mrb[0].mxu0
        %917 = vmatprep.mubr.f32.mxu0 0.0
        %918 = vmatmul.mubr.f32.gmra.mrb[0].mxu0 %v436
        %v919 = vpop.f32.mrb[0].mxu0
        %v920 = vadd.f32 %v381, %v919
        %v921 = vpop.f32.mrb[0].mxu0
        %922 = vmatprep.mubr.f32.mxu0 0.0
        %923 = vmatmul.mubr.f32.gmra.mrb[0].mxu0 %v439
        %v924 = vpop.f32.mrb[0].mxu0
        %v925 = vadd.f32 %v381, %v924
        %v926 = vpop.f32.mrb[0].mxu0
        %927 = vmatprep.mubr.f32.mxu0 0.0
        %928 = vmatmul.mubr.f32.gmra.mrb[0].mxu0 %v442
        %v929 = vpop.f32.mrb[0].mxu0
        %v930 = vadd.f32 %v381, %v929
        %v931 = vpop.f32.mrb[0].mxu0
        %932 = vmatprep.mubr.f32.mxu0 0.0
        %933 = vmatmul.mubr.f32.gmra.mrb[0].mxu0 %v445
        %v934 = vpop.f32.mrb[0].mxu0
        %v935 = vadd.f32 %v381, %v934
        %v936 = vpop.f32.mrb[0].mxu0
        %937 = vmatprep.mubr.f32.mxu0 0.0
        %938 = vmatmul.mubr.f32.gmra.mrb[0].mxu0 %v448
        %v939 = vpop.f32.mrb[0].mxu0
        %v940 = vadd.f32 %v381, %v939
        %v941 = vpop.f32.mrb[0].mxu0
        %942 = vmatprep.mubr.f32.mxu0 0.0
        %943 = vmatmul.mubr.f32.gmra.mrb[0].mxu0 %v451
        %v944 = vpop.f32.mrb[0].mxu0
        %v945 = vadd.f32 %v381, %v944
        %v946 = vpop.f32.mrb[0].mxu0
        %947 = vmatprep.mubr.f32.mxu0 0.0
        %948 = vmatmul.mubr.f32.gmra.mrb[0].mxu0 %v454
        %v949 = vpop.f32.mrb[0].mxu0
        %v950 = vadd.f32 %v381, %v949
        %v951 = vpop.f32.mrb[0].mxu0
        %952 = vmatprep.mubr.f32.mxu0 0.0
        %953 = vmatmul.mubr.f32.gmra.mrb[0].mxu0 %v457
        %v954 = vpop.f32.mrb[0].mxu0
        %v955 = vadd.f32 %v381, %v954
        %v956 = vpop.f32.mrb[0].mxu0
        %957 = vmatprep.mubr.f32.mxu0 0.0
        %958 = vmatmul.mubr.f32.gmra.mrb[0].mxu0 %v460
        %v959 = vpop.f32.mrb[0].mxu0
        %v960 = vadd.f32 %v381, %v959
        %v961 = vpop.f32.mrb[0].mxu0
        %962 = vmatprep.mubr.f32.mxu0 0.0
        %963 = vmatmul.mubr.f32.gmra.mrb[0].mxu0 %v463
        %v964 = vpop.f32.mrb[0].mxu0
        %v965 = vadd.f32 %v381, %v964
        %v966 = vpop.f32.mrb[0].mxu0
        %967 = vmatprep.mubr.f32.mxu0 0.0
        %968 = vmatmul.mubr.f32.gmra.mrb[0].mxu0 %v466
        %v969 = vpop.f32.mrb[0].mxu0
        %v970 = vadd.f32 %v381, %v969
        %v971 = vpop.f32.mrb[0].mxu0
        %972 = vmatprep.mubr.f32.mxu0 0.0
        %973 = vmatmul.mubr.f32.gmra.mrb[0].mxu0 %v469
        %v974 = vpop.f32.mrb[0].mxu0
        %v975 = vadd.f32 %v381, %v974
        %v976 = vpop.f32.mrb[0].mxu0
        %977 = vmatprep.mubr.f32.mxu0 0.0
        %978 = vmatmul.mubr.f32.gmra.mrb[0].mxu0 %v472
        %v979 = vpop.f32.mrb[0].mxu0
        %v980 = vadd.f32 %v381, %v979
        %v981 = vpop.f32.mrb[0].mxu0
        %982 = vmatprep.mubr.f32.mxu0 0.0
        %983 = vmatmul.mubr.f32.gmra.mrb[0].mxu0 %v475
        %v984 = vpop.f32.mrb[0].mxu0
        %v985 = vadd.f32 %v381, %v984
        %v986 = vpop.f32.mrb[0].mxu0
        %987 = vmatprep.mubr.f32.mxu0 0.0
        %988 = vmatmul.mubr.f32.gmra.mrb[0].mxu0 %v478
        %v989 = vpop.f32.mrb[0].mxu0
        %v990 = vadd.f32 %v381, %v989
        %v991 = vpop.f32.mrb[0].mxu0
        %992 = vmatprep.mubr.f32.mxu0 0.0
        %993 = vmatmul.mubr.f32.gmra.mrb[0].mxu0 %v481
        %v994 = vpop.f32.mrb[0].mxu0
        %v995 = vadd.f32 %v381, %v994
        %v996 = vpop.f32.mrb[0].mxu0
        %997 = vmatprep.mubr.f32.mxu0 0.0
        %998 = vmatmul.mubr.f32.gmra.mrb[0].mxu0 %v484
        %v999 = vpop.f32.mrb[0].mxu0
        %v1000 = vadd.f32 %v381, %v999
        %v1001 = vpop.f32.mrb[0].mxu0
        %1002 = vmatprep.mubr.f32.mxu0 0.0
        %1003 = vmatmul.mubr.f32.gmra.mrb[0].mxu0 %v487
        %v1004 = vpop.f32.mrb[0].mxu0
        %v1005 = vadd.f32 %v381, %v1004
        %v1006 = vpop.f32.mrb[0].mxu0
        %1007 = vmatprep.mubr.f32.mxu0 0.0
        %1008 = vmatmul.mubr.f32.gmra.mrb[0].mxu0 %v490
        %v1009 = vpop.f32.mrb[0].mxu0
        %v1010 = vadd.f32 %v381, %v1009
        %v1011 = vpop.f32.mrb[0].mxu0
        %1012 = vmatprep.mubr.f32.mxu0 0.0
        %1013 = vmatmul.mubr.f32.gmra.mrb[0].mxu0 %v493
        %v1014 = vpop.f32.mrb[0].mxu0
        %v1015 = vadd.f32 %v381, %v1014
        %v1016 = vpop.f32.mrb[0].mxu0
        %1017 = vmatprep.mubr.f32.mxu0 0.0
        %1018 = vmatmul.mubr.f32.gmra.mrb[0].mxu0 %v496
        %v1019 = vpop.f32.mrb[0].mxu0
        %v1020 = vadd.f32 %v381, %v1019
        %v1021 = vpop.f32.mrb[0].mxu0
        %1022 = vmatprep.mubr.f32.mxu0 0.0
        %1023 = vmatmul.mubr.f32.gmra.mrb[0].mxu0 %v499
        %v1024 = vpop.f32.mrb[0].mxu0
        %v1025 = vadd.f32 %v381, %v1024
        %v1026 = vpop.f32.mrb[0].mxu0
        %1027 = vmatprep.mubr.f32.mxu0 0.0
        %1028 = vmatmul.mubr.f32.gmra.mrb[0].mxu0 %v502
        %v1029 = vpop.f32.mrb[0].mxu0
        %v1030 = vadd.f32 %v381, %v1029
        %v1031 = vpop.f32.mrb[0].mxu0
        %1032 = vmatprep.mubr.f32.mxu0 0.0
        %1033 = vmatmul.mubr.f32.gmra.mrb[0].mxu0 %v505
        %v1034 = vpop.f32.mrb[0].mxu0
        %v1035 = vadd.f32 %v381, %v1034
        %v1036 = vpop.f32.mrb[0].mxu0
        %1037 = vmatprep.mubr.f32.mxu0 0.0
        %1038 = vmatmul.mubr.f32.gmra.mrb[0].mxu0 %v508
        %v1039 = vpop.f32.mrb[0].mxu0
        %v1040 = vadd.f32 %v381, %v1039
        %v1041 = vpop.f32.mrb[0].mxu0
        %1042 = vmatprep.mubr.f32.mxu0 0.0
        %1043 = vmatmul.mubr.f32.gmra.mrb[0].mxu0 %v511
        %v1044 = vpop.f32.mrb[0].mxu0
        %v1045 = vadd.f32 %v381, %v1044
        %v1046 = vpop.f32.mrb[0].mxu0
        %1047 = vmatprep.mubr.f32.mxu0 0.0
        %1048 = vmatmul.mubr.f32.gmra.mrb[0].mxu0 %v514
        %v1049 = vpop.f32.mrb[0].mxu0
        %v1050 = vadd.f32 %v381, %v1049
        %v1051 = vpop.f32.mrb[0].mxu0
        %1052 = vmatprep.mubr.f32.mxu0 0.0
        %1053 = vmatmul.mubr.f32.gmra.mrb[0].mxu0 %v517
        %v1054 = vpop.f32.mrb[0].mxu0
        %v1055 = vadd.f32 %v381, %v1054
        %v1056 = vpop.f32.mrb[0].mxu0
        %1057 = vmatprep.mubr.f32.mxu0 0.0
        %1058 = vmatmul.mubr.f32.gmra.mrb[0].mxu0 %v520
        %v1059 = vpop.f32.mrb[0].mxu0
        %v1060 = vadd.f32 %v381, %v1059
        %v1061 = vpop.f32.mrb[0].mxu0
        %1062 = vmatprep.mubr.f32.mxu0 0.0
        %1063 = vmatmul.mubr.f32.gmra.mrb[0].mxu0 %v523
        %v1064 = vpop.f32.mrb[0].mxu0
        %v1065 = vadd.f32 %v381, %v1064
        %v1066 = vpop.f32.mrb[0].mxu0
        %1067 = vmatprep.mubr.f32.mxu0 0.0
        %1068 = vmatmul.mubr.f32.gmra.mrb[0].mxu0 %v526
        %v1069 = vpop.f32.mrb[0].mxu0
        %v1070 = vadd.f32 %v381, %v1069
        %v1071 = vpop.f32.mrb[0].mxu0
        %1072 = vmatprep.mubr.f32.mxu0 0.0
        %1073 = vmatmul.mubr.f32.gmra.mrb[0].mxu0 %v529
        %v1074 = vpop.f32.mrb[0].mxu0
        %v1075 = vadd.f32 %v381, %v1074
        %v1076 = vpop.f32.mrb[0].mxu0
        %1077 = vmatprep.mubr.f32.mxu0 0.0
        %1078 = vmatmul.mubr.f32.gmra.mrb[0].mxu0 %v532
        %v1079 = vpop.f32.mrb[0].mxu0
        %v1080 = vadd.f32 %v381, %v1079
        %v1081 = vpop.f32.mrb[0].mxu0
        %1082 = vmatprep.mubr.f32.mxu0 0.0
        %1083 = vmatmul.mubr.f32.gmra.mrb[0].mxu0 %v535
        %v1084 = vpop.f32.mrb[0].mxu0
        %v1085 = vadd.f32 %v381, %v1084
        %v1086 = vpop.f32.mrb[0].mxu0
        %1087 = vmatprep.mubr.f32.mxu0 0.0
        %1088 = vmatmul.mubr.f32.gmra.mrb[0].mxu0 %v538
        %v1089 = vpop.f32.mrb[0].mxu0
        %v1090 = vadd.f32 %v381, %v1089
        %v1091 = vpop.f32.mrb[0].mxu0
        %1092 = vmatprep.mubr.f32.mxu0 0.0
        %1093 = vmatmul.mubr.f32.gmra.mrb[0].mxu0 %v541
        %v1094 = vpop.f32.mrb[0].mxu0
        %v1095 = vadd.f32 %v381, %v1094
        %v1096 = vpop.f32.mrb[0].mxu0
        %1097 = vmatprep.mubr.f32.mxu0 0.0
        %1098 = vmatmul.mubr.f32.gmra.mrb[0].mxu0 %v544
        %v1099 = vpop.f32.mrb[0].mxu0
        %v1100 = vadd.f32 %v381, %v1099
        %v1101 = vpop.f32.mrb[0].mxu0
        %1102 = vmatprep.mubr.f32.mxu0 0.0
        %1103 = vmatmul.mubr.f32.gmra.mrb[0].mxu0 %v547
        %v1104 = vpop.f32.mrb[0].mxu0
        %v1105 = vadd.f32 %v381, %v1104
        %v1106 = vpop.f32.mrb[0].mxu0
        %1107 = vmatprep.mubr.f32.mxu0 0.0
        %1108 = vmatmul.mubr.f32.gmra.mrb[0].mxu0 %v550
        %v1109 = vpop.f32.mrb[0].mxu0
        %v1110 = vadd.f32 %v381, %v1109
        %v1111 = vpop.f32.mrb[0].mxu0
        %1112 = vmatprep.mubr.f32.mxu0 0.0
        %1113 = vmatmul.mubr.f32.gmra.mrb[0].mxu0 %v553
        %v1114 = vpop.f32.mrb[0].mxu0
        %v1115 = vadd.f32 %v381, %v1114
        %v1116 = vpop.f32.mrb[0].mxu0
        %1117 = vmatprep.mubr.f32.mxu0 0.0
        %1118 = vmatmul.mubr.f32.gmra.mrb[0].mxu0 %v556
        %v1119 = vpop.f32.mrb[0].mxu0
        %v1120 = vadd.f32 %v381, %v1119
        %v1121 = vpop.f32.mrb[0].mxu0
        %1122 = vmatprep.mubr.f32.mxu0 0.0
        %1123 = vmatmul.mubr.f32.gmra.mrb[0].mxu0 %v559
        %v1124 = vpop.f32.mrb[0].mxu0
        %v1125 = vadd.f32 %v381, %v1124
        %v1126 = vpop.f32.mrb[0].mxu0
        %1127 = vmatprep.mubr.f32.mxu0 0.0
        %1128 = vmatmul.mubr.f32.gmra.mrb[0].mxu0 %v562
        %v1129 = vpop.f32.mrb[0].mxu0
        %v1130 = vadd.f32 %v381, %v1129
        %v1131 = vpop.f32.mrb[0].mxu0
        %1132 = vmatprep.mubr.f32.mxu0 0.0
        %1133 = vmatmul.mubr.f32.gmra.mrb[0].mxu0 %v565
        %v1134 = vpop.f32.mrb[0].mxu0
        %v1135 = vadd.f32 %v381, %v1134
        %v1136 = vpop.f32.mrb[0].mxu0
        %1137 = vmatprep.mubr.f32.mxu0 0.0
        %1138 = vmatmul.mubr.f32.gmra.mrb[0].mxu0 %v568
        %v1139 = vpop.f32.mrb[0].mxu0
        %v1140 = vadd.f32 %v381, %v1139
        %v1141 = vpop.f32.mrb[0].mxu0
        %1142 = vmatprep.mubr.f32.mxu0 0.0
        %1143 = vmatmul.mubr.f32.gmra.mrb[0].mxu0 %v571
        %v1144 = vpop.f32.mrb[0].mxu0
        %v1145 = vadd.f32 %v381, %v1144
        %v1146 = vpop.f32.mrb[0].mxu0
        %1147 = vmatprep.mubr.f32.mxu0 0.0
        %1148 = vmatmul.mubr.f32.gmra.mrb[0].mxu0 %v574
        %v1149 = vpop.f32.mrb[0].mxu0
        %v1150 = vadd.f32 %v381, %v1149
        %v1151 = vpop.f32.mrb[0].mxu0
        %1152 = vmatprep.mubr.f32.mxu0 0.0
        %1153 = vmatmul.mubr.f32.gmra.mrb[0].mxu0 %v577
        %v1154 = vpop.f32.mrb[0].mxu0
        %v1155 = vadd.f32 %v381, %v1154
        %v1156 = vpop.f32.mrb[0].mxu0
        %1157 = vmatprep.mubr.f32.mxu0 0.0
        %1158 = vmatmul.mubr.f32.gmra.mrb[0].mxu0 %v580
        %v1159 = vpop.f32.mrb[0].mxu0
        %v1160 = vadd.f32 %v381, %v1159
        %v1161 = vpop.f32.mrb[0].mxu0
        %1162 = vmatprep.mubr.f32.mxu0 0.0
        %1163 = vmatmul.mubr.f32.gmra.mrb[0].mxu0 %v583
        %v1164 = vpop.f32.mrb[0].mxu0
        %v1165 = vadd.f32 %v381, %v1164
        %v1166 = vpop.f32.mrb[0].mxu0
        %1167 = vmatprep.mubr.f32.mxu0 0.0
        %1168 = vmatmul.mubr.f32.gmra.mrb[0].mxu0 %v586
        %v1169 = vpop.f32.mrb[0].mxu0
        %v1170 = vadd.f32 %v381, %v1169
        %v1171 = vpop.f32.mrb[0].mxu0
        %1172 = vmatprep.mubr.f32.mxu0 0.0
        %1173 = vmatmul.mubr.f32.gmra.mrb[0].mxu0 %v589
        %v1174 = vpop.f32.mrb[0].mxu0
        %v1175 = vadd.f32 %v381, %v1174
        %v1176 = vpop.f32.mrb[0].mxu0
        %1177 = vmatprep.mubr.f32.mxu0 0.0
        %1178 = vmatmul.mubr.f32.gmra.mrb[0].mxu0 %v592
        %v1179 = vpop.f32.mrb[0].mxu0
        %v1180 = vadd.f32 %v381, %v1179
        %v1181 = vpop.f32.mrb[0].mxu0
        %1182 = vmatprep.mubr.f32.mxu0 0.0
        %1183 = vmatmul.mubr.f32.gmra.mrb[0].mxu0 %v595
        %v1184 = vpop.f32.mrb[0].mxu0
        %v1185 = vadd.f32 %v381, %v1184
        %v1186 = vpop.f32.mrb[0].mxu0
        %1187 = vmatprep.mubr.f32.mxu0 0.0
        %1188 = vmatmul.mubr.f32.gmra.mrb[0].mxu0 %v598
        %v1189 = vpop.f32.mrb[0].mxu0
        %v1190 = vadd.f32 %v381, %v1189
        %v1191 = vpop.f32.mrb[0].mxu0
        %1192 = vmatprep.mubr.f32.mxu0 0.0
        %1193 = vmatmul.mubr.f32.gmra.mrb[0].mxu0 %v601
        %v1194 = vpop.f32.mrb[0].mxu0
        %v1195 = vadd.f32 %v381, %v1194
        %v1196 = vpop.f32.mrb[0].mxu0
        %1197 = vmatprep.mubr.f32.mxu0 0.0
        %1198 = vmatmul.mubr.f32.gmra.mrb[0].mxu0 %v604
        %v1199 = vpop.f32.mrb[0].mxu0
        %v1200 = vadd.f32 %v381, %v1199
        %v1201 = vpop.f32.mrb[0].mxu0
        %1202 = vmatprep.mubr.f32.mxu0 0.0
        %1203 = vmatmul.mubr.f32.gmra.mrb[0].mxu0 %v607
        %v1204 = vpop.f32.mrb[0].mxu0
        %v1205 = vadd.f32 %v381, %v1204
        %v1206 = vpop.f32.mrb[0].mxu0
        %1207 = vmatprep.mubr.f32.mxu0 0.0
        %1208 = vmatmul.mubr.f32.gmra.mrb[0].mxu0 %v610
        %v1209 = vpop.f32.mrb[0].mxu0
        %v1210 = vadd.f32 %v381, %v1209
        %v1211 = vpop.f32.mrb[0].mxu0
        %1212 = vmatprep.mubr.f32.mxu0 0.0
        %1213 = vmatmul.mubr.f32.gmra.mrb[0].mxu0 %v613
        %v1214 = vpop.f32.mrb[0].mxu0
        %v1215 = vadd.f32 %v381, %v1214
        %v1216 = vpop.f32.mrb[0].mxu0
        %1217 = vmatprep.mubr.f32.mxu0 0.0
        %1218 = vmatmul.mubr.f32.gmra.mrb[0].mxu0 %v616
        %v1219 = vpop.f32.mrb[0].mxu0
        %v1220 = vadd.f32 %v381, %v1219
        %v1221 = vpop.f32.mrb[0].mxu0
        %1222 = vmatprep.mubr.f32.mxu0 0.0
        %1223 = vmatmul.mubr.f32.gmra.mrb[0].mxu0 %v619
        %v1224 = vpop.f32.mrb[0].mxu0
        %v1225 = vadd.f32 %v381, %v1224
        %v1226 = vpop.f32.mrb[0].mxu0
        %1227 = vmatprep.mubr.f32.mxu0 0.0
        %1228 = vmatmul.mubr.f32.gmra.mrb[0].mxu0 %v622
        %v1229 = vpop.f32.mrb[0].mxu0
        %v1230 = vadd.f32 %v381, %v1229
        %v1231 = vpop.f32.mrb[0].mxu0
        %1232 = vmatprep.mubr.f32.mxu0 0.0
        %1233 = vmatmul.mubr.f32.gmra.mrb[0].mxu0 %v625
        %v1234 = vpop.f32.mrb[0].mxu0
        %v1235 = vadd.f32 %v381, %v1234
        %v1236 = vpop.f32.mrb[0].mxu0
        %1237 = vmatprep.mubr.f32.mxu0 0.0
        %1238 = vmatmul.mubr.f32.gmra.mrb[0].mxu0 %v628
        %v1239 = vpop.f32.mrb[0].mxu0
        %v1240 = vadd.f32 %v381, %v1239
        %v1241 = vpop.f32.mrb[0].mxu0
        %1242 = vmatprep.mubr.f32.mxu0 0.0
        %1243 = vmatmul.mubr.f32.gmra.mrb[0].mxu0 %v631
        %v1244 = vpop.f32.mrb[0].mxu0
        %v1245 = vadd.f32 %v381, %v1244
        %v1246 = vpop.f32.mrb[0].mxu0
        %1247 = vmatprep.mubr.f32.mxu0 0.0
        %1248 = vmatmul.mubr.f32.gmra.mrb[0].mxu0 %v634
        %v1249 = vpop.f32.mrb[0].mxu0
        %v1250 = vadd.f32 %v381, %v1249
        %v1251 = vpop.f32.mrb[0].mxu0
        %1252 = vmatprep.mubr.f32.mxu0 0.0
        %1253 = vmatmul.mubr.f32.gmra.mrb[0].mxu0 %v637
        %v1254 = vpop.f32.mrb[0].mxu0
        %v1255 = vadd.f32 %v381, %v1254
        %v1256 = vpop.f32.mrb[0].mxu0
        %1257 = vmatprep.mubr.f32.mxu0 0.0
        %1258 = vmatmul.mubr.f32.gmra.mrb[0].mxu0 %v640
        %v1259 = vpop.f32.mrb[0].mxu0
        %v1260 = vadd.f32 %v381, %v1259
        %v1261 = vpop.f32.mrb[0].mxu0
        %1262 = vmatprep.mubr.f32.mxu0 0.0
        %1263 = vmatmul.mubr.f32.gmra.mrb[0].mxu0 %v643
        %v1264 = vpop.f32.mrb[0].mxu0
        %v1265 = vadd.f32 %v381, %v1264
        %v1266 = vpop.f32.mrb[0].mxu0
        %1267 = vmatprep.mubr.f32.mxu0 0.0
        %1268 = vmatmul.mubr.f32.gmra.mrb[0].mxu0 %v646
        %v1269 = vpop.f32.mrb[0].mxu0
        %v1270 = vadd.f32 %v381, %v1269
        %v1271 = vpop.f32.mrb[0].mxu0
        %1272 = vmatprep.mubr.f32.mxu0 0.0
        %1273 = vmatmul.mubr.f32.gmra.mrb[0].mxu0 %v649
        %v1274 = vpop.f32.mrb[0].mxu0
        %v1275 = vadd.f32 %v381, %v1274
        %v1276 = vpop.f32.mrb[0].mxu0
        %1277 = vmatprep.mubr.f32.mxu0 0.0
        %1278 = vmatmul.mubr.f32.gmra.mrb[0].mxu0 %v652
        %v1279 = vpop.f32.mrb[0].mxu0
        %v1280 = vadd.f32 %v381, %v1279
        %v1281 = vpop.f32.mrb[0].mxu0
        %1282 = vmatprep.mubr.f32.mxu0 0.0
        %1283 = vmatmul.mubr.f32.gmra.mrb[0].mxu0 %v655
        %v1284 = vpop.f32.mrb[0].mxu0
        %v1285 = vadd.f32 %v381, %v1284
        %v1286 = vpop.f32.mrb[0].mxu0
        %1287 = vmatprep.mubr.f32.mxu0 0.0
        %1288 = vmatmul.mubr.f32.gmra.mrb[0].mxu0 %v658
        %v1289 = vpop.f32.mrb[0].mxu0
        %v1290 = vadd.f32 %v381, %v1289
        %v1291 = vpop.f32.mrb[0].mxu0
        %1292 = vmatprep.mubr.f32.mxu0 0.0
        %1293 = vmatmul.mubr.f32.gmra.mrb[0].mxu0 %v661
        %v1294 = vpop.f32.mrb[0].mxu0
        %v1295 = vadd.f32 %v381, %v1294
        %v1296 = vpop.f32.mrb[0].mxu0
        %1297 = vmatprep.mubr.f32.mxu0 0.0
        %1298 = vmatmul.mubr.f32.gmra.mrb[0].mxu0 %v664
        %v1299 = vpop.f32.mrb[0].mxu0
        %v1300 = vadd.f32 %v381, %v1299
        %v1301 = vpop.f32.mrb[0].mxu0
        %1302 = vmatprep.mubr.f32.mxu0 0.0
        %1303 = vmatmul.mubr.f32.gmra.mrb[0].mxu0 %v667
        %v1304 = vpop.f32.mrb[0].mxu0
        %v1305 = vadd.f32 %v381, %v1304
        %v1306 = vpop.f32.mrb[0].mxu0
        %1307 = vmatprep.mubr.f32.mxu0 0.0
        %1308 = vmatmul.mubr.f32.gmra.mrb[0].mxu0 %v670
        %v1309 = vpop.f32.mrb[0].mxu0
        %v1310 = vadd.f32 %v381, %v1309
        %v1311 = vpop.f32.mrb[0].mxu0
        %1312 = vmatprep.mubr.f32.mxu0 0.0
        %1313 = vmatmul.mubr.f32.gmra.mrb[0].mxu0 %v673
        %v1314 = vpop.f32.mrb[0].mxu0
        %v1315 = vadd.f32 %v381, %v1314
        %v1316 = vpop.f32.mrb[0].mxu0
        %1317 = vmatprep.mubr.f32.mxu0 0.0
        %1318 = vmatmul.mubr.f32.gmra.mrb[0].mxu0 %v676
        %v1319 = vpop.f32.mrb[0].mxu0
        %v1320 = vadd.f32 %v381, %v1319
        %v1321 = vpop.f32.mrb[0].mxu0
        %1322 = vmatprep.mubr.f32.mxu0 0.0
        %1323 = vmatmul.mubr.f32.gmra.mrb[0].mxu0 %v679
        %v1324 = vpop.f32.mrb[0].mxu0
        %v1325 = vadd.f32 %v381, %v1324
        %v1326 = vpop.f32.mrb[0].mxu0
        %1327 = vmatprep.mubr.f32.mxu0 0.0
        %1328 = vmatmul.mubr.f32.gmra.mrb[0].mxu0 %v682
        %v1329 = vpop.f32.mrb[0].mxu0
        %v1330 = vadd.f32 %v381, %v1329
        %v1331 = vpop.f32.mrb[0].mxu0
        %1332 = vmatprep.mubr.f32.mxu0 0.0
        %1333 = vmatmul.mubr.f32.gmra.mrb[0].mxu0 %v685
        %v1334 = vpop.f32.mrb[0].mxu0
        %v1335 = vadd.f32 %v381, %v1334
        %v1336 = vpop.f32.mrb[0].mxu0
        %1337 = vmatprep.mubr.f32.mxu0 0.0
        %1338 = vmatmul.mubr.f32.gmra.mrb[0].mxu0 %v688
        %v1339 = vpop.f32.mrb[0].mxu0
        %v1340 = vadd.f32 %v381, %v1339
        %v1341 = vpop.f32.mrb[0].mxu0
        %1342 = vmatprep.mubr.f32.mxu0 0.0
        %1343 = vmatmul.mubr.f32.gmra.mrb[0].mxu0 %v691
        %v1344 = vpop.f32.mrb[0].mxu0
        %v1345 = vadd.f32 %v381, %v1344
        %v1346 = vpop.f32.mrb[0].mxu0
        %1347 = vmatprep.mubr.f32.mxu0 0.0
        %1348 = vmatmul.mubr.f32.gmra.mrb[0].mxu0 %v694
        %v1349 = vpop.f32.mrb[0].mxu0
        %v1350 = vadd.f32 %v381, %v1349
        %v1351 = vpop.f32.mrb[0].mxu0
        %1352 = vmatprep.mubr.f32.mxu0 0.0
        %1353 = vmatmul.mubr.f32.gmra.mrb[0].mxu0 %v697
        %v1354 = vpop.f32.mrb[0].mxu0
        %v1355 = vadd.f32 %v381, %v1354
        %v1356 = vpop.f32.mrb[0].mxu0
        %1357 = vmatprep.mubr.f32.mxu0 0.0
        %1358 = vmatmul.mubr.f32.gmra.mrb[0].mxu0 %v700
        %v1359 = vpop.f32.mrb[0].mxu0
        %v1360 = vadd.f32 %v381, %v1359
        %v1361 = vpop.f32.mrb[0].mxu0
        %1362 = vmatprep.mubr.f32.mxu0 0.0
        %1363 = vmatmul.mubr.f32.gmra.mrb[0].mxu0 %v703
        %v1364 = vpop.f32.mrb[0].mxu0
        %v1365 = vadd.f32 %v381, %v1364
        %v1366 = vpop.f32.mrb[0].mxu0
        %1367 = vmatprep.mubr.f32.mxu0 0.0
        %1368 = vmatmul.mubr.f32.gmra.mrb[0].mxu0 %v706
        %v1369 = vpop.f32.mrb[0].mxu0
        %v1370 = vadd.f32 %v381, %v1369
        %v1371 = vpop.f32.mrb[0].mxu0
        %1372 = vmatprep.mubr.f32.mxu0 0.0
        %1373 = vmatmul.mubr.f32.gmra.mrb[0].mxu0 %v709
        %v1374 = vpop.f32.mrb[0].mxu0
        %v1375 = vadd.f32 %v381, %v1374
        %v1376 = vpop.f32.mrb[0].mxu0
        %1377 = vmatprep.mubr.f32.mxu0 0.0
        %1378 = vmatmul.mubr.f32.gmra.mrb[0].mxu0 %v712
        %v1379 = vpop.f32.mrb[0].mxu0
        %v1380 = vadd.f32 %v381, %v1379
        %v1381 = vpop.f32.mrb[0].mxu0
        %1382 = vmatprep.mubr.f32.mxu0 0.0
        %1383 = vmatmul.mubr.f32.gmra.mrb[0].mxu0 %v715
        %v1384 = vpop.f32.mrb[0].mxu0
        %v1385 = vadd.f32 %v381, %v1384
        %v1386 = vpop.f32.mrb[0].mxu0
        %1387 = vmatprep.mubr.f32.mxu0 0.0
        %1388 = vmatmul.mubr.f32.gmra.mrb[0].mxu0 %v718
        %v1389 = vpop.f32.mrb[0].mxu0
        %v1390 = vadd.f32 %v381, %v1389
        %v1391 = vpop.f32.mrb[0].mxu0
        %1392 = vmatprep.mubr.f32.mxu0 0.0
        %1393 = vmatmul.mubr.f32.gmra.mrb[0].mxu0 %v721
        %v1394 = vpop.f32.mrb[0].mxu0
        %v1395 = vadd.f32 %v381, %v1394
        %v1396 = vpop.f32.mrb[0].mxu0
        %1397 = vmatprep.mubr.f32.mxu0 0.0
        %1398 = vmatmul.mubr.f32.gmra.mrb[0].mxu0 %v724
        %v1399 = vpop.f32.mrb[0].mxu0
        %v1400 = vadd.f32 %v381, %v1399
        %v1401 = vpop.f32.mrb[0].mxu0
        %1402 = vmatprep.mubr.f32.mxu0 0.0
        %1403 = vmatmul.mubr.f32.gmra.mrb[0].mxu0 %v727
        %v1404 = vpop.f32.mrb[0].mxu0
        %v1405 = vadd.f32 %v381, %v1404
        %v1406 = vpop.f32.mrb[0].mxu0
        %1407 = vmatprep.mubr.f32.mxu0 0.0
        %1408 = vmatmul.mubr.f32.gmra.mrb[0].mxu0 %v730
        %v1409 = vpop.f32.mrb[0].mxu0
        %v1410 = vadd.f32 %v381, %v1409
        %v1411 = vpop.f32.mrb[0].mxu0
        %1412 = vmatprep.mubr.f32.mxu0 0.0
        %1413 = vmatmul.mubr.f32.gmra.mrb[0].mxu0 %v733
        %v1414 = vpop.f32.mrb[0].mxu0
        %v1415 = vadd.f32 %v381, %v1414
        %v1416 = vpop.f32.mrb[0].mxu0
        %1417 = vmatprep.mubr.f32.mxu0 0.0
        %1418 = vmatmul.mubr.f32.gmra.mrb[0].mxu0 %v736
        %v1419 = vpop.f32.mrb[0].mxu0
        %v1420 = vadd.f32 %v381, %v1419
        %v1421 = vpop.f32.mrb[0].mxu0
        %1422 = vmatprep.mubr.f32.mxu0 0.0
        %1423 = vmatmul.mubr.f32.gmra.mrb[0].mxu0 %v739
        %v1424 = vpop.f32.mrb[0].mxu0
        %v1425 = vadd.f32 %v381, %v1424
        %v1426 = vpop.f32.mrb[0].mxu0
        %1427 = vmatprep.mubr.f32.mxu0 0.0
        %1428 = vmatmul.mubr.f32.gmra.mrb[0].mxu0 %v742
        %v1429 = vpop.f32.mrb[0].mxu0
        %v1430 = vadd.f32 %v381, %v1429
        %v1431 = vpop.f32.mrb[0].mxu0
        %1432 = vmatprep.mubr.f32.mxu0 0.0
        %1433 = vmatmul.mubr.f32.gmra.mrb[0].mxu0 %v745
        %v1434 = vpop.f32.mrb[0].mxu0
        %v1435 = vadd.f32 %v381, %v1434
        %v1436 = vpop.f32.mrb[0].mxu0
        %1437 = vmatprep.mubr.f32.mxu0 0.0
        %1438 = vmatmul.mubr.f32.gmra.mrb[0].mxu0 %v748
        %v1439 = vpop.f32.mrb[0].mxu0
        %v1440 = vadd.f32 %v381, %v1439
        %v1441 = vpop.f32.mrb[0].mxu0
        %1442 = vmatprep.mubr.f32.mxu0 0.0
        %1443 = vmatmul.mubr.f32.gmra.mrb[0].mxu0 %v751
        %v1444 = vpop.f32.mrb[0].mxu0
        %v1445 = vadd.f32 %v381, %v1444
        %v1446 = vpop.f32.mrb[0].mxu0
        %1447 = vmatprep.mubr.f32.mxu0 0.0
        %1448 = vmatmul.mubr.f32.gmra.mrb[0].mxu0 %v754
        %v1449 = vpop.f32.mrb[0].mxu0
        %v1450 = vadd.f32 %v381, %v1449
        %v1451 = vpop.f32.mrb[0].mxu0
        %1452 = vmatprep.mubr.f32.mxu0 0.0
        %1453 = vmatmul.mubr.f32.gmra.mrb[0].mxu0 %v757
        %v1454 = vpop.f32.mrb[0].mxu0
        %v1455 = vadd.f32 %v381, %v1454
        %v1456 = vpop.f32.mrb[0].mxu0
        %1457 = vmatprep.mubr.f32.mxu0 0.0
        %1458 = vmatmul.mubr.f32.gmra.mrb[0].mxu0 %v760
        %v1459 = vpop.f32.mrb[0].mxu0
        %v1460 = vadd.f32 %v381, %v1459
        %v1461 = vpop.f32.mrb[0].mxu0
        %1462 = vmatprep.mubr.f32.mxu0 0.0
        %1463 = vmatmul.mubr.f32.gmra.mrb[0].mxu0 %v763
        %v1464 = vpop.f32.mrb[0].mxu0
        %v1465 = vadd.f32 %v381, %v1464
        %v1466 = vpop.f32.mrb[0].mxu0
        %1467 = vmatprep.mubr.f32.mxu0 0.0
        %1468 = vmatmul.mubr.f32.gmra.mrb[0].mxu0 %v766
        %v1469 = vpop.f32.mrb[0].mxu0
        %v1470 = vadd.f32 %v381, %v1469
        %v1471 = vpop.f32.mrb[0].mxu0
        %1472 = vdwg.mxu0
        %v1473 = vmax.f32 %v835, 0.0
        %v1474 = vmax.f32 %v840, 0.0
        %v1475 = vmax.f32 %v845, 0.0
        %v1476 = vmax.f32 %v850, 0.0
        %v1477 = vmax.f32 %v855, 0.0
        %v1478 = vmax.f32 %v860, 0.0
        %v1479 = vmax.f32 %v865, 0.0
        %v1480 = vmax.f32 %v870, 0.0
        %v1481 = vmax.f32 %v875, 0.0
        %v1482 = vmax.f32 %v880, 0.0
        %v1483 = vmax.f32 %v885, 0.0
        %v1484 = vmax.f32 %v890, 0.0
        %v1485 = vmax.f32 %v895, 0.0
        %v1486 = vmax.f32 %v900, 0.0
        %v1487 = vmax.f32 %v905, 0.0
        %v1488 = vmax.f32 %v910, 0.0
        %v1489 = vmax.f32 %v915, 0.0
        %v1490 = vmax.f32 %v920, 0.0
        %v1491 = vmax.f32 %v925, 0.0
        %v1492 = vmax.f32 %v930, 0.0
        %v1493 = vmax.f32 %v935, 0.0
        %v1494 = vmax.f32 %v940, 0.0
        %v1495 = vmax.f32 %v945, 0.0
        %v1496 = vmax.f32 %v950, 0.0
        %v1497 = vmax.f32 %v955, 0.0
        %v1498 = vmax.f32 %v960, 0.0
        %v1499 = vmax.f32 %v965, 0.0
        %v1500 = vmax.f32 %v970, 0.0
        %v1501 = vmax.f32 %v975, 0.0
        %v1502 = vmax.f32 %v980, 0.0
        %v1503 = vmax.f32 %v985, 0.0
        %v1504 = vmax.f32 %v990, 0.0
        %v1505 = vmax.f32 %v995, 0.0
        %v1506 = vmax.f32 %v1000, 0.0
        %v1507 = vmax.f32 %v1005, 0.0
        %v1508 = vmax.f32 %v1010, 0.0
        %v1509 = vmax.f32 %v1015, 0.0
        %v1510 = vmax.f32 %v1020, 0.0
        %v1511 = vmax.f32 %v1025, 0.0
        %v1512 = vmax.f32 %v1030, 0.0
        %v1513 = vmax.f32 %v1035, 0.0
        %v1514 = vmax.f32 %v1040, 0.0
        %v1515 = vmax.f32 %v1045, 0.0
        %v1516 = vmax.f32 %v1050, 0.0
        %v1517 = vmax.f32 %v1055, 0.0
        %v1518 = vmax.f32 %v1060, 0.0
        %v1519 = vmax.f32 %v1065, 0.0
        %v1520 = vmax.f32 %v1070, 0.0
        %v1521 = vmax.f32 %v1075, 0.0
        %v1522 = vmax.f32 %v1080, 0.0
        %v1523 = vmax.f32 %v1085, 0.0
        %v1524 = vmax.f32 %v1090, 0.0
        %v1525 = vmax.f32 %v1095, 0.0
        %v1526 = vmax.f32 %v1100, 0.0
        %v1527 = vmax.f32 %v1105, 0.0
        %v1528 = vmax.f32 %v1110, 0.0
        %v1529 = vmax.f32 %v1115, 0.0
        %v1530 = vmax.f32 %v1120, 0.0
        %v1531 = vmax.f32 %v1125, 0.0
        %v1532 = vmax.f32 %v1130, 0.0
        %v1533 = vmax.f32 %v1135, 0.0
        %v1534 = vmax.f32 %v1140, 0.0
        %v1535 = vmax.f32 %v1145, 0.0
        %v1536 = vmax.f32 %v1150, 0.0
        %v1537 = vmax.f32 %v1155, 0.0
        %v1538 = vmax.f32 %v1160, 0.0
        %v1539 = vmax.f32 %v1165, 0.0
        %v1540 = vmax.f32 %v1170, 0.0
        %v1541 = vmax.f32 %v1175, 0.0
        %v1542 = vmax.f32 %v1180, 0.0
        %v1543 = vmax.f32 %v1185, 0.0
        %v1544 = vmax.f32 %v1190, 0.0
        %v1545 = vmax.f32 %v1195, 0.0
        %v1546 = vmax.f32 %v1200, 0.0
        %v1547 = vmax.f32 %v1205, 0.0
        %v1548 = vmax.f32 %v1210, 0.0
        %v1549 = vmax.f32 %v1215, 0.0
        %v1550 = vmax.f32 %v1220, 0.0
        %v1551 = vmax.f32 %v1225, 0.0
        %v1552 = vmax.f32 %v1230, 0.0
        %v1553 = vmax.f32 %v1235, 0.0
        %v1554 = vmax.f32 %v1240, 0.0
        %v1555 = vmax.f32 %v1245, 0.0
        %v1556 = vmax.f32 %v1250, 0.0
        %v1557 = vmax.f32 %v1255, 0.0
        %v1558 = vmax.f32 %v1260, 0.0
        %v1559 = vmax.f32 %v1265, 0.0
        %v1560 = vmax.f32 %v1270, 0.0
        %v1561 = vmax.f32 %v1275, 0.0
        %v1562 = vmax.f32 %v1280, 0.0
        %v1563 = vmax.f32 %v1285, 0.0
        %v1564 = vmax.f32 %v1290, 0.0
        %v1565 = vmax.f32 %v1295, 0.0
        %v1566 = vmax.f32 %v1300, 0.0
        %v1567 = vmax.f32 %v1305, 0.0
        %v1568 = vmax.f32 %v1310, 0.0
        %v1569 = vmax.f32 %v1315, 0.0
        %v1570 = vmax.f32 %v1320, 0.0
        %v1571 = vmax.f32 %v1325, 0.0
        %v1572 = vmax.f32 %v1330, 0.0
        %v1573 = vmax.f32 %v1335, 0.0
        %v1574 = vmax.f32 %v1340, 0.0
        %v1575 = vmax.f32 %v1345, 0.0
        %v1576 = vmax.f32 %v1350, 0.0
        %v1577 = vmax.f32 %v1355, 0.0
        %v1578 = vmax.f32 %v1360, 0.0
        %v1579 = vmax.f32 %v1365, 0.0
        %v1580 = vmax.f32 %v1370, 0.0
        %v1581 = vmax.f32 %v1375, 0.0
        %v1582 = vmax.f32 %v1380, 0.0
        %v1583 = vmax.f32 %v1385, 0.0
        %v1584 = vmax.f32 %v1390, 0.0
        %v1585 = vmax.f32 %v1395, 0.0
        %v1586 = vmax.f32 %v1400, 0.0
        %v1587 = vmax.f32 %v1405, 0.0
        %v1588 = vmax.f32 %v1410, 0.0
        %v1589 = vmax.f32 %v1415, 0.0
        %v1590 = vmax.f32 %v1420, 0.0
        %v1591 = vmax.f32 %v1425, 0.0
        %v1592 = vmax.f32 %v1430, 0.0
        %v1593 = vmax.f32 %v1435, 0.0
        %v1594 = vmax.f32 %v1440, 0.0
        %v1595 = vmax.f32 %v1445, 0.0
        %v1596 = vmax.f32 %v1450, 0.0
        %v1597 = vmax.f32 %v1455, 0.0
        %v1598 = vmax.f32 %v1460, 0.0
        %v1599 = vmax.f32 %v1465, 0.0
        %v1600 = vmax.f32 %v1470, 0.0
        %v1601 = vld [vmem:[%s2] sm:$0xff]
        %v1602 = vld [vmem:[%s2 + $0x8] sm:$0xff]
        %v1603 = vld [vmem:[%s2 + $0x10] sm:$0xff]
        %v1604 = vld [vmem:[%s2 + $0x18] sm:$0xff]
        %v1605 = vld [vmem:[%s4] sm:$0x1]
        %v1607 = vlaneseq
        %v1608 = vshrl.u32 %v1607, 7
        %v1609 = vsub.s32 0, %v1608
        %v1610 = vrot.slane %v1605, %v1609
        %vm1612 = vcmask 261120
        %v1614 = vsel %vm1612, %v1473, 0
        %v1617 = vsel %vm1612, %v1474, 0
        %v1620 = vsel %vm1612, %v1475, 0
        %v1623 = vsel %vm1612, %v1476, 0
        %v1626 = vsel %vm1612, %v1477, 0
        %v1629 = vsel %vm1612, %v1478, 0
        %v1632 = vsel %vm1612, %v1479, 0
        %v1635 = vsel %vm1612, %v1480, 0
        %v1638 = vsel %vm1612, %v1481, 0
        %v1641 = vsel %vm1612, %v1482, 0
        %v1644 = vsel %vm1612, %v1483, 0
        %v1647 = vsel %vm1612, %v1484, 0
        %v1650 = vsel %vm1612, %v1485, 0
        %v1653 = vsel %vm1612, %v1486, 0
        %v1656 = vsel %vm1612, %v1487, 0
        %v1659 = vsel %vm1612, %v1488, 0
        %v1662 = vsel %vm1612, %v1489, 0
        %v1665 = vsel %vm1612, %v1490, 0
        %v1668 = vsel %vm1612, %v1491, 0
        %v1671 = vsel %vm1612, %v1492, 0
        %v1674 = vsel %vm1612, %v1493, 0
        %v1677 = vsel %vm1612, %v1494, 0
        %v1680 = vsel %vm1612, %v1495, 0
        %v1683 = vsel %vm1612, %v1496, 0
        %v1686 = vsel %vm1612, %v1497, 0
        %v1689 = vsel %vm1612, %v1498, 0
        %v1692 = vsel %vm1612, %v1499, 0
        %v1695 = vsel %vm1612, %v1500, 0
        %v1698 = vsel %vm1612, %v1501, 0
        %v1701 = vsel %vm1612, %v1502, 0
        %v1704 = vsel %vm1612, %v1503, 0
        %v1707 = vsel %vm1612, %v1504, 0
        %v1710 = vsel %vm1612, %v1505, 0
        %v1713 = vsel %vm1612, %v1506, 0
        %v1716 = vsel %vm1612, %v1507, 0
        %v1719 = vsel %vm1612, %v1508, 0
        %v1722 = vsel %vm1612, %v1509, 0
        %v1725 = vsel %vm1612, %v1510, 0
        %v1728 = vsel %vm1612, %v1511, 0
        %v1731 = vsel %vm1612, %v1512, 0
        %v1734 = vsel %vm1612, %v1513, 0
        %v1737 = vsel %vm1612, %v1514, 0
        %v1740 = vsel %vm1612, %v1515, 0
        %v1743 = vsel %vm1612, %v1516, 0
        %v1746 = vsel %vm1612, %v1517, 0
        %v1749 = vsel %vm1612, %v1518, 0
        %v1752 = vsel %vm1612, %v1519, 0
        %v1755 = vsel %vm1612, %v1520, 0
        %v1758 = vsel %vm1612, %v1521, 0
        %v1761 = vsel %vm1612, %v1522, 0
        %v1764 = vsel %vm1612, %v1523, 0
        %v1767 = vsel %vm1612, %v1524, 0
        %v1770 = vsel %vm1612, %v1525, 0
        %v1773 = vsel %vm1612, %v1526, 0
        %v1776 = vsel %vm1612, %v1527, 0
        %v1779 = vsel %vm1612, %v1528, 0
        %v1782 = vsel %vm1612, %v1529, 0
        %v1785 = vsel %vm1612, %v1530, 0
        %v1788 = vsel %vm1612, %v1531, 0
        %v1791 = vsel %vm1612, %v1532, 0
        %v1794 = vsel %vm1612, %v1533, 0
        %v1797 = vsel %vm1612, %v1534, 0
        %v1800 = vsel %vm1612, %v1535, 0
        %v1803 = vsel %vm1612, %v1536, 0
        %v1806 = vsel %vm1612, %v1537, 0
        %v1809 = vsel %vm1612, %v1538, 0
        %v1812 = vsel %vm1612, %v1539, 0
        %v1815 = vsel %vm1612, %v1540, 0
        %v1818 = vsel %vm1612, %v1541, 0
        %v1821 = vsel %vm1612, %v1542, 0
        %v1824 = vsel %vm1612, %v1543, 0
        %v1827 = vsel %vm1612, %v1544, 0
        %v1830 = vsel %vm1612, %v1545, 0
        %v1833 = vsel %vm1612, %v1546, 0
        %v1836 = vsel %vm1612, %v1547, 0
        %v1839 = vsel %vm1612, %v1548, 0
        %v1842 = vsel %vm1612, %v1549, 0
        %v1845 = vsel %vm1612, %v1550, 0
        %v1848 = vsel %vm1612, %v1551, 0
        %v1851 = vsel %vm1612, %v1552, 0
        %v1854 = vsel %vm1612, %v1553, 0
        %v1857 = vsel %vm1612, %v1554, 0
        %v1860 = vsel %vm1612, %v1555, 0
        %v1863 = vsel %vm1612, %v1556, 0
        %v1866 = vsel %vm1612, %v1557, 0
        %v1869 = vsel %vm1612, %v1558, 0
        %v1872 = vsel %vm1612, %v1559, 0
        %v1875 = vsel %vm1612, %v1560, 0
        %v1878 = vsel %vm1612, %v1561, 0
        %v1881 = vsel %vm1612, %v1562, 0
        %v1884 = vsel %vm1612, %v1563, 0
        %v1887 = vsel %vm1612, %v1564, 0
        %v1890 = vsel %vm1612, %v1565, 0
        %v1893 = vsel %vm1612, %v1566, 0
        %v1896 = vsel %vm1612, %v1567, 0
        %v1899 = vsel %vm1612, %v1568, 0
        %v1902 = vsel %vm1612, %v1569, 0
        %v1905 = vsel %vm1612, %v1570, 0
        %v1908 = vsel %vm1612, %v1571, 0
        %v1911 = vsel %vm1612, %v1572, 0
        %v1914 = vsel %vm1612, %v1573, 0
        %v1917 = vsel %vm1612, %v1574, 0
        %v1920 = vsel %vm1612, %v1575, 0
        %v1923 = vsel %vm1612, %v1576, 0
        %v1926 = vsel %vm1612, %v1577, 0
        %v1929 = vsel %vm1612, %v1578, 0
        %v1932 = vsel %vm1612, %v1579, 0
        %v1935 = vsel %vm1612, %v1580, 0
        %v1938 = vsel %vm1612, %v1581, 0
        %v1941 = vsel %vm1612, %v1582, 0
        %v1944 = vsel %vm1612, %v1583, 0
        %v1947 = vsel %vm1612, %v1584, 0
        %v1950 = vsel %vm1612, %v1585, 0
        %v1953 = vsel %vm1612, %v1586, 0
        %v1956 = vsel %vm1612, %v1587, 0
        %v1959 = vsel %vm1612, %v1588, 0
        %v1962 = vsel %vm1612, %v1589, 0
        %v1965 = vsel %vm1612, %v1590, 0
        %v1968 = vsel %vm1612, %v1591, 0
        %v1971 = vsel %vm1612, %v1592, 0
        %v1974 = vsel %vm1612, %v1593, 0
        %v1977 = vsel %vm1612, %v1594, 0
        %v1980 = vsel %vm1612, %v1595, 0
        %v1983 = vsel %vm1612, %v1596, 0
        %v1986 = vsel %vm1612, %v1597, 0
        %v1989 = vsel %vm1612, %v1598, 0
        %v1992 = vsel %vm1612, %v1599, 0
        %v1995 = vsel %vm1612, %v1600, 0
        %1997 = vmatprep.subr.mxu0 0.0
        %1998 = vmatpush1.msra.mxu0 %v1601
        %1999 = vmatprep.subr.mxu0 0.0
        %2000 = vmatpush1.msra.mxu0 %v1602
        %2001 = vmatprep.subr.mxu0 0.0
        %2002 = vmatpush1.msra.mxu0 %v1603
        %2003 = vmatprep.subr.mxu0 0.0
        %2004 = vmatpush1.msra.mxu0 %v1604
        %2005 = vmatprep.subr.mxu0 0.0
        %2006 = vmatpush1.msra.mxu0 0.0
        %2007 = vmatprep.subr.mxu0 0.0
        %2008 = vmatpush1.msra.mxu0 0.0
        %2009 = vmatprep.subr.mxu0 0.0
        %2010 = vmatpush1.msra.mxu0 0.0
        %2011 = vmatprep.subr.mxu0 0.0
        %2012 = vmatpush1.msra.mxu0 0.0
        %2013 = vmatprep.subr.mxu0 0.0
        %2014 = vmatpush1.msra.mxu0 0.0
        %2015 = vmatprep.subr.mxu0 0.0
        %2016 = vmatpush1.msra.mxu0 0.0
        %2017 = vmatprep.subr.mxu0 0.0
        %2018 = vmatpush1.msra.mxu0 0.0
        %2019 = vmatprep.subr.mxu0 0.0
        %2020 = vmatpush1.msra.mxu0 0.0
        %2021 = vmatprep.subr.mxu0 0.0
        %2022 = vmatpush1.msra.mxu0 0.0
        %2023 = vmatprep.subr.mxu0 0.0
        %2024 = vmatpush1.msra.mxu0 0.0
        %2025 = vmatprep.subr.mxu0 0.0
        %2026 = vmatpush1.msra.mxu0 0.0
        %2027 = vmatprep.subr.mxu0 0.0
        %2028 = vmatpush1.msra.mxu0 0.0
        %2029 = vmatprep.subr.mxu0 0.0
        %2030 = vmatpush1.msra.mxu0 0.0
        %2031 = vmatprep.subr.mxu0 0.0
        %2032 = vmatpush1.msra.mxu0 0.0
        %2033 = vmatprep.subr.mxu0 0.0
        %2034 = vmatpush1.msra.mxu0 0.0
        %2035 = vmatprep.subr.mxu0 0.0
        %2036 = vmatpush1.msra.mxu0 0.0
        %2037 = vmatprep.subr.mxu0 0.0
        %2038 = vmatpush1.msra.mxu0 0.0
        %2039 = vmatprep.subr.mxu0 0.0
        %2040 = vmatpush1.msra.mxu0 0.0
        %2041 = vmatprep.subr.mxu0 0.0
        %2042 = vmatpush1.msra.mxu0 0.0
        %2043 = vmatprep.subr.mxu0 0.0
        %2044 = vmatpush1.msra.mxu0 0.0
        %2045 = vmatprep.subr.mxu0 0.0
        %2046 = vmatpush1.msra.mxu0 0.0
        %2047 = vmatprep.subr.mxu0 0.0
        %2048 = vmatpush1.msra.mxu0 0.0
        %2049 = vmatprep.subr.mxu0 0.0
        %2050 = vmatpush1.msra.mxu0 0.0
        %2051 = vmatprep.subr.mxu0 0.0
        %2052 = vmatpush1.msra.mxu0 0.0
        %2053 = vmatprep.subr.mxu0 0.0
        %2054 = vmatpush1.msra.mxu0 0.0
        %2055 = vmatprep.subr.mxu0 0.0
        %2056 = vmatpush1.msra.mxu0 0.0
        %2057 = vmatprep.subr.mxu0 0.0
        %2058 = vmatpush1.msra.mxu0 0.0
        %2059 = vmatprep.subr.mxu0 0.0
        %2060 = vmatpush1.msra.mxu0 0.0
        %2061 = vmatprep.mubr.f32.mxu0 0.0
        %2062 = vmatmul.mubr.f32.gmra.mrb[0].mxu0 %v1614
        %v2063 = vpop.f32.mrb[0].mxu0
        %v2064 = vadd.f32 %v1610, %v2063
        %v2065 = vpop.f32.mrb[0].mxu0
        %2066 = vmatprep.mubr.f32.mxu0 0.0
        %2067 = vmatmul.mubr.f32.gmra.mrb[0].mxu0 %v1617
        %v2068 = vpop.f32.mrb[0].mxu0
        %v2069 = vadd.f32 %v1610, %v2068
        %v2070 = vpop.f32.mrb[0].mxu0
        %2071 = vmatprep.mubr.f32.mxu0 0.0
        %2072 = vmatmul.mubr.f32.gmra.mrb[0].mxu0 %v1620
        %v2073 = vpop.f32.mrb[0].mxu0
        %v2074 = vadd.f32 %v1610, %v2073
        %v2075 = vpop.f32.mrb[0].mxu0
        %2076 = vmatprep.mubr.f32.mxu0 0.0
        %2077 = vmatmul.mubr.f32.gmra.mrb[0].mxu0 %v1623
        %v2078 = vpop.f32.mrb[0].mxu0
        %v2079 = vadd.f32 %v1610, %v2078
        %v2080 = vpop.f32.mrb[0].mxu0
        %2081 = vmatprep.mubr.f32.mxu0 0.0
        %2082 = vmatmul.mubr.f32.gmra.mrb[0].mxu0 %v1626
        %v2083 = vpop.f32.mrb[0].mxu0
        %v2084 = vadd.f32 %v1610, %v2083
        %v2085 = vpop.f32.mrb[0].mxu0
        %2086 = vmatprep.mubr.f32.mxu0 0.0
        %2087 = vmatmul.mubr.f32.gmra.mrb[0].mxu0 %v1629
        %v2088 = vpop.f32.mrb[0].mxu0
        %v2089 = vadd.f32 %v1610, %v2088
        %v2090 = vpop.f32.mrb[0].mxu0
        %2091 = vmatprep.mubr.f32.mxu0 0.0
        %2092 = vmatmul.mubr.f32.gmra.mrb[0].mxu0 %v1632
        %v2093 = vpop.f32.mrb[0].mxu0
        %v2094 = vadd.f32 %v1610, %v2093
        %v2095 = vpop.f32.mrb[0].mxu0
        %2096 = vmatprep.mubr.f32.mxu0 0.0
        %2097 = vmatmul.mubr.f32.gmra.mrb[0].mxu0 %v1635
        %v2098 = vpop.f32.mrb[0].mxu0
        %v2099 = vadd.f32 %v1610, %v2098
        %v2100 = vpop.f32.mrb[0].mxu0
        %2101 = vmatprep.mubr.f32.mxu0 0.0
        %2102 = vmatmul.mubr.f32.gmra.mrb[0].mxu0 %v1638
        %v2103 = vpop.f32.mrb[0].mxu0
        %v2104 = vadd.f32 %v1610, %v2103
        %v2105 = vpop.f32.mrb[0].mxu0
        %2106 = vmatprep.mubr.f32.mxu0 0.0
        %2107 = vmatmul.mubr.f32.gmra.mrb[0].mxu0 %v1641
        %v2108 = vpop.f32.mrb[0].mxu0
        %v2109 = vadd.f32 %v1610, %v2108
        %v2110 = vpop.f32.mrb[0].mxu0
        %2111 = vmatprep.mubr.f32.mxu0 0.0
        %2112 = vmatmul.mubr.f32.gmra.mrb[0].mxu0 %v1644
        %v2113 = vpop.f32.mrb[0].mxu0
        %v2114 = vadd.f32 %v1610, %v2113
        %v2115 = vpop.f32.mrb[0].mxu0
        %2116 = vmatprep.mubr.f32.mxu0 0.0
        %2117 = vmatmul.mubr.f32.gmra.mrb[0].mxu0 %v1647
        %v2118 = vpop.f32.mrb[0].mxu0
        %v2119 = vadd.f32 %v1610, %v2118
        %v2120 = vpop.f32.mrb[0].mxu0
        %2121 = vmatprep.mubr.f32.mxu0 0.0
        %2122 = vmatmul.mubr.f32.gmra.mrb[0].mxu0 %v1650
        %v2123 = vpop.f32.mrb[0].mxu0
        %v2124 = vadd.f32 %v1610, %v2123
        %v2125 = vpop.f32.mrb[0].mxu0
        %2126 = vmatprep.mubr.f32.mxu0 0.0
        %2127 = vmatmul.mubr.f32.gmra.mrb[0].mxu0 %v1653
        %v2128 = vpop.f32.mrb[0].mxu0
        %v2129 = vadd.f32 %v1610, %v2128
        %v2130 = vpop.f32.mrb[0].mxu0
        %2131 = vmatprep.mubr.f32.mxu0 0.0
        %2132 = vmatmul.mubr.f32.gmra.mrb[0].mxu0 %v1656
        %v2133 = vpop.f32.mrb[0].mxu0
        %v2134 = vadd.f32 %v1610, %v2133
        %v2135 = vpop.f32.mrb[0].mxu0
        %2136 = vmatprep.mubr.f32.mxu0 0.0
        %2137 = vmatmul.mubr.f32.gmra.mrb[0].mxu0 %v1659
        %v2138 = vpop.f32.mrb[0].mxu0
        %v2139 = vadd.f32 %v1610, %v2138
        %v2140 = vpop.f32.mrb[0].mxu0
        %2141 = vmatprep.mubr.f32.mxu0 0.0
        %2142 = vmatmul.mubr.f32.gmra.mrb[0].mxu0 %v1662
        %v2143 = vpop.f32.mrb[0].mxu0
        %v2144 = vadd.f32 %v1610, %v2143
        %v2145 = vpop.f32.mrb[0].mxu0
        %2146 = vmatprep.mubr.f32.mxu0 0.0
        %2147 = vmatmul.mubr.f32.gmra.mrb[0].mxu0 %v1665
        %v2148 = vpop.f32.mrb[0].mxu0
        %v2149 = vadd.f32 %v1610, %v2148
        %v2150 = vpop.f32.mrb[0].mxu0
        %2151 = vmatprep.mubr.f32.mxu0 0.0
        %2152 = vmatmul.mubr.f32.gmra.mrb[0].mxu0 %v1668
        %v2153 = vpop.f32.mrb[0].mxu0
        %v2154 = vadd.f32 %v1610, %v2153
        %v2155 = vpop.f32.mrb[0].mxu0
        %2156 = vmatprep.mubr.f32.mxu0 0.0
        %2157 = vmatmul.mubr.f32.gmra.mrb[0].mxu0 %v1671
        %v2158 = vpop.f32.mrb[0].mxu0
        %v2159 = vadd.f32 %v1610, %v2158
        %v2160 = vpop.f32.mrb[0].mxu0
        %2161 = vmatprep.mubr.f32.mxu0 0.0
        %2162 = vmatmul.mubr.f32.gmra.mrb[0].mxu0 %v1674
        %v2163 = vpop.f32.mrb[0].mxu0
        %v2164 = vadd.f32 %v1610, %v2163
        %v2165 = vpop.f32.mrb[0].mxu0
        %2166 = vmatprep.mubr.f32.mxu0 0.0
        %2167 = vmatmul.mubr.f32.gmra.mrb[0].mxu0 %v1677
        %v2168 = vpop.f32.mrb[0].mxu0
        %v2169 = vadd.f32 %v1610, %v2168
        %v2170 = vpop.f32.mrb[0].mxu0
        %2171 = vmatprep.mubr.f32.mxu0 0.0
        %2172 = vmatmul.mubr.f32.gmra.mrb[0].mxu0 %v1680
        %v2173 = vpop.f32.mrb[0].mxu0
        %v2174 = vadd.f32 %v1610, %v2173
        %v2175 = vpop.f32.mrb[0].mxu0
        %2176 = vmatprep.mubr.f32.mxu0 0.0
        %2177 = vmatmul.mubr.f32.gmra.mrb[0].mxu0 %v1683
        %v2178 = vpop.f32.mrb[0].mxu0
        %v2179 = vadd.f32 %v1610, %v2178
        %v2180 = vpop.f32.mrb[0].mxu0
        %2181 = vmatprep.mubr.f32.mxu0 0.0
        %2182 = vmatmul.mubr.f32.gmra.mrb[0].mxu0 %v1686
        %v2183 = vpop.f32.mrb[0].mxu0
        %v2184 = vadd.f32 %v1610, %v2183
        %v2185 = vpop.f32.mrb[0].mxu0
        %2186 = vmatprep.mubr.f32.mxu0 0.0
        %2187 = vmatmul.mubr.f32.gmra.mrb[0].mxu0 %v1689
        %v2188 = vpop.f32.mrb[0].mxu0
        %v2189 = vadd.f32 %v1610, %v2188
        %v2190 = vpop.f32.mrb[0].mxu0
        %2191 = vmatprep.mubr.f32.mxu0 0.0
        %2192 = vmatmul.mubr.f32.gmra.mrb[0].mxu0 %v1692
        %v2193 = vpop.f32.mrb[0].mxu0
        %v2194 = vadd.f32 %v1610, %v2193
        %v2195 = vpop.f32.mrb[0].mxu0
        %2196 = vmatprep.mubr.f32.mxu0 0.0
        %2197 = vmatmul.mubr.f32.gmra.mrb[0].mxu0 %v1695
        %v2198 = vpop.f32.mrb[0].mxu0
        %v2199 = vadd.f32 %v1610, %v2198
        %v2200 = vpop.f32.mrb[0].mxu0
        %2201 = vmatprep.mubr.f32.mxu0 0.0
        %2202 = vmatmul.mubr.f32.gmra.mrb[0].mxu0 %v1698
        %v2203 = vpop.f32.mrb[0].mxu0
        %v2204 = vadd.f32 %v1610, %v2203
        %v2205 = vpop.f32.mrb[0].mxu0
        %2206 = vmatprep.mubr.f32.mxu0 0.0
        %2207 = vmatmul.mubr.f32.gmra.mrb[0].mxu0 %v1701
        %v2208 = vpop.f32.mrb[0].mxu0
        %v2209 = vadd.f32 %v1610, %v2208
        %v2210 = vpop.f32.mrb[0].mxu0
        %2211 = vmatprep.mubr.f32.mxu0 0.0
        %2212 = vmatmul.mubr.f32.gmra.mrb[0].mxu0 %v1704
        %v2213 = vpop.f32.mrb[0].mxu0
        %v2214 = vadd.f32 %v1610, %v2213
        %v2215 = vpop.f32.mrb[0].mxu0
        %2216 = vmatprep.mubr.f32.mxu0 0.0
        %2217 = vmatmul.mubr.f32.gmra.mrb[0].mxu0 %v1707
        %v2218 = vpop.f32.mrb[0].mxu0
        %v2219 = vadd.f32 %v1610, %v2218
        %v2220 = vpop.f32.mrb[0].mxu0
        %2221 = vmatprep.mubr.f32.mxu0 0.0
        %2222 = vmatmul.mubr.f32.gmra.mrb[0].mxu0 %v1710
        %v2223 = vpop.f32.mrb[0].mxu0
        %v2224 = vadd.f32 %v1610, %v2223
        %v2225 = vpop.f32.mrb[0].mxu0
        %2226 = vmatprep.mubr.f32.mxu0 0.0
        %2227 = vmatmul.mubr.f32.gmra.mrb[0].mxu0 %v1713
        %v2228 = vpop.f32.mrb[0].mxu0
        %v2229 = vadd.f32 %v1610, %v2228
        %v2230 = vpop.f32.mrb[0].mxu0
        %2231 = vmatprep.mubr.f32.mxu0 0.0
        %2232 = vmatmul.mubr.f32.gmra.mrb[0].mxu0 %v1716
        %v2233 = vpop.f32.mrb[0].mxu0
        %v2234 = vadd.f32 %v1610, %v2233
        %v2235 = vpop.f32.mrb[0].mxu0
        %2236 = vmatprep.mubr.f32.mxu0 0.0
        %2237 = vmatmul.mubr.f32.gmra.mrb[0].mxu0 %v1719
        %v2238 = vpop.f32.mrb[0].mxu0
        %v2239 = vadd.f32 %v1610, %v2238
        %v2240 = vpop.f32.mrb[0].mxu0
        %2241 = vmatprep.mubr.f32.mxu0 0.0
        %2242 = vmatmul.mubr.f32.gmra.mrb[0].mxu0 %v1722
        %v2243 = vpop.f32.mrb[0].mxu0
        %v2244 = vadd.f32 %v1610, %v2243
        %v2245 = vpop.f32.mrb[0].mxu0
        %2246 = vmatprep.mubr.f32.mxu0 0.0
        %2247 = vmatmul.mubr.f32.gmra.mrb[0].mxu0 %v1725
        %v2248 = vpop.f32.mrb[0].mxu0
        %v2249 = vadd.f32 %v1610, %v2248
        %v2250 = vpop.f32.mrb[0].mxu0
        %2251 = vmatprep.mubr.f32.mxu0 0.0
        %2252 = vmatmul.mubr.f32.gmra.mrb[0].mxu0 %v1728
        %v2253 = vpop.f32.mrb[0].mxu0
        %v2254 = vadd.f32 %v1610, %v2253
        %v2255 = vpop.f32.mrb[0].mxu0
        %2256 = vmatprep.mubr.f32.mxu0 0.0
        %2257 = vmatmul.mubr.f32.gmra.mrb[0].mxu0 %v1731
        %v2258 = vpop.f32.mrb[0].mxu0
        %v2259 = vadd.f32 %v1610, %v2258
        %v2260 = vpop.f32.mrb[0].mxu0
        %2261 = vmatprep.mubr.f32.mxu0 0.0
        %2262 = vmatmul.mubr.f32.gmra.mrb[0].mxu0 %v1734
        %v2263 = vpop.f32.mrb[0].mxu0
        %v2264 = vadd.f32 %v1610, %v2263
        %v2265 = vpop.f32.mrb[0].mxu0
        %2266 = vmatprep.mubr.f32.mxu0 0.0
        %2267 = vmatmul.mubr.f32.gmra.mrb[0].mxu0 %v1737
        %v2268 = vpop.f32.mrb[0].mxu0
        %v2269 = vadd.f32 %v1610, %v2268
        %v2270 = vpop.f32.mrb[0].mxu0
        %2271 = vmatprep.mubr.f32.mxu0 0.0
        %2272 = vmatmul.mubr.f32.gmra.mrb[0].mxu0 %v1740
        %v2273 = vpop.f32.mrb[0].mxu0
        %v2274 = vadd.f32 %v1610, %v2273
        %v2275 = vpop.f32.mrb[0].mxu0
        %2276 = vmatprep.mubr.f32.mxu0 0.0
        %2277 = vmatmul.mubr.f32.gmra.mrb[0].mxu0 %v1743
        %v2278 = vpop.f32.mrb[0].mxu0
        %v2279 = vadd.f32 %v1610, %v2278
        %v2280 = vpop.f32.mrb[0].mxu0
        %2281 = vmatprep.mubr.f32.mxu0 0.0
        %2282 = vmatmul.mubr.f32.gmra.mrb[0].mxu0 %v1746
        %v2283 = vpop.f32.mrb[0].mxu0
        %v2284 = vadd.f32 %v1610, %v2283
        %v2285 = vpop.f32.mrb[0].mxu0
        %2286 = vmatprep.mubr.f32.mxu0 0.0
        %2287 = vmatmul.mubr.f32.gmra.mrb[0].mxu0 %v1749
        %v2288 = vpop.f32.mrb[0].mxu0
        %v2289 = vadd.f32 %v1610, %v2288
        %v2290 = vpop.f32.mrb[0].mxu0
        %2291 = vmatprep.mubr.f32.mxu0 0.0
        %2292 = vmatmul.mubr.f32.gmra.mrb[0].mxu0 %v1752
        %v2293 = vpop.f32.mrb[0].mxu0
        %v2294 = vadd.f32 %v1610, %v2293
        %v2295 = vpop.f32.mrb[0].mxu0
        %2296 = vmatprep.mubr.f32.mxu0 0.0
        %2297 = vmatmul.mubr.f32.gmra.mrb[0].mxu0 %v1755
        %v2298 = vpop.f32.mrb[0].mxu0
        %v2299 = vadd.f32 %v1610, %v2298
        %v2300 = vpop.f32.mrb[0].mxu0
        %2301 = vmatprep.mubr.f32.mxu0 0.0
        %2302 = vmatmul.mubr.f32.gmra.mrb[0].mxu0 %v1758
        %v2303 = vpop.f32.mrb[0].mxu0
        %v2304 = vadd.f32 %v1610, %v2303
        %v2305 = vpop.f32.mrb[0].mxu0
        %2306 = vmatprep.mubr.f32.mxu0 0.0
        %2307 = vmatmul.mubr.f32.gmra.mrb[0].mxu0 %v1761
        %v2308 = vpop.f32.mrb[0].mxu0
        %v2309 = vadd.f32 %v1610, %v2308
        %v2310 = vpop.f32.mrb[0].mxu0
        %2311 = vmatprep.mubr.f32.mxu0 0.0
        %2312 = vmatmul.mubr.f32.gmra.mrb[0].mxu0 %v1764
        %v2313 = vpop.f32.mrb[0].mxu0
        %v2314 = vadd.f32 %v1610, %v2313
        %v2315 = vpop.f32.mrb[0].mxu0
        %2316 = vmatprep.mubr.f32.mxu0 0.0
        %2317 = vmatmul.mubr.f32.gmra.mrb[0].mxu0 %v1767
        %v2318 = vpop.f32.mrb[0].mxu0
        %v2319 = vadd.f32 %v1610, %v2318
        %v2320 = vpop.f32.mrb[0].mxu0
        %2321 = vmatprep.mubr.f32.mxu0 0.0
        %2322 = vmatmul.mubr.f32.gmra.mrb[0].mxu0 %v1770
        %v2323 = vpop.f32.mrb[0].mxu0
        %v2324 = vadd.f32 %v1610, %v2323
        %v2325 = vpop.f32.mrb[0].mxu0
        %2326 = vmatprep.mubr.f32.mxu0 0.0
        %2327 = vmatmul.mubr.f32.gmra.mrb[0].mxu0 %v1773
        %v2328 = vpop.f32.mrb[0].mxu0
        %v2329 = vadd.f32 %v1610, %v2328
        %v2330 = vpop.f32.mrb[0].mxu0
        %2331 = vmatprep.mubr.f32.mxu0 0.0
        %2332 = vmatmul.mubr.f32.gmra.mrb[0].mxu0 %v1776
        %v2333 = vpop.f32.mrb[0].mxu0
        %v2334 = vadd.f32 %v1610, %v2333
        %v2335 = vpop.f32.mrb[0].mxu0
        %2336 = vmatprep.mubr.f32.mxu0 0.0
        %2337 = vmatmul.mubr.f32.gmra.mrb[0].mxu0 %v1779
        %v2338 = vpop.f32.mrb[0].mxu0
        %v2339 = vadd.f32 %v1610, %v2338
        %v2340 = vpop.f32.mrb[0].mxu0
        %2341 = vmatprep.mubr.f32.mxu0 0.0
        %2342 = vmatmul.mubr.f32.gmra.mrb[0].mxu0 %v1782
        %v2343 = vpop.f32.mrb[0].mxu0
        %v2344 = vadd.f32 %v1610, %v2343
        %v2345 = vpop.f32.mrb[0].mxu0
        %2346 = vmatprep.mubr.f32.mxu0 0.0
        %2347 = vmatmul.mubr.f32.gmra.mrb[0].mxu0 %v1785
        %v2348 = vpop.f32.mrb[0].mxu0
        %v2349 = vadd.f32 %v1610, %v2348
        %v2350 = vpop.f32.mrb[0].mxu0
        %2351 = vmatprep.mubr.f32.mxu0 0.0
        %2352 = vmatmul.mubr.f32.gmra.mrb[0].mxu0 %v1788
        %v2353 = vpop.f32.mrb[0].mxu0
        %v2354 = vadd.f32 %v1610, %v2353
        %v2355 = vpop.f32.mrb[0].mxu0
        %2356 = vmatprep.mubr.f32.mxu0 0.0
        %2357 = vmatmul.mubr.f32.gmra.mrb[0].mxu0 %v1791
        %v2358 = vpop.f32.mrb[0].mxu0
        %v2359 = vadd.f32 %v1610, %v2358
        %v2360 = vpop.f32.mrb[0].mxu0
        %2361 = vmatprep.mubr.f32.mxu0 0.0
        %2362 = vmatmul.mubr.f32.gmra.mrb[0].mxu0 %v1794
        %v2363 = vpop.f32.mrb[0].mxu0
        %v2364 = vadd.f32 %v1610, %v2363
        %v2365 = vpop.f32.mrb[0].mxu0
        %2366 = vmatprep.mubr.f32.mxu0 0.0
        %2367 = vmatmul.mubr.f32.gmra.mrb[0].mxu0 %v1797
        %v2368 = vpop.f32.mrb[0].mxu0
        %v2369 = vadd.f32 %v1610, %v2368
        %v2370 = vpop.f32.mrb[0].mxu0
        %2371 = vmatprep.mubr.f32.mxu0 0.0
        %2372 = vmatmul.mubr.f32.gmra.mrb[0].mxu0 %v1800
        %v2373 = vpop.f32.mrb[0].mxu0
        %v2374 = vadd.f32 %v1610, %v2373
        %v2375 = vpop.f32.mrb[0].mxu0
        %2376 = vmatprep.mubr.f32.mxu0 0.0
        %2377 = vmatmul.mubr.f32.gmra.mrb[0].mxu0 %v1803
        %v2378 = vpop.f32.mrb[0].mxu0
        %v2379 = vadd.f32 %v1610, %v2378
        %v2380 = vpop.f32.mrb[0].mxu0
        %2381 = vmatprep.mubr.f32.mxu0 0.0
        %2382 = vmatmul.mubr.f32.gmra.mrb[0].mxu0 %v1806
        %v2383 = vpop.f32.mrb[0].mxu0
        %v2384 = vadd.f32 %v1610, %v2383
        %v2385 = vpop.f32.mrb[0].mxu0
        %2386 = vmatprep.mubr.f32.mxu0 0.0
        %2387 = vmatmul.mubr.f32.gmra.mrb[0].mxu0 %v1809
        %v2388 = vpop.f32.mrb[0].mxu0
        %v2389 = vadd.f32 %v1610, %v2388
        %v2390 = vpop.f32.mrb[0].mxu0
        %2391 = vmatprep.mubr.f32.mxu0 0.0
        %2392 = vmatmul.mubr.f32.gmra.mrb[0].mxu0 %v1812
        %v2393 = vpop.f32.mrb[0].mxu0
        %v2394 = vadd.f32 %v1610, %v2393
        %v2395 = vpop.f32.mrb[0].mxu0
        %2396 = vmatprep.mubr.f32.mxu0 0.0
        %2397 = vmatmul.mubr.f32.gmra.mrb[0].mxu0 %v1815
        %v2398 = vpop.f32.mrb[0].mxu0
        %v2399 = vadd.f32 %v1610, %v2398
        %v2400 = vpop.f32.mrb[0].mxu0
        %2401 = vmatprep.mubr.f32.mxu0 0.0
        %2402 = vmatmul.mubr.f32.gmra.mrb[0].mxu0 %v1818
        %v2403 = vpop.f32.mrb[0].mxu0
        %v2404 = vadd.f32 %v1610, %v2403
        %v2405 = vpop.f32.mrb[0].mxu0
        %2406 = vmatprep.mubr.f32.mxu0 0.0
        %2407 = vmatmul.mubr.f32.gmra.mrb[0].mxu0 %v1821
        %v2408 = vpop.f32.mrb[0].mxu0
        %v2409 = vadd.f32 %v1610, %v2408
        %v2410 = vpop.f32.mrb[0].mxu0
        %2411 = vmatprep.mubr.f32.mxu0 0.0
        %2412 = vmatmul.mubr.f32.gmra.mrb[0].mxu0 %v1824
        %v2413 = vpop.f32.mrb[0].mxu0
        %v2414 = vadd.f32 %v1610, %v2413
        %v2415 = vpop.f32.mrb[0].mxu0
        %2416 = vmatprep.mubr.f32.mxu0 0.0
        %2417 = vmatmul.mubr.f32.gmra.mrb[0].mxu0 %v1827
        %v2418 = vpop.f32.mrb[0].mxu0
        %v2419 = vadd.f32 %v1610, %v2418
        %v2420 = vpop.f32.mrb[0].mxu0
        %2421 = vmatprep.mubr.f32.mxu0 0.0
        %2422 = vmatmul.mubr.f32.gmra.mrb[0].mxu0 %v1830
        %v2423 = vpop.f32.mrb[0].mxu0
        %v2424 = vadd.f32 %v1610, %v2423
        %v2425 = vpop.f32.mrb[0].mxu0
        %2426 = vmatprep.mubr.f32.mxu0 0.0
        %2427 = vmatmul.mubr.f32.gmra.mrb[0].mxu0 %v1833
        %v2428 = vpop.f32.mrb[0].mxu0
        %v2429 = vadd.f32 %v1610, %v2428
        %v2430 = vpop.f32.mrb[0].mxu0
        %2431 = vmatprep.mubr.f32.mxu0 0.0
        %2432 = vmatmul.mubr.f32.gmra.mrb[0].mxu0 %v1836
        %v2433 = vpop.f32.mrb[0].mxu0
        %v2434 = vadd.f32 %v1610, %v2433
        %v2435 = vpop.f32.mrb[0].mxu0
        %2436 = vmatprep.mubr.f32.mxu0 0.0
        %2437 = vmatmul.mubr.f32.gmra.mrb[0].mxu0 %v1839
        %v2438 = vpop.f32.mrb[0].mxu0
        %v2439 = vadd.f32 %v1610, %v2438
        %v2440 = vpop.f32.mrb[0].mxu0
        %2441 = vmatprep.mubr.f32.mxu0 0.0
        %2442 = vmatmul.mubr.f32.gmra.mrb[0].mxu0 %v1842
        %v2443 = vpop.f32.mrb[0].mxu0
        %v2444 = vadd.f32 %v1610, %v2443
        %v2445 = vpop.f32.mrb[0].mxu0
        %2446 = vmatprep.mubr.f32.mxu0 0.0
        %2447 = vmatmul.mubr.f32.gmra.mrb[0].mxu0 %v1845
        %v2448 = vpop.f32.mrb[0].mxu0
        %v2449 = vadd.f32 %v1610, %v2448
        %v2450 = vpop.f32.mrb[0].mxu0
        %2451 = vmatprep.mubr.f32.mxu0 0.0
        %2452 = vmatmul.mubr.f32.gmra.mrb[0].mxu0 %v1848
        %v2453 = vpop.f32.mrb[0].mxu0
        %v2454 = vadd.f32 %v1610, %v2453
        %v2455 = vpop.f32.mrb[0].mxu0
        %2456 = vmatprep.mubr.f32.mxu0 0.0
        %2457 = vmatmul.mubr.f32.gmra.mrb[0].mxu0 %v1851
        %v2458 = vpop.f32.mrb[0].mxu0
        %v2459 = vadd.f32 %v1610, %v2458
        %v2460 = vpop.f32.mrb[0].mxu0
        %2461 = vmatprep.mubr.f32.mxu0 0.0
        %2462 = vmatmul.mubr.f32.gmra.mrb[0].mxu0 %v1854
        %v2463 = vpop.f32.mrb[0].mxu0
        %v2464 = vadd.f32 %v1610, %v2463
        %v2465 = vpop.f32.mrb[0].mxu0
        %2466 = vmatprep.mubr.f32.mxu0 0.0
        %2467 = vmatmul.mubr.f32.gmra.mrb[0].mxu0 %v1857
        %v2468 = vpop.f32.mrb[0].mxu0
        %v2469 = vadd.f32 %v1610, %v2468
        %v2470 = vpop.f32.mrb[0].mxu0
        %2471 = vmatprep.mubr.f32.mxu0 0.0
        %2472 = vmatmul.mubr.f32.gmra.mrb[0].mxu0 %v1860
        %v2473 = vpop.f32.mrb[0].mxu0
        %v2474 = vadd.f32 %v1610, %v2473
        %v2475 = vpop.f32.mrb[0].mxu0
        %2476 = vmatprep.mubr.f32.mxu0 0.0
        %2477 = vmatmul.mubr.f32.gmra.mrb[0].mxu0 %v1863
        %v2478 = vpop.f32.mrb[0].mxu0
        %v2479 = vadd.f32 %v1610, %v2478
        %v2480 = vpop.f32.mrb[0].mxu0
        %2481 = vmatprep.mubr.f32.mxu0 0.0
        %2482 = vmatmul.mubr.f32.gmra.mrb[0].mxu0 %v1866
        %v2483 = vpop.f32.mrb[0].mxu0
        %v2484 = vadd.f32 %v1610, %v2483
        %v2485 = vpop.f32.mrb[0].mxu0
        %2486 = vmatprep.mubr.f32.mxu0 0.0
        %2487 = vmatmul.mubr.f32.gmra.mrb[0].mxu0 %v1869
        %v2488 = vpop.f32.mrb[0].mxu0
        %v2489 = vadd.f32 %v1610, %v2488
        %v2490 = vpop.f32.mrb[0].mxu0
        %2491 = vmatprep.mubr.f32.mxu0 0.0
        %2492 = vmatmul.mubr.f32.gmra.mrb[0].mxu0 %v1872
        %v2493 = vpop.f32.mrb[0].mxu0
        %v2494 = vadd.f32 %v1610, %v2493
        %v2495 = vpop.f32.mrb[0].mxu0
        %2496 = vmatprep.mubr.f32.mxu0 0.0
        %2497 = vmatmul.mubr.f32.gmra.mrb[0].mxu0 %v1875
        %v2498 = vpop.f32.mrb[0].mxu0
        %v2499 = vadd.f32 %v1610, %v2498
        %v2500 = vpop.f32.mrb[0].mxu0
        %2501 = vmatprep.mubr.f32.mxu0 0.0
        %2502 = vmatmul.mubr.f32.gmra.mrb[0].mxu0 %v1878
        %v2503 = vpop.f32.mrb[0].mxu0
        %v2504 = vadd.f32 %v1610, %v2503
        %v2505 = vpop.f32.mrb[0].mxu0
        %2506 = vmatprep.mubr.f32.mxu0 0.0
        %2507 = vmatmul.mubr.f32.gmra.mrb[0].mxu0 %v1881
        %v2508 = vpop.f32.mrb[0].mxu0
        %v2509 = vadd.f32 %v1610, %v2508
        %v2510 = vpop.f32.mrb[0].mxu0
        %2511 = vmatprep.mubr.f32.mxu0 0.0
        %2512 = vmatmul.mubr.f32.gmra.mrb[0].mxu0 %v1884
        %v2513 = vpop.f32.mrb[0].mxu0
        %v2514 = vadd.f32 %v1610, %v2513
        %v2515 = vpop.f32.mrb[0].mxu0
        %2516 = vmatprep.mubr.f32.mxu0 0.0
        %2517 = vmatmul.mubr.f32.gmra.mrb[0].mxu0 %v1887
        %v2518 = vpop.f32.mrb[0].mxu0
        %v2519 = vadd.f32 %v1610, %v2518
        %v2520 = vpop.f32.mrb[0].mxu0
        %2521 = vmatprep.mubr.f32.mxu0 0.0
        %2522 = vmatmul.mubr.f32.gmra.mrb[0].mxu0 %v1890
        %v2523 = vpop.f32.mrb[0].mxu0
        %v2524 = vadd.f32 %v1610, %v2523
        %v2525 = vpop.f32.mrb[0].mxu0
        %2526 = vmatprep.mubr.f32.mxu0 0.0
        %2527 = vmatmul.mubr.f32.gmra.mrb[0].mxu0 %v1893
        %v2528 = vpop.f32.mrb[0].mxu0
        %v2529 = vadd.f32 %v1610, %v2528
        %v2530 = vpop.f32.mrb[0].mxu0
        %2531 = vmatprep.mubr.f32.mxu0 0.0
        %2532 = vmatmul.mubr.f32.gmra.mrb[0].mxu0 %v1896
        %v2533 = vpop.f32.mrb[0].mxu0
        %v2534 = vadd.f32 %v1610, %v2533
        %v2535 = vpop.f32.mrb[0].mxu0
        %2536 = vmatprep.mubr.f32.mxu0 0.0
        %2537 = vmatmul.mubr.f32.gmra.mrb[0].mxu0 %v1899
        %v2538 = vpop.f32.mrb[0].mxu0
        %v2539 = vadd.f32 %v1610, %v2538
        %v2540 = vpop.f32.mrb[0].mxu0
        %2541 = vmatprep.mubr.f32.mxu0 0.0
        %2542 = vmatmul.mubr.f32.gmra.mrb[0].mxu0 %v1902
        %v2543 = vpop.f32.mrb[0].mxu0
        %v2544 = vadd.f32 %v1610, %v2543
        %v2545 = vpop.f32.mrb[0].mxu0
        %2546 = vmatprep.mubr.f32.mxu0 0.0
        %2547 = vmatmul.mubr.f32.gmra.mrb[0].mxu0 %v1905
        %v2548 = vpop.f32.mrb[0].mxu0
        %v2549 = vadd.f32 %v1610, %v2548
        %v2550 = vpop.f32.mrb[0].mxu0
        %2551 = vmatprep.mubr.f32.mxu0 0.0
        %2552 = vmatmul.mubr.f32.gmra.mrb[0].mxu0 %v1908
        %v2553 = vpop.f32.mrb[0].mxu0
        %v2554 = vadd.f32 %v1610, %v2553
        %v2555 = vpop.f32.mrb[0].mxu0
        %2556 = vmatprep.mubr.f32.mxu0 0.0
        %2557 = vmatmul.mubr.f32.gmra.mrb[0].mxu0 %v1911
        %v2558 = vpop.f32.mrb[0].mxu0
        %v2559 = vadd.f32 %v1610, %v2558
        %v2560 = vpop.f32.mrb[0].mxu0
        %2561 = vmatprep.mubr.f32.mxu0 0.0
        %2562 = vmatmul.mubr.f32.gmra.mrb[0].mxu0 %v1914
        %v2563 = vpop.f32.mrb[0].mxu0
        %v2564 = vadd.f32 %v1610, %v2563
        %v2565 = vpop.f32.mrb[0].mxu0
        %2566 = vmatprep.mubr.f32.mxu0 0.0
        %2567 = vmatmul.mubr.f32.gmra.mrb[0].mxu0 %v1917
        %v2568 = vpop.f32.mrb[0].mxu0
        %v2569 = vadd.f32 %v1610, %v2568
        %v2570 = vpop.f32.mrb[0].mxu0
        %2571 = vmatprep.mubr.f32.mxu0 0.0
        %2572 = vmatmul.mubr.f32.gmra.mrb[0].mxu0 %v1920
        %v2573 = vpop.f32.mrb[0].mxu0
        %v2574 = vadd.f32 %v1610, %v2573
        %v2575 = vpop.f32.mrb[0].mxu0
        %2576 = vmatprep.mubr.f32.mxu0 0.0
        %2577 = vmatmul.mubr.f32.gmra.mrb[0].mxu0 %v1923
        %v2578 = vpop.f32.mrb[0].mxu0
        %v2579 = vadd.f32 %v1610, %v2578
        %v2580 = vpop.f32.mrb[0].mxu0
        %2581 = vmatprep.mubr.f32.mxu0 0.0
        %2582 = vmatmul.mubr.f32.gmra.mrb[0].mxu0 %v1926
        %v2583 = vpop.f32.mrb[0].mxu0
        %v2584 = vadd.f32 %v1610, %v2583
        %v2585 = vpop.f32.mrb[0].mxu0
        %2586 = vmatprep.mubr.f32.mxu0 0.0
        %2587 = vmatmul.mubr.f32.gmra.mrb[0].mxu0 %v1929
        %v2588 = vpop.f32.mrb[0].mxu0
        %v2589 = vadd.f32 %v1610, %v2588
        %v2590 = vpop.f32.mrb[0].mxu0
        %2591 = vmatprep.mubr.f32.mxu0 0.0
        %2592 = vmatmul.mubr.f32.gmra.mrb[0].mxu0 %v1932
        %v2593 = vpop.f32.mrb[0].mxu0
        %v2594 = vadd.f32 %v1610, %v2593
        %v2595 = vpop.f32.mrb[0].mxu0
        %2596 = vmatprep.mubr.f32.mxu0 0.0
        %2597 = vmatmul.mubr.f32.gmra.mrb[0].mxu0 %v1935
        %v2598 = vpop.f32.mrb[0].mxu0
        %v2599 = vadd.f32 %v1610, %v2598
        %v2600 = vpop.f32.mrb[0].mxu0
        %2601 = vmatprep.mubr.f32.mxu0 0.0
        %2602 = vmatmul.mubr.f32.gmra.mrb[0].mxu0 %v1938
        %v2603 = vpop.f32.mrb[0].mxu0
        %v2604 = vadd.f32 %v1610, %v2603
        %v2605 = vpop.f32.mrb[0].mxu0
        %2606 = vmatprep.mubr.f32.mxu0 0.0
        %2607 = vmatmul.mubr.f32.gmra.mrb[0].mxu0 %v1941
        %v2608 = vpop.f32.mrb[0].mxu0
        %v2609 = vadd.f32 %v1610, %v2608
        %v2610 = vpop.f32.mrb[0].mxu0
        %2611 = vmatprep.mubr.f32.mxu0 0.0
        %2612 = vmatmul.mubr.f32.gmra.mrb[0].mxu0 %v1944
        %v2613 = vpop.f32.mrb[0].mxu0
        %v2614 = vadd.f32 %v1610, %v2613
        %v2615 = vpop.f32.mrb[0].mxu0
        %2616 = vmatprep.mubr.f32.mxu0 0.0
        %2617 = vmatmul.mubr.f32.gmra.mrb[0].mxu0 %v1947
        %v2618 = vpop.f32.mrb[0].mxu0
        %v2619 = vadd.f32 %v1610, %v2618
        %v2620 = vpop.f32.mrb[0].mxu0
        %2621 = vmatprep.mubr.f32.mxu0 0.0
        %2622 = vmatmul.mubr.f32.gmra.mrb[0].mxu0 %v1950
        %v2623 = vpop.f32.mrb[0].mxu0
        %v2624 = vadd.f32 %v1610, %v2623
        %v2625 = vpop.f32.mrb[0].mxu0
        %2626 = vmatprep.mubr.f32.mxu0 0.0
        %2627 = vmatmul.mubr.f32.gmra.mrb[0].mxu0 %v1953
        %v2628 = vpop.f32.mrb[0].mxu0
        %v2629 = vadd.f32 %v1610, %v2628
        %v2630 = vpop.f32.mrb[0].mxu0
        %2631 = vmatprep.mubr.f32.mxu0 0.0
        %2632 = vmatmul.mubr.f32.gmra.mrb[0].mxu0 %v1956
        %v2633 = vpop.f32.mrb[0].mxu0
        %v2634 = vadd.f32 %v1610, %v2633
        %v2635 = vpop.f32.mrb[0].mxu0
        %2636 = vmatprep.mubr.f32.mxu0 0.0
        %2637 = vmatmul.mubr.f32.gmra.mrb[0].mxu0 %v1959
        %v2638 = vpop.f32.mrb[0].mxu0
        %v2639 = vadd.f32 %v1610, %v2638
        %v2640 = vpop.f32.mrb[0].mxu0
        %2641 = vmatprep.mubr.f32.mxu0 0.0
        %2642 = vmatmul.mubr.f32.gmra.mrb[0].mxu0 %v1962
        %v2643 = vpop.f32.mrb[0].mxu0
        %v2644 = vadd.f32 %v1610, %v2643
        %v2645 = vpop.f32.mrb[0].mxu0
        %2646 = vmatprep.mubr.f32.mxu0 0.0
        %2647 = vmatmul.mubr.f32.gmra.mrb[0].mxu0 %v1965
        %v2648 = vpop.f32.mrb[0].mxu0
        %v2649 = vadd.f32 %v1610, %v2648
        %v2650 = vpop.f32.mrb[0].mxu0
        %2651 = vmatprep.mubr.f32.mxu0 0.0
        %2652 = vmatmul.mubr.f32.gmra.mrb[0].mxu0 %v1968
        %v2653 = vpop.f32.mrb[0].mxu0
        %v2654 = vadd.f32 %v1610, %v2653
        %v2655 = vpop.f32.mrb[0].mxu0
        %2656 = vmatprep.mubr.f32.mxu0 0.0
        %2657 = vmatmul.mubr.f32.gmra.mrb[0].mxu0 %v1971
        %v2658 = vpop.f32.mrb[0].mxu0
        %v2659 = vadd.f32 %v1610, %v2658
        %v2660 = vpop.f32.mrb[0].mxu0
        %2661 = vmatprep.mubr.f32.mxu0 0.0
        %2662 = vmatmul.mubr.f32.gmra.mrb[0].mxu0 %v1974
        %v2663 = vpop.f32.mrb[0].mxu0
        %v2664 = vadd.f32 %v1610, %v2663
        %v2665 = vpop.f32.mrb[0].mxu0
        %2666 = vmatprep.mubr.f32.mxu0 0.0
        %2667 = vmatmul.mubr.f32.gmra.mrb[0].mxu0 %v1977
        %v2668 = vpop.f32.mrb[0].mxu0
        %v2669 = vadd.f32 %v1610, %v2668
        %v2670 = vpop.f32.mrb[0].mxu0
        %2671 = vmatprep.mubr.f32.mxu0 0.0
        %2672 = vmatmul.mubr.f32.gmra.mrb[0].mxu0 %v1980
        %v2673 = vpop.f32.mrb[0].mxu0
        %v2674 = vadd.f32 %v1610, %v2673
        %v2675 = vpop.f32.mrb[0].mxu0
        %2676 = vmatprep.mubr.f32.mxu0 0.0
        %2677 = vmatmul.mubr.f32.gmra.mrb[0].mxu0 %v1983
        %v2678 = vpop.f32.mrb[0].mxu0
        %v2679 = vadd.f32 %v1610, %v2678
        %v2680 = vpop.f32.mrb[0].mxu0
        %2681 = vmatprep.mubr.f32.mxu0 0.0
        %2682 = vmatmul.mubr.f32.gmra.mrb[0].mxu0 %v1986
        %v2683 = vpop.f32.mrb[0].mxu0
        %v2684 = vadd.f32 %v1610, %v2683
        %v2685 = vpop.f32.mrb[0].mxu0
        %2686 = vmatprep.mubr.f32.mxu0 0.0
        %2687 = vmatmul.mubr.f32.gmra.mrb[0].mxu0 %v1989
        %v2688 = vpop.f32.mrb[0].mxu0
        %v2689 = vadd.f32 %v1610, %v2688
        %v2690 = vpop.f32.mrb[0].mxu0
        %2691 = vmatprep.mubr.f32.mxu0 0.0
        %2692 = vmatmul.mubr.f32.gmra.mrb[0].mxu0 %v1992
        %v2693 = vpop.f32.mrb[0].mxu0
        %v2694 = vadd.f32 %v1610, %v2693
        %v2695 = vpop.f32.mrb[0].mxu0
        %2696 = vmatprep.mubr.f32.mxu0 0.0
        %2697 = vmatmul.mubr.f32.gmra.mrb[0].mxu0 %v1995
        %v2698 = vpop.f32.mrb[0].mxu0
        %v2699 = vadd.f32 %v1610, %v2698
        %v2700 = vpop.f32.mrb[0].mxu0
        %2701 = vdwg.mxu0
        %v2702 = vmax.f32 %v2064, 0.0
        %v2703 = vmax.f32 %v2069, 0.0
        %v2704 = vmax.f32 %v2074, 0.0
        %v2705 = vmax.f32 %v2079, 0.0
        %v2706 = vmax.f32 %v2084, 0.0
        %v2707 = vmax.f32 %v2089, 0.0
        %v2708 = vmax.f32 %v2094, 0.0
        %v2709 = vmax.f32 %v2099, 0.0
        %v2710 = vmax.f32 %v2104, 0.0
        %v2711 = vmax.f32 %v2109, 0.0
        %v2712 = vmax.f32 %v2114, 0.0
        %v2713 = vmax.f32 %v2119, 0.0
        %v2714 = vmax.f32 %v2124, 0.0
        %v2715 = vmax.f32 %v2129, 0.0
        %v2716 = vmax.f32 %v2134, 0.0
        %v2717 = vmax.f32 %v2139, 0.0
        %v2718 = vmax.f32 %v2144, 0.0
        %v2719 = vmax.f32 %v2149, 0.0
        %v2720 = vmax.f32 %v2154, 0.0
        %v2721 = vmax.f32 %v2159, 0.0
        %v2722 = vmax.f32 %v2164, 0.0
        %v2723 = vmax.f32 %v2169, 0.0
        %v2724 = vmax.f32 %v2174, 0.0
        %v2725 = vmax.f32 %v2179, 0.0
        %v2726 = vmax.f32 %v2184, 0.0
        %v2727 = vmax.f32 %v2189, 0.0
        %v2728 = vmax.f32 %v2194, 0.0
        %v2729 = vmax.f32 %v2199, 0.0
        %v2730 = vmax.f32 %v2204, 0.0
        %v2731 = vmax.f32 %v2209, 0.0
        %v2732 = vmax.f32 %v2214, 0.0
        %v2733 = vmax.f32 %v2219, 0.0
        %v2734 = vmax.f32 %v2224, 0.0
        %v2735 = vmax.f32 %v2229, 0.0
        %v2736 = vmax.f32 %v2234, 0.0
        %v2737 = vmax.f32 %v2239, 0.0
        %v2738 = vmax.f32 %v2244, 0.0
        %v2739 = vmax.f32 %v2249, 0.0
        %v2740 = vmax.f32 %v2254, 0.0
        %v2741 = vmax.f32 %v2259, 0.0
        %v2742 = vmax.f32 %v2264, 0.0
        %v2743 = vmax.f32 %v2269, 0.0
        %v2744 = vmax.f32 %v2274, 0.0
        %v2745 = vmax.f32 %v2279, 0.0
        %v2746 = vmax.f32 %v2284, 0.0
        %v2747 = vmax.f32 %v2289, 0.0
        %v2748 = vmax.f32 %v2294, 0.0
        %v2749 = vmax.f32 %v2299, 0.0
        %v2750 = vmax.f32 %v2304, 0.0
        %v2751 = vmax.f32 %v2309, 0.0
        %v2752 = vmax.f32 %v2314, 0.0
        %v2753 = vmax.f32 %v2319, 0.0
        %v2754 = vmax.f32 %v2324, 0.0
        %v2755 = vmax.f32 %v2329, 0.0
        %v2756 = vmax.f32 %v2334, 0.0
        %v2757 = vmax.f32 %v2339, 0.0
        %v2758 = vmax.f32 %v2344, 0.0
        %v2759 = vmax.f32 %v2349, 0.0
        %v2760 = vmax.f32 %v2354, 0.0
        %v2761 = vmax.f32 %v2359, 0.0
        %v2762 = vmax.f32 %v2364, 0.0
        %v2763 = vmax.f32 %v2369, 0.0
        %v2764 = vmax.f32 %v2374, 0.0
        %v2765 = vmax.f32 %v2379, 0.0
        %v2766 = vmax.f32 %v2384, 0.0
        %v2767 = vmax.f32 %v2389, 0.0
        %v2768 = vmax.f32 %v2394, 0.0
        %v2769 = vmax.f32 %v2399, 0.0
        %v2770 = vmax.f32 %v2404, 0.0
        %v2771 = vmax.f32 %v2409, 0.0
        %v2772 = vmax.f32 %v2414, 0.0
        %v2773 = vmax.f32 %v2419, 0.0
        %v2774 = vmax.f32 %v2424, 0.0
        %v2775 = vmax.f32 %v2429, 0.0
        %v2776 = vmax.f32 %v2434, 0.0
        %v2777 = vmax.f32 %v2439, 0.0
        %v2778 = vmax.f32 %v2444, 0.0
        %v2779 = vmax.f32 %v2449, 0.0
        %v2780 = vmax.f32 %v2454, 0.0
        %v2781 = vmax.f32 %v2459, 0.0
        %v2782 = vmax.f32 %v2464, 0.0
        %v2783 = vmax.f32 %v2469, 0.0
        %v2784 = vmax.f32 %v2474, 0.0
        %v2785 = vmax.f32 %v2479, 0.0
        %v2786 = vmax.f32 %v2484, 0.0
        %v2787 = vmax.f32 %v2489, 0.0
        %v2788 = vmax.f32 %v2494, 0.0
        %v2789 = vmax.f32 %v2499, 0.0
        %v2790 = vmax.f32 %v2504, 0.0
        %v2791 = vmax.f32 %v2509, 0.0
        %v2792 = vmax.f32 %v2514, 0.0
        %v2793 = vmax.f32 %v2519, 0.0
        %v2794 = vmax.f32 %v2524, 0.0
        %v2795 = vmax.f32 %v2529, 0.0
        %v2796 = vmax.f32 %v2534, 0.0
        %v2797 = vmax.f32 %v2539, 0.0
        %v2798 = vmax.f32 %v2544, 0.0
        %v2799 = vmax.f32 %v2549, 0.0
        %v2800 = vmax.f32 %v2554, 0.0
        %v2801 = vmax.f32 %v2559, 0.0
        %v2802 = vmax.f32 %v2564, 0.0
        %v2803 = vmax.f32 %v2569, 0.0
        %v2804 = vmax.f32 %v2574, 0.0
        %v2805 = vmax.f32 %v2579, 0.0
        %v2806 = vmax.f32 %v2584, 0.0
        %v2807 = vmax.f32 %v2589, 0.0
        %v2808 = vmax.f32 %v2594, 0.0
        %v2809 = vmax.f32 %v2599, 0.0
        %v2810 = vmax.f32 %v2604, 0.0
        %v2811 = vmax.f32 %v2609, 0.0
        %v2812 = vmax.f32 %v2614, 0.0
        %v2813 = vmax.f32 %v2619, 0.0
        %v2814 = vmax.f32 %v2624, 0.0
        %v2815 = vmax.f32 %v2629, 0.0
        %v2816 = vmax.f32 %v2634, 0.0
        %v2817 = vmax.f32 %v2639, 0.0
        %v2818 = vmax.f32 %v2644, 0.0
        %v2819 = vmax.f32 %v2649, 0.0
        %v2820 = vmax.f32 %v2654, 0.0
        %v2821 = vmax.f32 %v2659, 0.0
        %v2822 = vmax.f32 %v2664, 0.0
        %v2823 = vmax.f32 %v2669, 0.0
        %v2824 = vmax.f32 %v2674, 0.0
        %v2825 = vmax.f32 %v2679, 0.0
        %v2826 = vmax.f32 %v2684, 0.0
        %v2827 = vmax.f32 %v2689, 0.0
        %v2828 = vmax.f32 %v2694, 0.0
        %v2829 = vmax.f32 %v2699, 0.0
        %2830 = vst.msk [vmem:[%s226] sm:$0xff] %vm383, %v2702
        %2831 = vst.msk [vmem:[%s226 + $0x8] sm:$0xff] %vm383, %v2703
        %2832 = vst.msk [vmem:[%s226 + $0x10] sm:$0xff] %vm383, %v2704
        %2833 = vst.msk [vmem:[%s226 + $0x18] sm:$0xff] %vm383, %v2705
        %2834 = vst.msk [vmem:[%s226 + $0x20] sm:$0xff] %vm383, %v2706
        %2835 = vst.msk [vmem:[%s226 + $0x28] sm:$0xff] %vm383, %v2707
        %2836 = vst.msk [vmem:[%s226 + $0x30] sm:$0xff] %vm383, %v2708
        %2837 = vst.msk [vmem:[%s226 + $0x38] sm:$0xff] %vm383, %v2709
        %2838 = vst.msk [vmem:[%s226 + $0x40] sm:$0xff] %vm383, %v2710
        %2839 = vst.msk [vmem:[%s226 + $0x48] sm:$0xff] %vm383, %v2711
        %2840 = vst.msk [vmem:[%s226 + $0x50] sm:$0xff] %vm383, %v2712
        %2841 = vst.msk [vmem:[%s226 + $0x58] sm:$0xff] %vm383, %v2713
        %2842 = vst.msk [vmem:[%s226 + $0x60] sm:$0xff] %vm383, %v2714
        %2843 = vst.msk [vmem:[%s226 + $0x68] sm:$0xff] %vm383, %v2715
        %2844 = vst.msk [vmem:[%s226 + $0x70] sm:$0xff] %vm383, %v2716
        %2845 = vst.msk [vmem:[%s226 + $0x78] sm:$0xff] %vm383, %v2717
        %2846 = vst.msk [vmem:[%s226 + $0x80] sm:$0xff] %vm383, %v2718
        %2847 = vst.msk [vmem:[%s226 + $0x88] sm:$0xff] %vm383, %v2719
        %2848 = vst.msk [vmem:[%s226 + $0x90] sm:$0xff] %vm383, %v2720
        %2849 = vst.msk [vmem:[%s226 + $0x98] sm:$0xff] %vm383, %v2721
        %2850 = vst.msk [vmem:[%s226 + $0xa0] sm:$0xff] %vm383, %v2722
        %2851 = vst.msk [vmem:[%s226 + $0xa8] sm:$0xff] %vm383, %v2723
        %2852 = vst.msk [vmem:[%s226 + $0xb0] sm:$0xff] %vm383, %v2724
        %2853 = vst.msk [vmem:[%s226 + $0xb8] sm:$0xff] %vm383, %v2725
        %2854 = vst.msk [vmem:[%s226 + $0xc0] sm:$0xff] %vm383, %v2726
        %2855 = vst.msk [vmem:[%s226 + $0xc8] sm:$0xff] %vm383, %v2727
        %2856 = vst.msk [vmem:[%s226 + $0xd0] sm:$0xff] %vm383, %v2728
        %2857 = vst.msk [vmem:[%s226 + $0xd8] sm:$0xff] %vm383, %v2729
        %2858 = vst.msk [vmem:[%s226 + $0xe0] sm:$0xff] %vm383, %v2730
        %2859 = vst.msk [vmem:[%s226 + $0xe8] sm:$0xff] %vm383, %v2731
        %2860 = vst.msk [vmem:[%s226 + $0xf0] sm:$0xff] %vm383, %v2732
        %2861 = vst.msk [vmem:[%s226 + $0xf8] sm:$0xff] %vm383, %v2733
        %2862 = vst.msk [vmem:[%s226 + $0x100] sm:$0xff] %vm383, %v2734
        %2863 = vst.msk [vmem:[%s226 + $0x108] sm:$0xff] %vm383, %v2735
        %2864 = vst.msk [vmem:[%s226 + $0x110] sm:$0xff] %vm383, %v2736
        %2865 = vst.msk [vmem:[%s226 + $0x118] sm:$0xff] %vm383, %v2737
        %2866 = vst.msk [vmem:[%s226 + $0x120] sm:$0xff] %vm383, %v2738
        %2867 = vst.msk [vmem:[%s226 + $0x128] sm:$0xff] %vm383, %v2739
        %2868 = vst.msk [vmem:[%s226 + $0x130] sm:$0xff] %vm383, %v2740
        %2869 = vst.msk [vmem:[%s226 + $0x138] sm:$0xff] %vm383, %v2741
        %2870 = vst.msk [vmem:[%s226 + $0x140] sm:$0xff] %vm383, %v2742
        %2871 = vst.msk [vmem:[%s226 + $0x148] sm:$0xff] %vm383, %v2743
        %2872 = vst.msk [vmem:[%s226 + $0x150] sm:$0xff] %vm383, %v2744
        %2873 = vst.msk [vmem:[%s226 + $0x158] sm:$0xff] %vm383, %v2745
        %2874 = vst.msk [vmem:[%s226 + $0x160] sm:$0xff] %vm383, %v2746
        %2875 = vst.msk [vmem:[%s226 + $0x168] sm:$0xff] %vm383, %v2747
        %2876 = vst.msk [vmem:[%s226 + $0x170] sm:$0xff] %vm383, %v2748
        %2877 = vst.msk [vmem:[%s226 + $0x178] sm:$0xff] %vm383, %v2749
        %2878 = vst.msk [vmem:[%s226 + $0x180] sm:$0xff] %vm383, %v2750
        %2879 = vst.msk [vmem:[%s226 + $0x188] sm:$0xff] %vm383, %v2751
        %2880 = vst.msk [vmem:[%s226 + $0x190] sm:$0xff] %vm383, %v2752
        %2881 = vst.msk [vmem:[%s226 + $0x198] sm:$0xff] %vm383, %v2753
        %2882 = vst.msk [vmem:[%s226 + $0x1a0] sm:$0xff] %vm383, %v2754
        %2883 = vst.msk [vmem:[%s226 + $0x1a8] sm:$0xff] %vm383, %v2755
        %2884 = vst.msk [vmem:[%s226 + $0x1b0] sm:$0xff] %vm383, %v2756
        %2885 = vst.msk [vmem:[%s226 + $0x1b8] sm:$0xff] %vm383, %v2757
        %2886 = vst.msk [vmem:[%s226 + $0x1c0] sm:$0xff] %vm383, %v2758
        %2887 = vst.msk [vmem:[%s226 + $0x1c8] sm:$0xff] %vm383, %v2759
        %2888 = vst.msk [vmem:[%s226 + $0x1d0] sm:$0xff] %vm383, %v2760
        %2889 = vst.msk [vmem:[%s226 + $0x1d8] sm:$0xff] %vm383, %v2761
        %2890 = vst.msk [vmem:[%s226 + $0x1e0] sm:$0xff] %vm383, %v2762
        %2891 = vst.msk [vmem:[%s226 + $0x1e8] sm:$0xff] %vm383, %v2763
        %2892 = vst.msk [vmem:[%s226 + $0x1f0] sm:$0xff] %vm383, %v2764
        %2893 = vst.msk [vmem:[%s226 + $0x1f8] sm:$0xff] %vm383, %v2765
        %2894 = vst.msk [vmem:[%s226 + $0x200] sm:$0xff] %vm383, %v2766
        %2895 = vst.msk [vmem:[%s226 + $0x208] sm:$0xff] %vm383, %v2767
        %2896 = vst.msk [vmem:[%s226 + $0x210] sm:$0xff] %vm383, %v2768
        %2897 = vst.msk [vmem:[%s226 + $0x218] sm:$0xff] %vm383, %v2769
        %2898 = vst.msk [vmem:[%s226 + $0x220] sm:$0xff] %vm383, %v2770
        %2899 = vst.msk [vmem:[%s226 + $0x228] sm:$0xff] %vm383, %v2771
        %2900 = vst.msk [vmem:[%s226 + $0x230] sm:$0xff] %vm383, %v2772
        %2901 = vst.msk [vmem:[%s226 + $0x238] sm:$0xff] %vm383, %v2773
        %2902 = vst.msk [vmem:[%s226 + $0x240] sm:$0xff] %vm383, %v2774
        %2903 = vst.msk [vmem:[%s226 + $0x248] sm:$0xff] %vm383, %v2775
        %2904 = vst.msk [vmem:[%s226 + $0x250] sm:$0xff] %vm383, %v2776
        %2905 = vst.msk [vmem:[%s226 + $0x258] sm:$0xff] %vm383, %v2777
        %2906 = vst.msk [vmem:[%s226 + $0x260] sm:$0xff] %vm383, %v2778
        %2907 = vst.msk [vmem:[%s226 + $0x268] sm:$0xff] %vm383, %v2779
        %2908 = vst.msk [vmem:[%s226 + $0x270] sm:$0xff] %vm383, %v2780
        %2909 = vst.msk [vmem:[%s226 + $0x278] sm:$0xff] %vm383, %v2781
        %2910 = vst.msk [vmem:[%s226 + $0x280] sm:$0xff] %vm383, %v2782
        %2911 = vst.msk [vmem:[%s226 + $0x288] sm:$0xff] %vm383, %v2783
        %2912 = vst.msk [vmem:[%s226 + $0x290] sm:$0xff] %vm383, %v2784
        %2913 = vst.msk [vmem:[%s226 + $0x298] sm:$0xff] %vm383, %v2785
        %2914 = vst.msk [vmem:[%s226 + $0x2a0] sm:$0xff] %vm383, %v2786
        %2915 = vst.msk [vmem:[%s226 + $0x2a8] sm:$0xff] %vm383, %v2787
        %2916 = vst.msk [vmem:[%s226 + $0x2b0] sm:$0xff] %vm383, %v2788
        %2917 = vst.msk [vmem:[%s226 + $0x2b8] sm:$0xff] %vm383, %v2789
        %2918 = vst.msk [vmem:[%s226 + $0x2c0] sm:$0xff] %vm383, %v2790
        %2919 = vst.msk [vmem:[%s226 + $0x2c8] sm:$0xff] %vm383, %v2791
        %2920 = vst.msk [vmem:[%s226 + $0x2d0] sm:$0xff] %vm383, %v2792
        %2921 = vst.msk [vmem:[%s226 + $0x2d8] sm:$0xff] %vm383, %v2793
        %2922 = vst.msk [vmem:[%s226 + $0x2e0] sm:$0xff] %vm383, %v2794
        %2923 = vst.msk [vmem:[%s226 + $0x2e8] sm:$0xff] %vm383, %v2795
        %2924 = vst.msk [vmem:[%s226 + $0x2f0] sm:$0xff] %vm383, %v2796
        %2925 = vst.msk [vmem:[%s226 + $0x2f8] sm:$0xff] %vm383, %v2797
        %2926 = vst.msk [vmem:[%s226 + $0x300] sm:$0xff] %vm383, %v2798
        %2927 = vst.msk [vmem:[%s226 + $0x308] sm:$0xff] %vm383, %v2799
        %2928 = vst.msk [vmem:[%s226 + $0x310] sm:$0xff] %vm383, %v2800
        %2929 = vst.msk [vmem:[%s226 + $0x318] sm:$0xff] %vm383, %v2801
        %2930 = vst.msk [vmem:[%s226 + $0x320] sm:$0xff] %vm383, %v2802
        %2931 = vst.msk [vmem:[%s226 + $0x328] sm:$0xff] %vm383, %v2803
        %2932 = vst.msk [vmem:[%s226 + $0x330] sm:$0xff] %vm383, %v2804
        %2933 = vst.msk [vmem:[%s226 + $0x338] sm:$0xff] %vm383, %v2805
        %2934 = vst.msk [vmem:[%s226 + $0x340] sm:$0xff] %vm383, %v2806
        %2935 = vst.msk [vmem:[%s226 + $0x348] sm:$0xff] %vm383, %v2807
        %2936 = vst.msk [vmem:[%s226 + $0x350] sm:$0xff] %vm383, %v2808
        %2937 = vst.msk [vmem:[%s226 + $0x358] sm:$0xff] %vm383, %v2809
        %2938 = vst.msk [vmem:[%s226 + $0x360] sm:$0xff] %vm383, %v2810
        %2939 = vst.msk [vmem:[%s226 + $0x368] sm:$0xff] %vm383, %v2811
        %2940 = vst.msk [vmem:[%s226 + $0x370] sm:$0xff] %vm383, %v2812
        %2941 = vst.msk [vmem:[%s226 + $0x378] sm:$0xff] %vm383, %v2813
        %2942 = vst.msk [vmem:[%s226 + $0x380] sm:$0xff] %vm383, %v2814
        %2943 = vst.msk [vmem:[%s226 + $0x388] sm:$0xff] %vm383, %v2815
        %2944 = vst.msk [vmem:[%s226 + $0x390] sm:$0xff] %vm383, %v2816
        %2945 = vst.msk [vmem:[%s226 + $0x398] sm:$0xff] %vm383, %v2817
        %2946 = vst.msk [vmem:[%s226 + $0x3a0] sm:$0xff] %vm383, %v2818
        %2947 = vst.msk [vmem:[%s226 + $0x3a8] sm:$0xff] %vm383, %v2819
        %2948 = vst.msk [vmem:[%s226 + $0x3b0] sm:$0xff] %vm383, %v2820
        %2949 = vst.msk [vmem:[%s226 + $0x3b8] sm:$0xff] %vm383, %v2821
        %2950 = vst.msk [vmem:[%s226 + $0x3c0] sm:$0xff] %vm383, %v2822
        %2951 = vst.msk [vmem:[%s226 + $0x3c8] sm:$0xff] %vm383, %v2823
        %2952 = vst.msk [vmem:[%s226 + $0x3d0] sm:$0xff] %vm383, %v2824
        %2953 = vst.msk [vmem:[%s226 + $0x3d8] sm:$0xff] %vm383, %v2825
        %2954 = vst.msk [vmem:[%s226 + $0x3e0] sm:$0xff] %vm383, %v2826
        %2955 = vst.msk [vmem:[%s226 + $0x3e8] sm:$0xff] %vm383, %v2827
        %2956 = vst.msk [vmem:[%s226 + $0x3f0] sm:$0xff] %vm383, %v2828
        %2957 = vst.msk [vmem:[%s226 + $0x3f8] sm:$0xff] %vm383, %v2829
        %s2958 = sand.u32 %s134, 1
        %s2959 = sand.u32 %s134, 1
        %s2960 = smul.addr %s2959, 1024
        %s2961 = scalar_lea.vmem [#allocation2], %s2960
        // Predicated region
        $region41: #{_forward_impl.3} parent=39 // pred_check
          %p2962 = pneg %p144
        $region42: #{_forward_impl.3} parent=39 // pred_check_branch
          %2964 = sbr.rel (%p2962) target = $region44
        $region43: #{_forward_impl.3} parent=39 // pred_region
          %s2965 = smul.u32 128, %s16
          %s2966 = ssub.s32 313, %s2965
          %p2967 = scmp.lt.s32.totalorder %s2966, 128
          %s2968 = scalar_select %p2967, %s2966, 128
          %s2969 = smul.u32 128, %s2968
          %p2970 = scmp.ne.s32.totalorder 0, %s2969
          %s2971 = smul.addr %s2965, 8
          %s2972 = scalar_lea.vmem %s5, %s2971
          // Predicated region
          $region45: #{_forward_impl.3} parent=43 // pred_check
            %p2973 = pneg %p2970
          $region46: #{_forward_impl.3} parent=43 // pred_check_branch
            %2975 = sbr.rel (%p2973) target = $region48
          $region47: #{_forward_impl.3} parent=43 // pred_region
            // Predicated region
            $region49: #{_forward_impl.3} parent=47 // pred_check
              _
            $region50: #{_forward_impl.3} parent=47 // pred_check_branch
              %2977 = sbr.rel (0) target = $region52
            $region51: #{_forward_impl.3} parent=47 // pred_region
              // Predicated region
              $region71: #{_forward_impl.3} parent=51 // pred_check
                _
              $region72: #{_forward_impl.3} parent=51 // pred_check_branch
                %3152 = sbr.rel (0) target = $region74
              $region73: #{_forward_impl.3} parent=51 // pred_region
                %s3153 = sshrl.u32 %s2968, 6
                // While loop
                $region75: #{_forward_impl.3} parent=73 // loop_pre_header
                  _
                $region76: #{_forward_impl.3} parent=73 // loop_header
                  %s3155 = sphi 0, %s3157
                  %p3156 = scmp.ge.s32.totalorder %s3155, %s3153
                  %s3160 = sphi 0, %s3293
                  %s3161 = sphi %s2961, %s3296
                  %s3162 = sphi %s2972, %s3297
                $region77: #{_forward_impl.3} parent=73 // loop_header_branch
                  %3159 = sbr.rel (%p3156) target = $region81
                $region78: #{_forward_impl.3} parent=73 // loop_body
                  %v3163 = vld [vmem:[%s3161] sm:$0xff]
                  %3164 = vst [vmem:[%s3162] sm:$0xff] %v3163
                  %v3165 = vld [vmem:[%s3161 + $0x8] sm:$0xff]
                  %3166 = vst [vmem:[%s3162 + $0x8] sm:$0xff] %v3165
                  %v3167 = vld [vmem:[%s3161 + $0x10] sm:$0xff]
                  %3168 = vst [vmem:[%s3162 + $0x10] sm:$0xff] %v3167
                  %v3169 = vld [vmem:[%s3161 + $0x18] sm:$0xff]
                  %3170 = vst [vmem:[%s3162 + $0x18] sm:$0xff] %v3169
                  %v3171 = vld [vmem:[%s3161 + $0x20] sm:$0xff]
                  %3172 = vst [vmem:[%s3162 + $0x20] sm:$0xff] %v3171
                  %v3173 = vld [vmem:[%s3161 + $0x28] sm:$0xff]
                  %3174 = vst [vmem:[%s3162 + $0x28] sm:$0xff] %v3173
                  %v3175 = vld [vmem:[%s3161 + $0x30] sm:$0xff]
                  %3176 = vst [vmem:[%s3162 + $0x30] sm:$0xff] %v3175
                  %v3177 = vld [vmem:[%s3161 + $0x38] sm:$0xff]
                  %3178 = vst [vmem:[%s3162 + $0x38] sm:$0xff] %v3177
                  %v3179 = vld [vmem:[%s3161 + $0x40] sm:$0xff]
                  %3180 = vst [vmem:[%s3162 + $0x40] sm:$0xff] %v3179
                  %v3181 = vld [vmem:[%s3161 + $0x48] sm:$0xff]
                  %3182 = vst [vmem:[%s3162 + $0x48] sm:$0xff] %v3181
                  %v3183 = vld [vmem:[%s3161 + $0x50] sm:$0xff]
                  %3184 = vst [vmem:[%s3162 + $0x50] sm:$0xff] %v3183
                  %v3185 = vld [vmem:[%s3161 + $0x58] sm:$0xff]
                  %3186 = vst [vmem:[%s3162 + $0x58] sm:$0xff] %v3185
                  %v3187 = vld [vmem:[%s3161 + $0x60] sm:$0xff]
                  %3188 = vst [vmem:[%s3162 + $0x60] sm:$0xff] %v3187
                  %v3189 = vld [vmem:[%s3161 + $0x68] sm:$0xff]
                  %3190 = vst [vmem:[%s3162 + $0x68] sm:$0xff] %v3189
                  %v3191 = vld [vmem:[%s3161 + $0x70] sm:$0xff]
                  %3192 = vst [vmem:[%s3162 + $0x70] sm:$0xff] %v3191
                  %v3193 = vld [vmem:[%s3161 + $0x78] sm:$0xff]
                  %3194 = vst [vmem:[%s3162 + $0x78] sm:$0xff] %v3193
                  %v3195 = vld [vmem:[%s3161 + $0x80] sm:$0xff]
                  %3196 = vst [vmem:[%s3162 + $0x80] sm:$0xff] %v3195
                  %v3197 = vld [vmem:[%s3161 + $0x88] sm:$0xff]
                  %3198 = vst [vmem:[%s3162 + $0x88] sm:$0xff] %v3197
                  %v3199 = vld [vmem:[%s3161 + $0x90] sm:$0xff]
                  %3200 = vst [vmem:[%s3162 + $0x90] sm:$0xff] %v3199
                  %v3201 = vld [vmem:[%s3161 + $0x98] sm:$0xff]
                  %3202 = vst [vmem:[%s3162 + $0x98] sm:$0xff] %v3201
                  %v3203 = vld [vmem:[%s3161 + $0xa0] sm:$0xff]
                  %3204 = vst [vmem:[%s3162 + $0xa0] sm:$0xff] %v3203
                  %v3205 = vld [vmem:[%s3161 + $0xa8] sm:$0xff]
                  %3206 = vst [vmem:[%s3162 + $0xa8] sm:$0xff] %v3205
                  %v3207 = vld [vmem:[%s3161 + $0xb0] sm:$0xff]
                  %3208 = vst [vmem:[%s3162 + $0xb0] sm:$0xff] %v3207
                  %v3209 = vld [vmem:[%s3161 + $0xb8] sm:$0xff]
                  %3210 = vst [vmem:[%s3162 + $0xb8] sm:$0xff] %v3209
                  %v3211 = vld [vmem:[%s3161 + $0xc0] sm:$0xff]
                  %3212 = vst [vmem:[%s3162 + $0xc0] sm:$0xff] %v3211
                  %v3213 = vld [vmem:[%s3161 + $0xc8] sm:$0xff]
                  %3214 = vst [vmem:[%s3162 + $0xc8] sm:$0xff] %v3213
                  %v3215 = vld [vmem:[%s3161 + $0xd0] sm:$0xff]
                  %3216 = vst [vmem:[%s3162 + $0xd0] sm:$0xff] %v3215
                  %v3217 = vld [vmem:[%s3161 + $0xd8] sm:$0xff]
                  %3218 = vst [vmem:[%s3162 + $0xd8] sm:$0xff] %v3217
                  %v3219 = vld [vmem:[%s3161 + $0xe0] sm:$0xff]
                  %3220 = vst [vmem:[%s3162 + $0xe0] sm:$0xff] %v3219
                  %v3221 = vld [vmem:[%s3161 + $0xe8] sm:$0xff]
                  %3222 = vst [vmem:[%s3162 + $0xe8] sm:$0xff] %v3221
                  %v3223 = vld [vmem:[%s3161 + $0xf0] sm:$0xff]
                  %3224 = vst [vmem:[%s3162 + $0xf0] sm:$0xff] %v3223
                  %v3225 = vld [vmem:[%s3161 + $0xf8] sm:$0xff]
                  %3226 = vst [vmem:[%s3162 + $0xf8] sm:$0xff] %v3225
                  %v3227 = vld [vmem:[%s3161 + $0x100] sm:$0xff]
                  %3228 = vst [vmem:[%s3162 + $0x100] sm:$0xff] %v3227
                  %v3229 = vld [vmem:[%s3161 + $0x108] sm:$0xff]
                  %3230 = vst [vmem:[%s3162 + $0x108] sm:$0xff] %v3229
                  %v3231 = vld [vmem:[%s3161 + $0x110] sm:$0xff]
                  %3232 = vst [vmem:[%s3162 + $0x110] sm:$0xff] %v3231
                  %v3233 = vld [vmem:[%s3161 + $0x118] sm:$0xff]
                  %3234 = vst [vmem:[%s3162 + $0x118] sm:$0xff] %v3233
                  %v3235 = vld [vmem:[%s3161 + $0x120] sm:$0xff]
                  %3236 = vst [vmem:[%s3162 + $0x120] sm:$0xff] %v3235
                  %v3237 = vld [vmem:[%s3161 + $0x128] sm:$0xff]
                  %3238 = vst [vmem:[%s3162 + $0x128] sm:$0xff] %v3237
                  %v3239 = vld [vmem:[%s3161 + $0x130] sm:$0xff]
                  %3240 = vst [vmem:[%s3162 + $0x130] sm:$0xff] %v3239
                  %v3241 = vld [vmem:[%s3161 + $0x138] sm:$0xff]
                  %3242 = vst [vmem:[%s3162 + $0x138] sm:$0xff] %v3241
                  %v3243 = vld [vmem:[%s3161 + $0x140] sm:$0xff]
                  %3244 = vst [vmem:[%s3162 + $0x140] sm:$0xff] %v3243
                  %v3245 = vld [vmem:[%s3161 + $0x148] sm:$0xff]
                  %3246 = vst [vmem:[%s3162 + $0x148] sm:$0xff] %v3245
                  %v3247 = vld [vmem:[%s3161 + $0x150] sm:$0xff]
                  %3248 = vst [vmem:[%s3162 + $0x150] sm:$0xff] %v3247
                  %v3249 = vld [vmem:[%s3161 + $0x158] sm:$0xff]
                  %3250 = vst [vmem:[%s3162 + $0x158] sm:$0xff] %v3249
                  %v3251 = vld [vmem:[%s3161 + $0x160] sm:$0xff]
                  %3252 = vst [vmem:[%s3162 + $0x160] sm:$0xff] %v3251
                  %v3253 = vld [vmem:[%s3161 + $0x168] sm:$0xff]
                  %3254 = vst [vmem:[%s3162 + $0x168] sm:$0xff] %v3253
                  %v3255 = vld [vmem:[%s3161 + $0x170] sm:$0xff]
                  %3256 = vst [vmem:[%s3162 + $0x170] sm:$0xff] %v3255
                  %v3257 = vld [vmem:[%s3161 + $0x178] sm:$0xff]
                  %3258 = vst [vmem:[%s3162 + $0x178] sm:$0xff] %v3257
                  %v3259 = vld [vmem:[%s3161 + $0x180] sm:$0xff]
                  %3260 = vst [vmem:[%s3162 + $0x180] sm:$0xff] %v3259
                  %v3261 = vld [vmem:[%s3161 + $0x188] sm:$0xff]
                  %3262 = vst [vmem:[%s3162 + $0x188] sm:$0xff] %v3261
                  %v3263 = vld [vmem:[%s3161 + $0x190] sm:$0xff]
                  %3264 = vst [vmem:[%s3162 + $0x190] sm:$0xff] %v3263
                  %v3265 = vld [vmem:[%s3161 + $0x198] sm:$0xff]
                  %3266 = vst [vmem:[%s3162 + $0x198] sm:$0xff] %v3265
                  %v3267 = vld [vmem:[%s3161 + $0x1a0] sm:$0xff]
                  %3268 = vst [vmem:[%s3162 + $0x1a0] sm:$0xff] %v3267
                  %v3269 = vld [vmem:[%s3161 + $0x1a8] sm:$0xff]
                  %3270 = vst [vmem:[%s3162 + $0x1a8] sm:$0xff] %v3269
                  %v3271 = vld [vmem:[%s3161 + $0x1b0] sm:$0xff]
                  %3272 = vst [vmem:[%s3162 + $0x1b0] sm:$0xff] %v3271
                  %v3273 = vld [vmem:[%s3161 + $0x1b8] sm:$0xff]
                  %3274 = vst [vmem:[%s3162 + $0x1b8] sm:$0xff] %v3273
                  %v3275 = vld [vmem:[%s3161 + $0x1c0] sm:$0xff]
                  %3276 = vst [vmem:[%s3162 + $0x1c0] sm:$0xff] %v3275
                  %v3277 = vld [vmem:[%s3161 + $0x1c8] sm:$0xff]
                  %3278 = vst [vmem:[%s3162 + $0x1c8] sm:$0xff] %v3277
                  %v3279 = vld [vmem:[%s3161 + $0x1d0] sm:$0xff]
                  %3280 = vst [vmem:[%s3162 + $0x1d0] sm:$0xff] %v3279
                  %v3281 = vld [vmem:[%s3161 + $0x1d8] sm:$0xff]
                  %3282 = vst [vmem:[%s3162 + $0x1d8] sm:$0xff] %v3281
                  %v3283 = vld [vmem:[%s3161 + $0x1e0] sm:$0xff]
                  %3284 = vst [vmem:[%s3162 + $0x1e0] sm:$0xff] %v3283
                  %v3285 = vld [vmem:[%s3161 + $0x1e8] sm:$0xff]
                  %3286 = vst [vmem:[%s3162 + $0x1e8] sm:$0xff] %v3285
                  %v3287 = vld [vmem:[%s3161 + $0x1f0] sm:$0xff]
                  %3288 = vst [vmem:[%s3162 + $0x1f0] sm:$0xff] %v3287
                  %v3289 = vld [vmem:[%s3161 + $0x1f8] sm:$0xff]
                  %3290 = vst [vmem:[%s3162 + $0x1f8] sm:$0xff] %v3289
                  %s3291 = sadd.s32 1, %s3160
                  %p3292 = scmp.ge.s32.totalorder %s3291, %s3153
                  %s3293 = scalar_select %p3292, 0, %s3291
                  %s3294 = smul.u32 %s3293, 512
                  %s3295 = smul.u32 %s3293, 512
                  %s3296 = scalar_lea.vmem %s2961, %s3294 [#allocation2]
                  %s3297 = scalar_lea.vmem %s2972, %s3295
                $region79: #{_forward_impl.3} parent=73 // loop_footer
                  %s3157 = sadd.s32 %s3155, 1
                $region80: #{_forward_impl.3} parent=73 // loop_footer_branch
                  %3154 = sbr.rel target = $region76
                $region81: #{_forward_impl.3} parent=73 // loop_exit
                  _
                %s3298 = sshrl.u32 %s2968, 6
                %s3299 = sand.u32 %s2968, 63
                %s3300 = smul.u32 %s3298, 64
                %s3301 = smul.u32 8, %s3300
                %s3302 = scalar_lea.vmem %s2961, %s3301 [#allocation2]
                %s3303 = smul.u32 8, %s3300
                %s3304 = scalar_lea.vmem %s2972, %s3303
                // While loop
                $region82: #{_forward_impl.3} parent=73 // loop_pre_header
                  _
                $region83: #{_forward_impl.3} parent=73 // loop_header
                  %s3306 = sphi 0, %s3308
                  %p3307 = scmp.ge.s32.totalorder %s3306, %s3299
                  %s3311 = sphi 0, %s3318
                  %s3312 = sphi %s3302, %s3321
                  %s3313 = sphi %s3304, %s3322
                $region84: #{_forward_impl.3} parent=73 // loop_header_branch
                  %3310 = sbr.rel (%p3307) target = $region88
                $region85: #{_forward_impl.3} parent=73 // loop_body
                  %v3314 = vld [vmem:[%s3312] sm:$0xff]
                  %3315 = vst [vmem:[%s3313] sm:$0xff] %v3314
                  %s3316 = sadd.s32 1, %s3311
                  %p3317 = scmp.ge.s32.totalorder %s3316, %s3299
                  %s3318 = scalar_select %p3317, 0, %s3316
                  %s3319 = smul.u32 %s3318, 8
                  %s3320 = smul.u32 %s3318, 8
                  %s3321 = scalar_lea.vmem %s3302, %s3319 [#allocation2]
                  %s3322 = scalar_lea.vmem %s3304, %s3320
                $region86: #{_forward_impl.3} parent=73 // loop_footer
                  %s3308 = sadd.s32 %s3306, 1
                $region87: #{_forward_impl.3} parent=73 // loop_footer_branch
                  %3305 = sbr.rel target = $region83
                $region88: #{_forward_impl.3} parent=73 // loop_exit
                  _
              $region74: #{_forward_impl.3} parent=51 // pred_fallthru
                _
              // Predicated region
              $region89: #{_forward_impl.3} parent=51 // pred_check
                _
              $region90: #{_forward_impl.3} parent=51 // pred_check_branch
                %3324 = sbr.rel target = $region92
              $region91: #{_forward_impl.3} parent=51 // pred_region
                _
              $region92: #{_forward_impl.3} parent=51 // pred_fallthru
                _
            $region52: #{_forward_impl.3} parent=47 // pred_fallthru
              _
            // Predicated region
            $region53: #{_forward_impl.3} parent=47 // pred_check
              _
            $region54: #{_forward_impl.3} parent=47 // pred_check_branch
              %2979 = sbr.rel target = $region56
            $region55: #{_forward_impl.3} parent=47 // pred_region
              %s2981 = sshrl.u32 %s2968, 6
              // While loop
              $region57: #{_forward_impl.3} parent=55 // loop_pre_header
                _
              $region58: #{_forward_impl.3} parent=55 // loop_header
                %s2983 = sphi 0, %s2985
                %p2984 = scmp.ge.s32.totalorder %s2983, %s2981
                %s2988 = sphi 0, %s3121
                %s2989 = sphi %s2961, %s3124
                %s2990 = sphi %s2972, %s3125
              $region59: #{_forward_impl.3} parent=55 // loop_header_branch
                %2987 = sbr.rel (%p2984) target = $region63
              $region60: #{_forward_impl.3} parent=55 // loop_body
                %v2991 = vld [vmem:[%s2989] sm:$0xff]
                %2992 = vst [vmem:[%s2990] sm:$0xff] %v2991
                %v2993 = vld [vmem:[%s2989 + $0x8] sm:$0xff]
                %2994 = vst [vmem:[%s2990 + $0x8] sm:$0xff] %v2993
                %v2995 = vld [vmem:[%s2989 + $0x10] sm:$0xff]
                %2996 = vst [vmem:[%s2990 + $0x10] sm:$0xff] %v2995
                %v2997 = vld [vmem:[%s2989 + $0x18] sm:$0xff]
                %2998 = vst [vmem:[%s2990 + $0x18] sm:$0xff] %v2997
                %v2999 = vld [vmem:[%s2989 + $0x20] sm:$0xff]
                %3000 = vst [vmem:[%s2990 + $0x20] sm:$0xff] %v2999
                %v3001 = vld [vmem:[%s2989 + $0x28] sm:$0xff]
                %3002 = vst [vmem:[%s2990 + $0x28] sm:$0xff] %v3001
                %v3003 = vld [vmem:[%s2989 + $0x30] sm:$0xff]
                %3004 = vst [vmem:[%s2990 + $0x30] sm:$0xff] %v3003
                %v3005 = vld [vmem:[%s2989 + $0x38] sm:$0xff]
                %3006 = vst [vmem:[%s2990 + $0x38] sm:$0xff] %v3005
                %v3007 = vld [vmem:[%s2989 + $0x40] sm:$0xff]
                %3008 = vst [vmem:[%s2990 + $0x40] sm:$0xff] %v3007
                %v3009 = vld [vmem:[%s2989 + $0x48] sm:$0xff]
                %3010 = vst [vmem:[%s2990 + $0x48] sm:$0xff] %v3009
                %v3011 = vld [vmem:[%s2989 + $0x50] sm:$0xff]
                %3012 = vst [vmem:[%s2990 + $0x50] sm:$0xff] %v3011
                %v3013 = vld [vmem:[%s2989 + $0x58] sm:$0xff]
                %3014 = vst [vmem:[%s2990 + $0x58] sm:$0xff] %v3013
                %v3015 = vld [vmem:[%s2989 + $0x60] sm:$0xff]
                %3016 = vst [vmem:[%s2990 + $0x60] sm:$0xff] %v3015
                %v3017 = vld [vmem:[%s2989 + $0x68] sm:$0xff]
                %3018 = vst [vmem:[%s2990 + $0x68] sm:$0xff] %v3017
                %v3019 = vld [vmem:[%s2989 + $0x70] sm:$0xff]
                %3020 = vst [vmem:[%s2990 + $0x70] sm:$0xff] %v3019
                %v3021 = vld [vmem:[%s2989 + $0x78] sm:$0xff]
                %3022 = vst [vmem:[%s2990 + $0x78] sm:$0xff] %v3021
                %v3023 = vld [vmem:[%s2989 + $0x80] sm:$0xff]
                %3024 = vst [vmem:[%s2990 + $0x80] sm:$0xff] %v3023
                %v3025 = vld [vmem:[%s2989 + $0x88] sm:$0xff]
                %3026 = vst [vmem:[%s2990 + $0x88] sm:$0xff] %v3025
                %v3027 = vld [vmem:[%s2989 + $0x90] sm:$0xff]
                %3028 = vst [vmem:[%s2990 + $0x90] sm:$0xff] %v3027
                %v3029 = vld [vmem:[%s2989 + $0x98] sm:$0xff]
                %3030 = vst [vmem:[%s2990 + $0x98] sm:$0xff] %v3029
                %v3031 = vld [vmem:[%s2989 + $0xa0] sm:$0xff]
                %3032 = vst [vmem:[%s2990 + $0xa0] sm:$0xff] %v3031
                %v3033 = vld [vmem:[%s2989 + $0xa8] sm:$0xff]
                %3034 = vst [vmem:[%s2990 + $0xa8] sm:$0xff] %v3033
                %v3035 = vld [vmem:[%s2989 + $0xb0] sm:$0xff]
                %3036 = vst [vmem:[%s2990 + $0xb0] sm:$0xff] %v3035
                %v3037 = vld [vmem:[%s2989 + $0xb8] sm:$0xff]
                %3038 = vst [vmem:[%s2990 + $0xb8] sm:$0xff] %v3037
                %v3039 = vld [vmem:[%s2989 + $0xc0] sm:$0xff]
                %3040 = vst [vmem:[%s2990 + $0xc0] sm:$0xff] %v3039
                %v3041 = vld [vmem:[%s2989 + $0xc8] sm:$0xff]
                %3042 = vst [vmem:[%s2990 + $0xc8] sm:$0xff] %v3041
                %v3043 = vld [vmem:[%s2989 + $0xd0] sm:$0xff]
                %3044 = vst [vmem:[%s2990 + $0xd0] sm:$0xff] %v3043
                %v3045 = vld [vmem:[%s2989 + $0xd8] sm:$0xff]
                %3046 = vst [vmem:[%s2990 + $0xd8] sm:$0xff] %v3045
                %v3047 = vld [vmem:[%s2989 + $0xe0] sm:$0xff]
                %3048 = vst [vmem:[%s2990 + $0xe0] sm:$0xff] %v3047
                %v3049 = vld [vmem:[%s2989 + $0xe8] sm:$0xff]
                %3050 = vst [vmem:[%s2990 + $0xe8] sm:$0xff] %v3049
                %v3051 = vld [vmem:[%s2989 + $0xf0] sm:$0xff]
                %3052 = vst [vmem:[%s2990 + $0xf0] sm:$0xff] %v3051
                %v3053 = vld [vmem:[%s2989 + $0xf8] sm:$0xff]
                %3054 = vst [vmem:[%s2990 + $0xf8] sm:$0xff] %v3053
                %v3055 = vld [vmem:[%s2989 + $0x100] sm:$0xff]
                %3056 = vst [vmem:[%s2990 + $0x100] sm:$0xff] %v3055
                %v3057 = vld [vmem:[%s2989 + $0x108] sm:$0xff]
                %3058 = vst [vmem:[%s2990 + $0x108] sm:$0xff] %v3057
                %v3059 = vld [vmem:[%s2989 + $0x110] sm:$0xff]
                %3060 = vst [vmem:[%s2990 + $0x110] sm:$0xff] %v3059
                %v3061 = vld [vmem:[%s2989 + $0x118] sm:$0xff]
                %3062 = vst [vmem:[%s2990 + $0x118] sm:$0xff] %v3061
                %v3063 = vld [vmem:[%s2989 + $0x120] sm:$0xff]
                %3064 = vst [vmem:[%s2990 + $0x120] sm:$0xff] %v3063
                %v3065 = vld [vmem:[%s2989 + $0x128] sm:$0xff]
                %3066 = vst [vmem:[%s2990 + $0x128] sm:$0xff] %v3065
                %v3067 = vld [vmem:[%s2989 + $0x130] sm:$0xff]
                %3068 = vst [vmem:[%s2990 + $0x130] sm:$0xff] %v3067
                %v3069 = vld [vmem:[%s2989 + $0x138] sm:$0xff]
                %3070 = vst [vmem:[%s2990 + $0x138] sm:$0xff] %v3069
                %v3071 = vld [vmem:[%s2989 + $0x140] sm:$0xff]
                %3072 = vst [vmem:[%s2990 + $0x140] sm:$0xff] %v3071
                %v3073 = vld [vmem:[%s2989 + $0x148] sm:$0xff]
                %3074 = vst [vmem:[%s2990 + $0x148] sm:$0xff] %v3073
                %v3075 = vld [vmem:[%s2989 + $0x150] sm:$0xff]
                %3076 = vst [vmem:[%s2990 + $0x150] sm:$0xff] %v3075
                %v3077 = vld [vmem:[%s2989 + $0x158] sm:$0xff]
                %3078 = vst [vmem:[%s2990 + $0x158] sm:$0xff] %v3077
                %v3079 = vld [vmem:[%s2989 + $0x160] sm:$0xff]
                %3080 = vst [vmem:[%s2990 + $0x160] sm:$0xff] %v3079
                %v3081 = vld [vmem:[%s2989 + $0x168] sm:$0xff]
                %3082 = vst [vmem:[%s2990 + $0x168] sm:$0xff] %v3081
                %v3083 = vld [vmem:[%s2989 + $0x170] sm:$0xff]
                %3084 = vst [vmem:[%s2990 + $0x170] sm:$0xff] %v3083
                %v3085 = vld [vmem:[%s2989 + $0x178] sm:$0xff]
                %3086 = vst [vmem:[%s2990 + $0x178] sm:$0xff] %v3085
                %v3087 = vld [vmem:[%s2989 + $0x180] sm:$0xff]
                %3088 = vst [vmem:[%s2990 + $0x180] sm:$0xff] %v3087
                %v3089 = vld [vmem:[%s2989 + $0x188] sm:$0xff]
                %3090 = vst [vmem:[%s2990 + $0x188] sm:$0xff] %v3089
                %v3091 = vld [vmem:[%s2989 + $0x190] sm:$0xff]
                %3092 = vst [vmem:[%s2990 + $0x190] sm:$0xff] %v3091
                %v3093 = vld [vmem:[%s2989 + $0x198] sm:$0xff]
                %3094 = vst [vmem:[%s2990 + $0x198] sm:$0xff] %v3093
                %v3095 = vld [vmem:[%s2989 + $0x1a0] sm:$0xff]
                %3096 = vst [vmem:[%s2990 + $0x1a0] sm:$0xff] %v3095
                %v3097 = vld [vmem:[%s2989 + $0x1a8] sm:$0xff]
                %3098 = vst [vmem:[%s2990 + $0x1a8] sm:$0xff] %v3097
                %v3099 = vld [vmem:[%s2989 + $0x1b0] sm:$0xff]
                %3100 = vst [vmem:[%s2990 + $0x1b0] sm:$0xff] %v3099
                %v3101 = vld [vmem:[%s2989 + $0x1b8] sm:$0xff]
                %3102 = vst [vmem:[%s2990 + $0x1b8] sm:$0xff] %v3101
                %v3103 = vld [vmem:[%s2989 + $0x1c0] sm:$0xff]
                %3104 = vst [vmem:[%s2990 + $0x1c0] sm:$0xff] %v3103
                %v3105 = vld [vmem:[%s2989 + $0x1c8] sm:$0xff]
                %3106 = vst [vmem:[%s2990 + $0x1c8] sm:$0xff] %v3105
                %v3107 = vld [vmem:[%s2989 + $0x1d0] sm:$0xff]
                %3108 = vst [vmem:[%s2990 + $0x1d0] sm:$0xff] %v3107
                %v3109 = vld [vmem:[%s2989 + $0x1d8] sm:$0xff]
                %3110 = vst [vmem:[%s2990 + $0x1d8] sm:$0xff] %v3109
                %v3111 = vld [vmem:[%s2989 + $0x1e0] sm:$0xff]
                %3112 = vst [vmem:[%s2990 + $0x1e0] sm:$0xff] %v3111
                %v3113 = vld [vmem:[%s2989 + $0x1e8] sm:$0xff]
                %3114 = vst [vmem:[%s2990 + $0x1e8] sm:$0xff] %v3113
                %v3115 = vld [vmem:[%s2989 + $0x1f0] sm:$0xff]
                %3116 = vst [vmem:[%s2990 + $0x1f0] sm:$0xff] %v3115
                %v3117 = vld [vmem:[%s2989 + $0x1f8] sm:$0xff]
                %3118 = vst [vmem:[%s2990 + $0x1f8] sm:$0xff] %v3117
                %s3119 = sadd.s32 1, %s2988
                %p3120 = scmp.ge.s32.totalorder %s3119, %s2981
                %s3121 = scalar_select %p3120, 0, %s3119
                %s3122 = smul.u32 %s3121, 512
                %s3123 = smul.u32 %s3121, 512
                %s3124 = scalar_lea.vmem %s2961, %s3122 [#allocation2]
                %s3125 = scalar_lea.vmem %s2972, %s3123
              $region61: #{_forward_impl.3} parent=55 // loop_footer
                %s2985 = sadd.s32 %s2983, 1
              $region62: #{_forward_impl.3} parent=55 // loop_footer_branch
                %2982 = sbr.rel target = $region58
              $region63: #{_forward_impl.3} parent=55 // loop_exit
                _
              %s3126 = sshrl.u32 %s2968, 6
              %s3127 = sand.u32 %s2968, 63
              %s3128 = smul.u32 %s3126, 64
              %s3129 = smul.u32 8, %s3128
              %s3130 = scalar_lea.vmem %s2961, %s3129 [#allocation2]
              %s3131 = smul.u32 8, %s3128
              %s3132 = scalar_lea.vmem %s2972, %s3131
              // While loop
              $region64: #{_forward_impl.3} parent=55 // loop_pre_header
                _
              $region65: #{_forward_impl.3} parent=55 // loop_header
                %s3134 = sphi 0, %s3136
                %p3135 = scmp.ge.s32.totalorder %s3134, %s3127
                %s3139 = sphi 0, %s3146
                %s3140 = sphi %s3130, %s3149
                %s3141 = sphi %s3132, %s3150
              $region66: #{_forward_impl.3} parent=55 // loop_header_branch
                %3138 = sbr.rel (%p3135) target = $region70
              $region67: #{_forward_impl.3} parent=55 // loop_body
                %v3142 = vld [vmem:[%s3140] sm:$0xff]
                %3143 = vst [vmem:[%s3141] sm:$0xff] %v3142
                %s3144 = sadd.s32 1, %s3139
                %p3145 = scmp.ge.s32.totalorder %s3144, %s3127
                %s3146 = scalar_select %p3145, 0, %s3144
                %s3147 = smul.u32 %s3146, 8
                %s3148 = smul.u32 %s3146, 8
                %s3149 = scalar_lea.vmem %s3130, %s3147 [#allocation2]
                %s3150 = scalar_lea.vmem %s3132, %s3148
              $region68: #{_forward_impl.3} parent=55 // loop_footer
                %s3136 = sadd.s32 %s3134, 1
              $region69: #{_forward_impl.3} parent=55 // loop_footer_branch
                %3133 = sbr.rel target = $region65
              $region70: #{_forward_impl.3} parent=55 // loop_exit
                _
            $region56: #{_forward_impl.3} parent=47 // pred_fallthru
              _
          $region48: #{_forward_impl.3} parent=43 // pred_fallthru
            _
          %3325 = vnop
        $region44: #{_forward_impl.3} parent=39 // pred_fallthru
          _
      $region40: #{_forward_impl.3} parent=5 // pred_fallthru
        _
      %p3326 = scmp.le.s32.totalorder 2, %s11
      // Predicated region
      $region93: #{_forward_impl.3} parent=5 // pred_check
        %p3327 = pneg %p3326
      $region94: #{_forward_impl.3} parent=5 // pred_check_branch
        %3329 = sbr.rel (%p3327) target = $region96
      $region95: #{_forward_impl.3} parent=5 // pred_region
        %s3330 = ssub.s32 %s11, 2
        // Predicated region
        $region97: #{_forward_impl.3} parent=95 // pred_check
          %p3331 = pneg %p150
        $region98: #{_forward_impl.3} parent=95 // pred_check_branch
          %3333 = sbr.rel (%p3331) target = $region100
        $region99: #{_forward_impl.3} parent=95 // pred_region
          %s3334 = sand.u32 %s135, 1
          %s3335 = sand.u32 %s135, 1
          %s3336 = smul.addr %s3335, 1024
          %s3337 = scalar_lea.vmem [#allocation2], %s3336
        $region100: #{_forward_impl.3} parent=95 // pred_fallthru
          _
      $region96: #{_forward_impl.3} parent=5 // pred_fallthru
        _
    $region6: #{_forward_impl.3} parent=1 // loop_footer
      %s15 = sadd.s32 1, %s11
    $region7: #{_forward_impl.3} parent=1 // loop_footer_branch
      %10 = sbr.rel target = $region3
    $region8: #{_forward_impl.3} parent=1 // loop_exit
      _

</llo_original>
